<compile_context>
chip_gen: v5e
topology: v5e:2x2
jax: 0.10.0
libtpu: 0.0.40
codegen_flags: <defaults>
</compile_context>

<pallas_src>
import functools

import jax
import jax.numpy as jnp
from jax.experimental import pallas as pl
from jax.experimental.pallas import tpu as pltpu


# ----------------------------------------------------------------------------
# Pallas kernels
# ----------------------------------------------------------------------------
def point_mlp_maxpool_kernel(x_ref, w1_ref, b1_ref, w2_ref, b2_ref,
                             w3_ref, b3_ref, o_ref, *, k):
    """conv1->conv2->conv3 over a (tm, k) point tile, max-pool into o_ref.

    conv3's bias + ReLU are deferred to the last point tile: max-pool commutes
    with a per-channel constant bias and with the monotonic ReLU, so per tile
    only z = h2 @ w3 and a tile max are needed (saves two (tm, cn) VPU passes
    per grid step).
    """
    j = pl.program_id(2)                       # point-tile (reduction) axis

    @pl.when(j == 0)
    def _init():
        o_ref[...] = jnp.full(o_ref.shape, -jnp.inf, o_ref.dtype)

    x = x_ref[0]                               # (tm, k) f32

    # Layer 1 (k -> 64).  For tiny k the MXU contraction depth is wasted, so
    # unroll it as k VPU multiply-adds (f32 elementwise works on every chip).
    if k <= 8:
        w1 = w1_ref[...]                       # (k, 64) f32
        h = x[:, 0:1] * w1[0:1, :] + b1_ref[...]
        for c in range(1, k):
            h = h + x[:, c:c + 1] * w1[c:c + 1, :]
        h = jnp.maximum(h, 0.0)                # (tm, 64) f32
    else:
        h = jnp.maximum(
            jnp.dot(x.astype(jnp.bfloat16), w1_ref[...].astype(jnp.bfloat16),
                    preferred_element_type=jnp.float32) + b1_ref[...], 0.0)

    # Layer 2 (64 -> 128): bf16 MXU operands, f32 accumulation / elementwise.
    h = jnp.maximum(
        jnp.dot(h.astype(jnp.bfloat16), w2_ref[...],
                preferred_element_type=jnp.float32) + b2_ref[...], 0.0)

    # Layer 3 (128 -> channel chunk): matmul only; bias/ReLU deferred.
    z = jnp.dot(h.astype(jnp.bfloat16), w3_ref[...],
                preferred_element_type=jnp.float32)        # (tm, cn) f32

    tile_max = jnp.max(z, axis=0, keepdims=True)           # (1, cn)
    o_ref[...] = jnp.maximum(o_ref[...], tile_max[None])

    @pl.when(j == pl.num_programs(2) - 1)
    def _finalize():
        o_ref[...] = jnp.maximum(o_ref[...] + b3_ref[...][None], 0.0)


def fc_head_kernel(p_ref, w1_ref, b1_ref, w2_ref, b2_ref, w3_ref, b3_ref,
                   o_ref):
    """fc1->relu->fc2->relu->fc3 on the (bs, 1024) pooled features."""
    h = jnp.maximum(
        jnp.dot(p_ref[...].astype(jnp.bfloat16), w1_ref[...],
                preferred_element_type=jnp.float32) + b1_ref[...], 0.0)
    h = jnp.maximum(
        jnp.dot(h.astype(jnp.bfloat16), w2_ref[...],
                preferred_element_type=jnp.float32) + b2_ref[...], 0.0)
    o_ref[...] = (
        jnp.dot(h.astype(jnp.bfloat16), w3_ref[...],
                preferred_element_type=jnp.float32) + b3_ref[...]
    ).astype(o_ref.dtype)


# ----------------------------------------------------------------------------
# Wrapper / forward pass
# ----------------------------------------------------------------------------
def _pick_point_tile(n, cap=2048):
    """Largest VMEM-friendly point-row tile (multiple of 8, capped)."""
    if n <= cap:
        return max(8, -(-n // 8) * 8)          # single tile, padded up to x8
    for tm in (2048, 1024, 512, 256):
        if tm <= cap and n % tm == 0:
            return tm
    return cap                                  # pad n up to a multiple of cap


def tnet_forward(x_bkn, params, *, k, c_chunks=2):
    bs, _, n = x_bkn.shape
    x = jnp.transpose(x_bkn, (0, 2, 1)).astype(jnp.float32)   # (bs, N, k)

    tm = _pick_point_tile(n)
    n_pad = pl.cdiv(n, tm) * tm
    if n_pad != n:
        # Duplicated edge points are neutral for the max-pool.
        x = jnp.pad(x, ((0, 0), (0, n_pad - n), (0, 0)), mode="edge")
    nt = n_pad // tm

    # conv weights: bf16 matmul operands (f32 MXU accumulation), f32 biases.
    w1, b1 = params["conv1"]
    w2, b2 = params["conv2"]
    w3, b3 = params["conv3"]
    w1 = w1.astype(jnp.float32)                 # used on the f32 VPU path
    w2 = w2.astype(jnp.bfloat16)
    w3 = w3.astype(jnp.bfloat16)
    b1, b2, b3 = (b.astype(jnp.float32) for b in (b1, b2, b3))

    out_ch = w3.shape[1]                        # 1024
    if out_ch % (c_chunks * 128) != 0:
        c_chunks = 1
    cn = out_ch // c_chunks                     # output-channel chunk

    kernel1 = functools.partial(point_mlp_maxpool_kernel, k=k)
    pooled = pl.pallas_call(
        kernel1,
        out_shape=jax.ShapeDtypeStruct((bs, 1, out_ch), jnp.float32),
        grid=(bs, c_chunks, nt),
        in_specs=[
            pl.BlockSpec((1, tm, k), lambda b, c, j: (b, j, 0)),
            pl.BlockSpec(w1.shape, lambda b, c, j: (0, 0)),
            pl.BlockSpec(b1.shape, lambda b, c, j: (0, 0)),
            pl.BlockSpec(w2.shape, lambda b, c, j: (0, 0)),
            pl.BlockSpec(b2.shape, lambda b, c, j: (0, 0)),
            pl.BlockSpec((w3.shape[0], cn), lambda b, c, j: (0, c)),
            pl.BlockSpec((1, cn), lambda b, c, j: (0, c)),
        ],
        out_specs=pl.BlockSpec((1, 1, cn), lambda b, c, j: (b, 0, c)),
        compiler_params=pltpu.CompilerParams(
            dimension_semantics=("parallel", "parallel", "arbitrary")),
    )(x, w1, b1, w2, b2, w3, b3)
    pooled = pooled.reshape(bs, out_ch)

    fw1, fb1 = params["fc1"]
    fw2, fb2 = params["fc2"]
    fw3, fb3 = params["fc3"]
    fw1, fw2, fw3 = (w.astype(jnp.bfloat16) for w in (fw1, fw2, fw3))
    fb1, fb2, fb3 = (b.astype(jnp.float32) for b in (fb1, fb2, fb3))

    raw = pl.pallas_call(
        fc_head_kernel,
        out_shape=jax.ShapeDtypeStruct((bs, k * k), jnp.float32),
        grid=(1,),
        in_specs=[
            pl.BlockSpec((bs, out_ch), lambda i: (0, 0)),
            pl.BlockSpec(fw1.shape, lambda i: (0, 0)),
            pl.BlockSpec(fb1.shape, lambda i: (0, 0)),
            pl.BlockSpec(fw2.shape, lambda i: (0, 0)),
            pl.BlockSpec(fb2.shape, lambda i: (0, 0)),
            pl.BlockSpec(fw3.shape, lambda i: (0, 0)),
            pl.BlockSpec(fb3.shape, lambda i: (0, 0)),
        ],
        out_specs=pl.BlockSpec((bs, k * k), lambda i: (0, 0)),
        compiler_params=pltpu.CompilerParams(
            dimension_semantics=("arbitrary",)),
    )(pooled, fw1, fb1, fw2, fb2, fw3, fb3)

    # matrix = fc3(...) reshaped to (bs, k, k) + identity
    return raw.reshape(bs, k, k) + jnp.eye(k, dtype=raw.dtype)


# ----------------------------------------------------------------------------
# Pure-JAX f32 reference (mirrors the PyTorch forward) for validation
# ----------------------------------------------------------------------------
def tnet_reference(x_bkn, params, *, k):
    bs = x_bkn.shape[0]
    x = jnp.transpose(x_bkn, (0, 2, 1)).astype(jnp.float32)   # (bs, N, k)
    w1, b1 = params["conv1"]
    w2, b2 = params["conv2"]
    w3, b3 = params["conv3"]
    h = jnp.maximum(x @ w1 + b1, 0.0)
    h = jnp.maximum(h @ w2 + b2, 0.0)
    h = jnp.maximum(h @ w3 + b3, 0.0)
    pooled = jnp.max(h, axis=1)                                # (bs, 1024)
    fw1, fb1 = params["fc1"]
    fw2, fb2 = params["fc2"]
    fw3, fb3 = params["fc3"]
    h = jnp.maximum(pooled @ fw1 + fb1, 0.0)
    h = jnp.maximum(h @ fw2 + fb2, 0.0)
    raw = h @ fw3 + fb3
    return raw.reshape(bs, k, k) + jnp.eye(k, dtype=raw.dtype)


# ----------------------------------------------------------------------------
# Deterministic parameter construction (PyTorch-style uniform init)
# ----------------------------------------------------------------------------
def _init_linear(key, fan_in, fan_out):
    kw, kb = jax.random.split(key)
    bound = 1.0 / float(fan_in) ** 0.5
    w = jax.random.uniform(kw, (fan_in, fan_out), jnp.float32, -bound, bound)
    b = jax.random.uniform(kb, (1, fan_out), jnp.float32, -bound, bound)
    return w, b


def build_params(key, k=3):
    ks = jax.random.split(key, 6)
    return {
        "conv1": _init_linear(ks[0], k, 64),
        "conv2": _init_linear(ks[1], 64, 128),
        "conv3": _init_linear(ks[2], 128, 1024),
        "fc1": _init_linear(ks[3], 1024, 512),
        "fc2": _init_linear(ks[4], 512, 256),
        "fc3": _init_linear(ks[5], 256, k * k),
    }


# ----------------------------------------------------------------------------
# Main
# ----------------------------------------------------------------------------
if __name__ == "__main__":
    K = 3
    BS = 2
    N_POINTS = 256

    key = jax.random.PRNGKey(0)
    k_in, k_p = jax.random.split(key)

    # PyTorch-convention input: batch of (k, N) channels-first point clouds.
    x = jax.random.normal(k_in, (BS, K, N_POINTS), jnp.float32)
    params = build_params(k_p, K)

    fwd = jax.jit(functools.partial(tnet_forward, params=params, k=K))
    matrix = fwd(x)
    jax.block_until_ready(matrix)

    assert matrix.shape == (BS, K, K)
    assert bool(jnp.all(jnp.isfinite(matrix)))

    ref = tnet_reference(x, params, k=K)
    max_err = float(jnp.max(jnp.abs(matrix - ref)))
    assert bool(jnp.allclose(matrix, ref, rtol=5e-2, atol=3e-2)), max_err

    print("KERNEL_OK")
</pallas_src>

<mosaic_0001>
module attributes {stable_mosaic.version = 11 : i64} {
  func.func @fc_head_kernel(%arg0: i32, %arg1: memref<2x1024xf32, #tpu.memory_space<vmem>>, %arg2: memref<1024x512xbf16, #tpu.memory_space<vmem>>, %arg3: memref<1x512xf32, #tpu.memory_space<vmem>>, %arg4: memref<512x256xbf16, #tpu.memory_space<vmem>>, %arg5: memref<1x256xf32, #tpu.memory_space<vmem>>, %arg6: memref<256x9xbf16, #tpu.memory_space<vmem>>, %arg7: memref<1x9xf32, #tpu.memory_space<vmem>>, %arg8: memref<2x9xf32, #tpu.memory_space<vmem>>) attributes {dimension_semantics = [#tpu.dimension_semantics<arbitrary>], iteration_bounds = array<i64: 1>, scalar_prefetch = 0 : i64, scratch_operands = 0 : i64, tpu.core_type = #tpu.core_type<tc>, window_params = [{pipeline_mode = #tpu.pipeline_mode<synchronous>, transform_indices = @transform_0, window_bounds = array<i64: 2, 1024>}, {pipeline_mode = #tpu.pipeline_mode<synchronous>, transform_indices = @transform_1, window_bounds = array<i64: 1024, 512>}, {pipeline_mode = #tpu.pipeline_mode<synchronous>, transform_indices = @transform_2, window_bounds = array<i64: 1, 512>}, {pipeline_mode = #tpu.pipeline_mode<synchronous>, transform_indices = @transform_3, window_bounds = array<i64: 512, 256>}, {pipeline_mode = #tpu.pipeline_mode<synchronous>, transform_indices = @transform_4, window_bounds = array<i64: 1, 256>}, {pipeline_mode = #tpu.pipeline_mode<synchronous>, transform_indices = @transform_5, window_bounds = array<i64: 256, 9>}, {pipeline_mode = #tpu.pipeline_mode<synchronous>, transform_indices = @transform_6, window_bounds = array<i64: 1, 9>}, {pipeline_mode = #tpu.pipeline_mode<synchronous>, transform_indices = @transform_7, window_bounds = array<i64: 2, 9>}]} {
    %c0 = arith.constant 0 : index
    %c0_0 = arith.constant 0 : index
    %0 = vector.load %arg1[%c0, %c0_0] : memref<2x1024xf32, #tpu.memory_space<vmem>>, vector<2x1024xf32>
    %1 = arith.truncf %0 : vector<2x1024xf32> to vector<2x1024xbf16>
    %c0_1 = arith.constant 0 : index
    %c0_2 = arith.constant 0 : index
    %2 = vector.load %arg2[%c0_1, %c0_2] : memref<1024x512xbf16, #tpu.memory_space<vmem>>, vector<1024x512xbf16>
    %cst = arith.constant dense<0.000000e+00> : vector<2x512xf32>
    %3 = tpu.matmul %1, %2, %cst {dimension_numbers = #tpu.dot_dimension_numbers<[1], [0], [0], [1], [0, 0, 1, 1], [], []>} : vector<2x1024xbf16>, vector<1024x512xbf16>, vector<2x512xf32> -> vector<2x512xf32>
    %c0_3 = arith.constant 0 : index
    %c0_4 = arith.constant 0 : index
    %4 = vector.load %arg3[%c0_3, %c0_4] : memref<1x512xf32, #tpu.memory_space<vmem>>, vector<1x512xf32>
    %5 = vector.broadcast %4 : vector<1x512xf32> to vector<2x512xf32>
    %6 = arith.addf %3, %5 : vector<2x512xf32>
    %cst_5 = arith.constant 0.000000e+00 : f32
    %7 = vector.broadcast %cst_5 : f32 to vector<2x512xf32>
    %8 = arith.maximumf %6, %7 : vector<2x512xf32>
    %9 = arith.truncf %8 : vector<2x512xf32> to vector<2x512xbf16>
    %c0_6 = arith.constant 0 : index
    %c0_7 = arith.constant 0 : index
    %10 = vector.load %arg4[%c0_6, %c0_7] : memref<512x256xbf16, #tpu.memory_space<vmem>>, vector<512x256xbf16>
    %cst_8 = arith.constant dense<0.000000e+00> : vector<2x256xf32>
    %11 = tpu.matmul %9, %10, %cst_8 {dimension_numbers = #tpu.dot_dimension_numbers<[1], [0], [0], [1], [0, 0, 1, 1], [], []>} : vector<2x512xbf16>, vector<512x256xbf16>, vector<2x256xf32> -> vector<2x256xf32>
    %c0_9 = arith.constant 0 : index
    %c0_10 = arith.constant 0 : index
    %12 = vector.load %arg5[%c0_9, %c0_10] : memref<1x256xf32, #tpu.memory_space<vmem>>, vector<1x256xf32>
    %13 = vector.broadcast %12 : vector<1x256xf32> to vector<2x256xf32>
    %14 = arith.addf %11, %13 : vector<2x256xf32>
    %cst_11 = arith.constant 0.000000e+00 : f32
    %15 = vector.broadcast %cst_11 : f32 to vector<2x256xf32>
    %16 = arith.maximumf %14, %15 : vector<2x256xf32>
    %17 = arith.truncf %16 : vector<2x256xf32> to vector<2x256xbf16>
    %c0_12 = arith.constant 0 : index
    %c0_13 = arith.constant 0 : index
    %18 = vector.load %arg6[%c0_12, %c0_13] : memref<256x9xbf16, #tpu.memory_space<vmem>>, vector<256x9xbf16>
    %cst_14 = arith.constant dense<0.000000e+00> : vector<2x9xf32>
    %19 = tpu.matmul %17, %18, %cst_14 {dimension_numbers = #tpu.dot_dimension_numbers<[1], [0], [0], [1], [0, 0, 1, 1], [], []>} : vector<2x256xbf16>, vector<256x9xbf16>, vector<2x9xf32> -> vector<2x9xf32>
    %c0_15 = arith.constant 0 : index
    %c0_16 = arith.constant 0 : index
    %20 = vector.load %arg7[%c0_15, %c0_16] : memref<1x9xf32, #tpu.memory_space<vmem>>, vector<1x9xf32>
    %21 = vector.broadcast %20 : vector<1x9xf32> to vector<2x9xf32>
    %22 = arith.addf %19, %21 : vector<2x9xf32>
    %c0_17 = arith.constant 0 : index
    %c0_18 = arith.constant 0 : index
    %23 = vector.load %arg8[%c0_17, %c0_18] : memref<2x9xf32, #tpu.memory_space<vmem>>, vector<2x9xf32>
    tpu.vector_store %arg8[%c0_17, %c0_18], %22 {strides = array<i32>} : memref<2x9xf32, #tpu.memory_space<vmem>>, vector<2x9xf32>,
    return
  }
  func.func @transform_0(%arg0: i32) -> (i32, i32) {
    %c0_i32 = arith.constant 0 : i32
    %c0_i32_0 = arith.constant 0 : i32
    %c0_i32_1 = arith.constant 0 : i32
    return %c0_i32, %c0_i32_0 : i32, i32
  }
  func.func @transform_1(%arg0: i32) -> (i32, i32) {
    %c0_i32 = arith.constant 0 : i32
    %c0_i32_0 = arith.constant 0 : i32
    %c0_i32_1 = arith.constant 0 : i32
    return %c0_i32, %c0_i32_0 : i32, i32
  }
  func.func @transform_2(%arg0: i32) -> (i32, i32) {
    %c0_i32 = arith.constant 0 : i32
    %c0_i32_0 = arith.constant 0 : i32
    %c0_i32_1 = arith.constant 0 : i32
    return %c0_i32, %c0_i32_0 : i32, i32
  }
  func.func @transform_3(%arg0: i32) -> (i32, i32) {
    %c0_i32 = arith.constant 0 : i32
    %c0_i32_0 = arith.constant 0 : i32
    %c0_i32_1 = arith.constant 0 : i32
    return %c0_i32, %c0_i32_0 : i32, i32
  }
  func.func @transform_4(%arg0: i32) -> (i32, i32) {
    %c0_i32 = arith.constant 0 : i32
    %c0_i32_0 = arith.constant 0 : i32
    %c0_i32_1 = arith.constant 0 : i32
    return %c0_i32, %c0_i32_0 : i32, i32
  }
  func.func @transform_5(%arg0: i32) -> (i32, i32) {
    %c0_i32 = arith.constant 0 : i32
    %c0_i32_0 = arith.constant 0 : i32
    %c0_i32_1 = arith.constant 0 : i32
    return %c0_i32, %c0_i32_0 : i32, i32
  }
  func.func @transform_6(%arg0: i32) -> (i32, i32) {
    %c0_i32 = arith.constant 0 : i32
    %c0_i32_0 = arith.constant 0 : i32
    %c0_i32_1 = arith.constant 0 : i32
    return %c0_i32, %c0_i32_0 : i32, i32
  }
  func.func @transform_7(%arg0: i32) -> (i32, i32) {
    %c0_i32 = arith.constant 0 : i32
    %c0_i32_0 = arith.constant 0 : i32
    %c0_i32_1 = arith.constant 0 : i32
    return %c0_i32, %c0_i32_0 : i32, i32
  }
}

module attributes {stable_mosaic.version = 11 : i64} {
  func.func @point_mlp_maxpool_kernel(%arg0: i32, %arg1: i32, %arg2: i32, %arg3: memref<1x256x3xf32, #tpu.memory_space<vmem>>, %arg4: memref<3x64xf32, #tpu.memory_space<vmem>>, %arg5: memref<1x64xf32, #tpu.memory_space<vmem>>, %arg6: memref<64x128xbf16, #tpu.memory_space<vmem>>, %arg7: memref<1x128xf32, #tpu.memory_space<vmem>>, %arg8: memref<128x512xbf16, #tpu.memory_space<vmem>>, %arg9: memref<1x512xf32, #tpu.memory_space<vmem>>, %arg10: memref<1x1x512xf32, #tpu.memory_space<vmem>>) attributes {dimension_semantics = [#tpu.dimension_semantics<parallel>, #tpu.dimension_semantics<parallel>, #tpu.dimension_semantics<arbitrary>], iteration_bounds = array<i64: 2, 2, 1>, scalar_prefetch = 0 : i64, scratch_operands = 0 : i64, tpu.core_type = #tpu.core_type<tc>, window_params = [{transform_indices = @transform_0, window_bounds = array<i64: 1, 256, 3>}, {pipeline_mode = #tpu.pipeline_mode<synchronous>, transform_indices = @transform_1, window_bounds = array<i64: 3, 64>}, {pipeline_mode = #tpu.pipeline_mode<synchronous>, transform_indices = @transform_2, window_bounds = array<i64: 1, 64>}, {pipeline_mode = #tpu.pipeline_mode<synchronous>, transform_indices = @transform_3, window_bounds = array<i64: 64, 128>}, {pipeline_mode = #tpu.pipeline_mode<synchronous>, transform_indices = @transform_4, window_bounds = array<i64: 1, 128>}, {transform_indices = @transform_5, window_bounds = array<i64: 128, 512>}, {transform_indices = @transform_6, window_bounds = array<i64: 1, 512>}, {transform_indices = @transform_7, window_bounds = array<i64: 1, 1, 512>}]} {
    %c0_i32 = arith.constant 0 : i32
    %0 = arith.cmpi eq, %arg2, %c0_i32 : i32
    %1 = arith.extui %0 : i1 to i32
    %c0_i32_0 = arith.constant 0 : i32
    %2 = arith.cmpi ne, %1, %c0_i32_0 : i32
    scf.if %2 {
      %cst_25 = arith.constant 0xFF800000 : f32
      %48 = vector.broadcast %cst_25 : f32 to vector<1x1x512xf32>
      %c0_26 = arith.constant 0 : index
      %c0_27 = arith.constant 0 : index
      %c0_28 = arith.constant 0 : index
      %49 = vector.load %arg10[%c0_26, %c0_27, %c0_28] : memref<1x1x512xf32, #tpu.memory_space<vmem>>, vector<1x1x512xf32>
      tpu.vector_store %arg10[%c0_26, %c0_27, %c0_28], %48 {strides = array<i32>} : memref<1x1x512xf32, #tpu.memory_space<vmem>>, vector<1x1x512xf32>,
    } else {
    }
    %c0 = arith.constant 0 : index
    %c0_1 = arith.constant 0 : index
    %c0_2 = arith.constant 0 : index
    %3 = vector.load %arg3[%c0, %c0_1, %c0_2] : memref<1x256x3xf32, #tpu.memory_space<vmem>>, vector<1x256x3xf32>
    %4 = vector.shape_cast %3 : vector<1x256x3xf32> to vector<256x3xf32>
    %c0_3 = arith.constant 0 : index
    %c0_4 = arith.constant 0 : index
    %5 = vector.load %arg4[%c0_3, %c0_4] : memref<3x64xf32, #tpu.memory_space<vmem>>, vector<3x64xf32>
    %6 = vector.extract_strided_slice %4 {offsets = [0, 0], sizes = [256, 1], strides = [1, 1]} : vector<256x3xf32> to vector<256x1xf32>
    %7 = vector.extract_strided_slice %5 {offsets = [0, 0], sizes = [1, 64], strides = [1, 1]} : vector<3x64xf32> to vector<1x64xf32>
    %8 = vector.broadcast %6 : vector<256x1xf32> to vector<256x64xf32>
    %9 = vector.broadcast %7 : vector<1x64xf32> to vector<256x64xf32>
    %10 = arith.mulf %8, %9 : vector<256x64xf32>
    %c0_5 = arith.constant 0 : index
    %c0_6 = arith.constant 0 : index
    %11 = vector.load %arg5[%c0_5, %c0_6] : memref<1x64xf32, #tpu.memory_space<vmem>>, vector<1x64xf32>
    %12 = vector.broadcast %11 : vector<1x64xf32> to vector<256x64xf32>
    %13 = arith.addf %10, %12 : vector<256x64xf32>
    %14 = vector.extract_strided_slice %4 {offsets = [0, 1], sizes = [256, 1], strides = [1, 1]} : vector<256x3xf32> to vector<256x1xf32>
    %15 = vector.extract_strided_slice %5 {offsets = [1, 0], sizes = [1, 64], strides = [1, 1]} : vector<3x64xf32> to vector<1x64xf32>
    %16 = vector.broadcast %14 : vector<256x1xf32> to vector<256x64xf32>
    %17 = vector.broadcast %15 : vector<1x64xf32> to vector<256x64xf32>
    %18 = arith.mulf %16, %17 : vector<256x64xf32>
    %19 = arith.addf %13, %18 : vector<256x64xf32>
    %20 = vector.extract_strided_slice %4 {offsets = [0, 2], sizes = [256, 1], strides = [1, 1]} : vector<256x3xf32> to vector<256x1xf32>
    %21 = vector.extract_strided_slice %5 {offsets = [2, 0], sizes = [1, 64], strides = [1, 1]} : vector<3x64xf32> to vector<1x64xf32>
    %22 = vector.broadcast %20 : vector<256x1xf32> to vector<256x64xf32>
    %23 = vector.broadcast %21 : vector<1x64xf32> to vector<256x64xf32>
    %24 = arith.mulf %22, %23 : vector<256x64xf32>
    %25 = arith.addf %19, %24 : vector<256x64xf32>
    %cst = arith.constant 0.000000e+00 : f32
    %26 = vector.broadcast %cst : f32 to vector<256x64xf32>
    %27 = arith.maximumf %25, %26 : vector<256x64xf32>
    %28 = arith.truncf %27 : vector<256x64xf32> to vector<256x64xbf16>
    %c0_7 = arith.constant 0 : index
    %c0_8 = arith.constant 0 : index
    %29 = vector.load %arg6[%c0_7, %c0_8] : memref<64x128xbf16, #tpu.memory_space<vmem>>, vector<64x128xbf16>
    %cst_9 = arith.constant dense<0.000000e+00> : vector<256x128xf32>
    %30 = tpu.matmul %28, %29, %cst_9 {dimension_numbers = #tpu.dot_dimension_numbers<[1], [0], [0], [1], [0, 0, 1, 1], [], []>} : vector<256x64xbf16>, vector<64x128xbf16>, vector<256x128xf32> -> vector<256x128xf32>
    %c0_10 = arith.constant 0 : index
    %c0_11 = arith.constant 0 : index
    %31 = vector.load %arg7[%c0_10, %c0_11] : memref<1x128xf32, #tpu.memory_space<vmem>>, vector<1x128xf32>
    %32 = vector.broadcast %31 : vector<1x128xf32> to vector<256x128xf32>
    %33 = arith.addf %30, %32 : vector<256x128xf32>
    %cst_12 = arith.constant 0.000000e+00 : f32
    %34 = vector.broadcast %cst_12 : f32 to vector<256x128xf32>
    %35 = arith.maximumf %33, %34 : vector<256x128xf32>
    %36 = arith.truncf %35 : vector<256x128xf32> to vector<256x128xbf16>
    %c0_13 = arith.constant 0 : index
    %c0_14 = arith.constant 0 : index
    %37 = vector.load %arg8[%c0_13, %c0_14] : memref<128x512xbf16, #tpu.memory_space<vmem>>, vector<128x512xbf16>
    %cst_15 = arith.constant dense<0.000000e+00> : vector<256x512xf32>
    %38 = tpu.matmul %36, %37, %cst_15 {dimension_numbers = #tpu.dot_dimension_numbers<[1], [0], [0], [1], [0, 0, 1, 1], [], []>} : vector<256x128xbf16>, vector<128x512xbf16>, vector<256x512xf32> -> vector<256x512xf32>
    %cst_16 = arith.constant dense<0xFF800000> : vector<512xf32>
    %39 = vector.multi_reduction <maximumf>, %38, %cst_16 [0] : vector<256x512xf32> to vector<512xf32>
    %40 = vector.shape_cast %39 : vector<512xf32> to vector<1x512xf32>
    %c0_17 = arith.constant 0 : index
    %c0_18 = arith.constant 0 : index
    %c0_19 = arith.constant 0 : index
    %41 = vector.load %arg10[%c0_17, %c0_18, %c0_19] : memref<1x1x512xf32, #tpu.memory_space<vmem>>, vector<1x1x512xf32>
    %42 = vector.shape_cast %40 : vector<1x512xf32> to vector<1x1x512xf32>
    %43 = arith.maximumf %41, %42 : vector<1x1x512xf32>
    %c0_20 = arith.constant 0 : index
    %c0_21 = arith.constant 0 : index
    %c0_22 = arith.constant 0 : index
    %44 = vector.load %arg10[%c0_20, %c0_21, %c0_22] : memref<1x1x512xf32, #tpu.memory_space<vmem>>, vector<1x1x512xf32>
    tpu.vector_store %arg10[%c0_20, %c0_21, %c0_22], %43 {strides = array<i32>} : memref<1x1x512xf32, #tpu.memory_space<vmem>>, vector<1x1x512xf32>,
    %c0_i32_23 = arith.constant 0 : i32
    %45 = arith.cmpi eq, %arg2, %c0_i32_23 : i32
    %46 = arith.extui %45 : i1 to i32
    %c0_i32_24 = arith.constant 0 : i32
    %47 = arith.cmpi ne, %46, %c0_i32_24 : i32
    scf.if %47 {
      %c0_25 = arith.constant 0 : index
      %c0_26 = arith.constant 0 : index
      %c0_27 = arith.constant 0 : index
      %48 = vector.load %arg10[%c0_25, %c0_26, %c0_27] : memref<1x1x512xf32, #tpu.memory_space<vmem>>, vector<1x1x512xf32>
      %c0_28 = arith.constant 0 : index
      %c0_29 = arith.constant 0 : index
      %49 = vector.load %arg9[%c0_28, %c0_29] : memref<1x512xf32, #tpu.memory_space<vmem>>, vector<1x512xf32>
      %50 = vector.shape_cast %49 : vector<1x512xf32> to vector<1x1x512xf32>
      %51 = arith.addf %48, %50 : vector<1x1x512xf32>
      %cst_30 = arith.constant 0.000000e+00 : f32
      %52 = vector.broadcast %cst_30 : f32 to vector<1x1x512xf32>
      %53 = arith.maximumf %51, %52 : vector<1x1x512xf32>
      %c0_31 = arith.constant 0 : index
      %c0_32 = arith.constant 0 : index
      %c0_33 = arith.constant 0 : index
      %54 = vector.load %arg10[%c0_31, %c0_32, %c0_33] : memref<1x1x512xf32, #tpu.memory_space<vmem>>, vector<1x1x512xf32>
      tpu.vector_store %arg10[%c0_31, %c0_32, %c0_33], %53 {strides = array<i32>} : memref<1x1x512xf32, #tpu.memory_space<vmem>>, vector<1x1x512xf32>,
    } else {
    }
    return
  }
  func.func @transform_0(%arg0: i32, %arg1: i32, %arg2: i32) -> (i32, i32, i32) {
    %c0_i32 = arith.constant 0 : i32
    %c0_i32_0 = arith.constant 0 : i32
    return %arg0, %arg2, %c0_i32 : i32, i32, i32
  }
  func.func @transform_1(%arg0: i32, %arg1: i32, %arg2: i32) -> (i32, i32) {
    %c0_i32 = arith.constant 0 : i32
    %c0_i32_0 = arith.constant 0 : i32
    %c0_i32_1 = arith.constant 0 : i32
    return %c0_i32, %c0_i32_0 : i32, i32
  }
  func.func @transform_2(%arg0: i32, %arg1: i32, %arg2: i32) -> (i32, i32) {
    %c0_i32 = arith.constant 0 : i32
    %c0_i32_0 = arith.constant 0 : i32
    %c0_i32_1 = arith.constant 0 : i32
    return %c0_i32, %c0_i32_0 : i32, i32
  }
  func.func @transform_3(%arg0: i32, %arg1: i32, %arg2: i32) -> (i32, i32) {
    %c0_i32 = arith.constant 0 : i32
    %c0_i32_0 = arith.constant 0 : i32
    %c0_i32_1 = arith.constant 0 : i32
    return %c0_i32, %c0_i32_0 : i32, i32
  }
  func.func @transform_4(%arg0: i32, %arg1: i32, %arg2: i32) -> (i32, i32) {
    %c0_i32 = arith.constant 0 : i32
    %c0_i32_0 = arith.constant 0 : i32
    %c0_i32_1 = arith.constant 0 : i32
    return %c0_i32, %c0_i32_0 : i32, i32
  }
  func.func @transform_5(%arg0: i32, %arg1: i32, %arg2: i32) -> (i32, i32) {
    %c0_i32 = arith.constant 0 : i32
    %c0_i32_0 = arith.constant 0 : i32
    return %c0_i32, %arg1 : i32, i32
  }
  func.func @transform_6(%arg0: i32, %arg1: i32, %arg2: i32) -> (i32, i32) {
    %c0_i32 = arith.constant 0 : i32
    %c0_i32_0 = arith.constant 0 : i32
    return %c0_i32, %arg1 : i32, i32
  }
  func.func @transform_7(%arg0: i32, %arg1: i32, %arg2: i32) -> (i32, i32, i32) {
    %c0_i32 = arith.constant 0 : i32
    %c0_i32_0 = arith.constant 0 : i32
    return %arg0, %c0_i32, %arg1 : i32, i32, i32
  }
}

</mosaic_0001>

<llo_original>
// kernel: tnet_forward.2
$region0: #{tnet_forward.2}
  #allocation0 [shape = 'u32[]', space=smem, size = 0x4, offset = 0x4, fixed_abs, tag = 'smem constant byte address 0x4 - core index']
  #allocation1 [shape = 'u32[72,128]{1,0:T(1,128)}', space=vmem, size = 0x9000, scoped, tag = 'internal scratch']
  %s0 = inlined_call_operand.vmem [shape: f32[2,256,3], index: 0, kind: input, shape index: {}]
  %s1 = inlined_call_operand.vmem [shape: f32[3,64], index: 1, kind: input, shape index: {}]
  %s2 = inlined_call_operand.hbm [shape: f32[1,64], index: 2, kind: input, shape index: {}]
  %s3 = inlined_call_operand.vmem [shape: bf16[64,128], index: 3, kind: input, shape index: {}]
  %s4 = inlined_call_operand.hbm [shape: f32[1,128], index: 4, kind: input, shape index: {}]
  %s5 = inlined_call_operand.hbm [shape: bf16[128,1024], index: 5, kind: input, shape index: {}]
  %s6 = inlined_call_operand.vmem [shape: f32[1,1024], index: 6, kind: input, shape index: {}]
  %s7 = inlined_call_operand.vmem [shape: f32[2,1,1024], index: 7, kind: output, shape index: {}]
  %s8 = sld [smem:[#allocation0]]
  $region81: #{tnet_forward.2} parent=0
    _
  %s10 = ssub.s32 1, %s8
  %s11 = scalar_select 0, %s10, %s8
  $region1: #{tnet_forward.2} parent=0
    #allocation2 [shape = 'u8[512]{0}', space=vmem, size = 0x400, scoped, tag = 'input window, operand 2, single buffered']
    #allocation3 [shape = 's32[2]{0}', space=sflag, size = 0x8, scoped, tag = 'scoped memory for tnet_forward.2']
    #allocation4 [shape = 'u8[512]{0}', space=vmem, size = 0x400, scoped, tag = 'input window, operand 4, single buffered']
    #allocation5 [shape = 's32[1]{0}', space=sflag, size = 0x4, scoped, tag = 'scoped memory for tnet_forward.2']
    #allocation6 [shape = 'u8[262144]{0}', space=vmem, size = 0x40000, scoped, tag = 'input window, operand 5']
    %12 = vsyncpa [#allocation3], 0
    %13 = vsyncpa [#allocation5], 0
    loop: start=0, step=1, limit=6
    $region2: #{tnet_forward.2} parent=1 // loop_pre_header
      _
    $region3: #{tnet_forward.2} parent=1 // loop_header
      %s15 = sphi 0, %s19
      %p16 = scmp.ge.s32.totalorder %s15, 6
      %s22 = sphi 0, %s41
      %s23 = sphi 0, %s37
      %s24 = sphi 0, %s33
      %s25 = sphi 0, %s22
      %s26 = sphi 0, %s23
      %s27 = sphi 0, %s24
      %s28 = sphi 0, %s25
      %s29 = sphi 0, %s26
      %s30 = sphi 0, %s27
      %s46 = sphi 0, %s48
      %s49 = sphi 0, %s46
      %s50 = sphi 0, %s49
      %s66 = sphi 0, %s50
      %s70 = sphi 0, %s70
      %s72 = sphi 0, %s70
      %s73 = sphi 0, %s72
      %s87 = sphi 0, %s73
      %s91 = sphi 0, %s91
      %s93 = sphi 0, %s91
      %s94 = sphi 0, %s93
      %s108 = sphi 0, %s94
      %s112 = sphi 0, %s112
      %s114 = sphi 0, %s112
      %s115 = sphi 0, %s114
      %s129 = sphi 0, %s115
      %s133 = sphi 0, %s133
      %s135 = sphi 0, %s133
      %s136 = sphi 0, %s135
      %s150 = sphi 0, %s136
      %s156 = sphi 0, %s158
      %s159 = sphi 0, %s156
      %s160 = sphi 0, %s159
      %s176 = sphi 0, %s160
      %s182 = sphi 0, %s184
      %s185 = sphi 0, %s182
      %s186 = sphi 0, %s185
      %s202 = sphi 0, %s186
      %s210 = sphi 0, %s212
      %s213 = sphi 0, %s210
      %s214 = sphi 0, %s213
      %s230 = sphi 0, %s214
    $region4: #{tnet_forward.2} parent=1 // loop_header_branch
      %18 = sbr.rel (%p16) target = $region8
    $region5: #{tnet_forward.2} parent=1 // loop_body
      %s20 = ssub.s32 %s15, 1
      %s21 = ssub.s32 %s15, 2
      %s31 = sadd.s32 1, %s24
      %p32 = scmp.ge.s32.totalorder %s31, 1
      %s33 = scalar_select %p32, 0, %s31
      %s34 = sadd.s32 1, %s23
      %s35 = scalar_select %p32, %s34, %s23
      %p36 = scmp.ge.s32.totalorder %s35, 2
      %s37 = scalar_select %p36, 0, %s35
      %s38 = sadd.s32 1, %s22
      %s39 = scalar_select %p36, %s38, %s22
      %p40 = scmp.ge.s32.totalorder %s39, 2
      %s41 = scalar_select %p40, 0, %s39
      %s42 = ssub.s32 %s22, %s41
      %s43 = ssub.s32 %s24, %s33
      %s44 = sor.u32 %s42, %s43
      %p45 = scmp.eq.s32.totalorder %s44, 0
      %s47 = sadd.s32 %s46, 1
      %s48 = scalar_select %p45, %s46, %s47
      %p51 = pneg %p45
      %p52 = scmp.eq.s32.totalorder %s15, 3
      %p53 = por %p51, %p52
      %p54 = scmp.ne.s32.totalorder %s46, %s49
      %p55 = scmp.eq.s32.totalorder %s15, 0
      %p56 = por %p54, %p55
      %p57 = scmp.ne.s32.totalorder %s46, %s49
      %p58 = scmp.eq.s32.totalorder %s20, 3
      %p59 = por %p57, %p58
      %p60 = scmp.ne.s32.totalorder %s49, %s50
      %p61 = scmp.eq.s32.totalorder %s20, 0
      %p62 = por %p60, %p61
      %p63 = scmp.ne.s32.totalorder %s49, %s50
      %p64 = scmp.eq.s32.totalorder %s21, 3
      %p65 = por %p63, %p64
      %p67 = scmp.ne.s32.totalorder %s50, %s66
      %p68 = scmp.eq.s32.totalorder %s21, 0
      %p69 = por %p67, %p68
      %s71 = sadd.s32 %s70, 1
      %p74 = scmp.eq.s32.totalorder %s15, 3
      %p75 = scmp.ne.s32.totalorder %s70, %s72
      %p76 = scmp.eq.s32.totalorder %s15, 0
      %p77 = por %p75, %p76
      %p78 = scmp.ne.s32.totalorder %s70, %s72
      %p79 = scmp.eq.s32.totalorder %s20, 3
      %p80 = por %p78, %p79
      %p81 = scmp.ne.s32.totalorder %s72, %s73
      %p82 = scmp.eq.s32.totalorder %s20, 0
      %p83 = por %p81, %p82
      %p84 = scmp.ne.s32.totalorder %s72, %s73
      %p85 = scmp.eq.s32.totalorder %s21, 3
      %p86 = por %p84, %p85
      %p88 = scmp.ne.s32.totalorder %s73, %s87
      %p89 = scmp.eq.s32.totalorder %s21, 0
      %p90 = por %p88, %p89
      %s92 = sadd.s32 %s91, 1
      %p95 = scmp.eq.s32.totalorder %s15, 3
      %p96 = scmp.ne.s32.totalorder %s91, %s93
      %p97 = scmp.eq.s32.totalorder %s15, 0
      %p98 = por %p96, %p97
      %p99 = scmp.ne.s32.totalorder %s91, %s93
      %p100 = scmp.eq.s32.totalorder %s20, 3
      %p101 = por %p99, %p100
      %p102 = scmp.ne.s32.totalorder %s93, %s94
      %p103 = scmp.eq.s32.totalorder %s20, 0
      %p104 = por %p102, %p103
      %p105 = scmp.ne.s32.totalorder %s93, %s94
      %p106 = scmp.eq.s32.totalorder %s21, 3
      %p107 = por %p105, %p106
      %p109 = scmp.ne.s32.totalorder %s94, %s108
      %p110 = scmp.eq.s32.totalorder %s21, 0
      %p111 = por %p109, %p110
      %s113 = sadd.s32 %s112, 1
      %p116 = scmp.eq.s32.totalorder %s15, 3
      %p117 = scmp.ne.s32.totalorder %s112, %s114
      %p118 = scmp.eq.s32.totalorder %s15, 0
      %p119 = por %p117, %p118
      %p120 = scmp.ne.s32.totalorder %s112, %s114
      %p121 = scmp.eq.s32.totalorder %s20, 3
      %p122 = por %p120, %p121
      %p123 = scmp.ne.s32.totalorder %s114, %s115
      %p124 = scmp.eq.s32.totalorder %s20, 0
      %p125 = por %p123, %p124
      %p126 = scmp.ne.s32.totalorder %s114, %s115
      %p127 = scmp.eq.s32.totalorder %s21, 3
      %p128 = por %p126, %p127
      %p130 = scmp.ne.s32.totalorder %s115, %s129
      %p131 = scmp.eq.s32.totalorder %s21, 0
      %p132 = por %p130, %p131
      %s134 = sadd.s32 %s133, 1
      %p137 = scmp.eq.s32.totalorder %s15, 3
      %p138 = scmp.ne.s32.totalorder %s133, %s135
      %p139 = scmp.eq.s32.totalorder %s15, 0
      %p140 = por %p138, %p139
      %p141 = scmp.ne.s32.totalorder %s133, %s135
      %p142 = scmp.eq.s32.totalorder %s20, 3
      %p143 = por %p141, %p142
      %p144 = scmp.ne.s32.totalorder %s135, %s136
      %p145 = scmp.eq.s32.totalorder %s20, 0
      %p146 = por %p144, %p145
      %p147 = scmp.ne.s32.totalorder %s135, %s136
      %p148 = scmp.eq.s32.totalorder %s21, 3
      %p149 = por %p147, %p148
      %p151 = scmp.ne.s32.totalorder %s136, %s150
      %p152 = scmp.eq.s32.totalorder %s21, 0
      %p153 = por %p151, %p152
      %s154 = ssub.s32 %s23, %s37
      %p155 = scmp.eq.s32.totalorder %s154, 0
      %s157 = sadd.s32 %s156, 1
      %s158 = scalar_select %p155, %s156, %s157
      %p161 = pneg %p155
      %p162 = scmp.eq.s32.totalorder %s15, 3
      %p163 = por %p161, %p162
      %p164 = scmp.ne.s32.totalorder %s156, %s159
      %p165 = scmp.eq.s32.totalorder %s15, 0
      %p166 = por %p164, %p165
      %p167 = scmp.ne.s32.totalorder %s156, %s159
      %p168 = scmp.eq.s32.totalorder %s20, 3
      %p169 = por %p167, %p168
      %p170 = scmp.ne.s32.totalorder %s159, %s160
      %p171 = scmp.eq.s32.totalorder %s20, 0
      %p172 = por %p170, %p171
      %p173 = scmp.ne.s32.totalorder %s159, %s160
      %p174 = scmp.eq.s32.totalorder %s21, 3
      %p175 = por %p173, %p174
      %p177 = scmp.ne.s32.totalorder %s160, %s176
      %p178 = scmp.eq.s32.totalorder %s21, 0
      %p179 = por %p177, %p178
      %s180 = ssub.s32 %s23, %s37
      %p181 = scmp.eq.s32.totalorder %s180, 0
      %s183 = sadd.s32 %s182, 1
      %s184 = scalar_select %p181, %s182, %s183
      %p187 = pneg %p181
      %p188 = scmp.eq.s32.totalorder %s15, 3
      %p189 = por %p187, %p188
      %p190 = scmp.ne.s32.totalorder %s182, %s185
      %p191 = scmp.eq.s32.totalorder %s15, 0
      %p192 = por %p190, %p191
      %p193 = scmp.ne.s32.totalorder %s182, %s185
      %p194 = scmp.eq.s32.totalorder %s20, 3
      %p195 = por %p193, %p194
      %p196 = scmp.ne.s32.totalorder %s185, %s186
      %p197 = scmp.eq.s32.totalorder %s20, 0
      %p198 = por %p196, %p197
      %p199 = scmp.ne.s32.totalorder %s185, %s186
      %p200 = scmp.eq.s32.totalorder %s21, 3
      %p201 = por %p199, %p200
      %p203 = scmp.ne.s32.totalorder %s186, %s202
      %p204 = scmp.eq.s32.totalorder %s21, 0
      %p205 = por %p203, %p204
      %s206 = ssub.s32 %s22, %s41
      %s207 = ssub.s32 %s23, %s37
      %s208 = sor.u32 %s206, %s207
      %p209 = scmp.eq.s32.totalorder %s208, 0
      %s211 = sadd.s32 %s210, 1
      %s212 = scalar_select %p209, %s210, %s211
      %p215 = pneg %p209
      %p216 = scmp.eq.s32.totalorder %s15, 3
      %p217 = por %p215, %p216
      %p218 = scmp.ne.s32.totalorder %s210, %s213
      %p219 = scmp.eq.s32.totalorder %s15, 0
      %p220 = por %p218, %p219
      %p221 = scmp.ne.s32.totalorder %s210, %s213
      %p222 = scmp.eq.s32.totalorder %s20, 3
      %p223 = por %p221, %p222
      %p224 = scmp.ne.s32.totalorder %s213, %s214
      %p225 = scmp.eq.s32.totalorder %s20, 0
      %p226 = por %p224, %p225
      %p227 = scmp.ne.s32.totalorder %s213, %s214
      %p228 = scmp.eq.s32.totalorder %s21, 3
      %p229 = por %p227, %p228
      %p231 = scmp.ne.s32.totalorder %s214, %s230
      %p232 = scmp.eq.s32.totalorder %s21, 0
      %p233 = por %p231, %p232
      %p234 = scmp.le.s32.totalorder 1, %s15
      %p235 = scmp.lt.s32.totalorder %s15, 5
      %p236 = pnand %p234, %p235
      %p237 = pneg %p236
      // Predicated region
      $region9: #{tnet_forward.2} parent=5 // pred_check
        _
      $region10: #{tnet_forward.2} parent=5 // pred_check_branch
        %239 = sbr.rel (%p236) target = $region12
      $region11: #{tnet_forward.2} parent=5 // pred_region
        %s240 = ssub.s32 %s15, 1
        // Predicated region
        $region13: #{tnet_forward.2} parent=11 // pred_check
          %p241 = pneg %p83
        $region14: #{tnet_forward.2} parent=11 // pred_check_branch
          %243 = sbr.rel (%p241) target = $region16
        $region15: #{tnet_forward.2} parent=11 // pred_region
          _
        $region16: #{tnet_forward.2} parent=11 // pred_fallthru
          _
        // Predicated region
        $region17: #{tnet_forward.2} parent=11 // pred_check
          %p244 = pneg %p104
        $region18: #{tnet_forward.2} parent=11 // pred_check_branch
          %246 = sbr.rel (%p244) target = $region20
        $region19: #{tnet_forward.2} parent=11 // pred_region
          %248 = vsyncadd [#allocation3], 0
          %s250 = sshll.u32 %s2, 4
          %s251 = int_to_ptr.hbm [resolvable:$true] %s250
          %s252 = sshll.u32 [#allocation2], 4
          %s253 = int_to_ptr.vmem [resolvable:$true] %s252
          %255 = dma.hbm_to_vmem [thread:$0]  %s251, 16, %s253, [#allocation3]
        $region20: #{tnet_forward.2} parent=11 // pred_fallthru
          _
        // Predicated region
        $region21: #{tnet_forward.2} parent=11 // pred_check
          %p256 = pneg %p125
        $region22: #{tnet_forward.2} parent=11 // pred_check_branch
          %258 = sbr.rel (%p256) target = $region24
        $region23: #{tnet_forward.2} parent=11 // pred_region
          _
        $region24: #{tnet_forward.2} parent=11 // pred_fallthru
          _
        // Predicated region
        $region25: #{tnet_forward.2} parent=11 // pred_check
          %p259 = pneg %p146
        $region26: #{tnet_forward.2} parent=11 // pred_check_branch
          %261 = sbr.rel (%p259) target = $region28
        $region27: #{tnet_forward.2} parent=11 // pred_region
          %263 = vsyncadd [#allocation5], 0
          %s265 = sshll.u32 %s4, 4
          %s266 = int_to_ptr.hbm [resolvable:$true] %s265
          %s267 = sshll.u32 [#allocation4], 4
          %s268 = int_to_ptr.vmem [resolvable:$true] %s267
          %270 = dma.hbm_to_vmem [thread:$0]  %s266, 16, %s268, [#allocation5]
        $region28: #{tnet_forward.2} parent=11 // pred_fallthru
          _
      $region12: #{tnet_forward.2} parent=5 // pred_fallthru
        _
      %p271 = scmp.lt.s32.totalorder %s15, 4
      // Predicated region
      $region29: #{tnet_forward.2} parent=5 // pred_check
        %p272 = pneg %p271
      $region30: #{tnet_forward.2} parent=5 // pred_check_branch
        %274 = sbr.rel (%p272) target = $region32
      $region31: #{tnet_forward.2} parent=5 // pred_region
        // Predicated region
        $region33: #{tnet_forward.2} parent=31 // pred_check
          %p275 = pneg %p56
        $region34: #{tnet_forward.2} parent=31 // pred_check_branch
          %277 = sbr.rel (%p275) target = $region36
        $region35: #{tnet_forward.2} parent=31 // pred_region
          %s278 = smul.u32 32, %s24
          %p279 = scmp.lt.s32.totalorder %s22, 1
          %s280 = scalar_select %p279, %s22, 1
          %p281 = scmp.lt.s32.totalorder %s278, 31
          %s282 = scalar_select %p281, %s278, 31
          %s283 = smul.addr %s280, 32
          %s284 = sadd.s32 %s282, %s283
          %s285 = smul.addr %s284, 8
          %s286 = scalar_lea.vmem %s0, %s285
          %s287 = smul.u32 32, %s24
        $region36: #{tnet_forward.2} parent=31 // pred_fallthru
          _
        // Predicated region
        $region37: #{tnet_forward.2} parent=31 // pred_check
          %p288 = pneg %p166
        $region38: #{tnet_forward.2} parent=31 // pred_check_branch
          %290 = sbr.rel (%p288) target = $region40
        $region39: #{tnet_forward.2} parent=31 // pred_region
          %s291 = sand.u32 %s15, 1
          %s292 = scalar_lea.sflag [#allocation3], %s291
          %s293 = sand.u32 %s156, 1
          %s294 = smul.addr %s293, 256
          %s295 = scalar_lea.vmem [#allocation6], %s294
          %s296 = smul.u32 4, %s23
          %298 = vsyncadd %s292, 0
          %s299 = smul.addr %s296, 4
          %s300 = scalar_lea.hbm %s5, %s299
          %s301 = sshll.u32 %s300, 4
          %s302 = int_to_ptr.hbm [resolvable:$true] %s301
          %s303 = sshll.u32 %s295, 4
          %s304 = int_to_ptr.vmem [resolvable:$true] %s303
          %309 = dma.hbm_to_vmem [thread:$0]  %s302, 4096, %s304, %s292, 512, 256, 16
        $region40: #{tnet_forward.2} parent=31 // pred_fallthru
          _
        // Predicated region
        $region41: #{tnet_forward.2} parent=31 // pred_check
          %p310 = pneg %p192
        $region42: #{tnet_forward.2} parent=31 // pred_check_branch
          %312 = sbr.rel (%p310) target = $region44
        $region43: #{tnet_forward.2} parent=31 // pred_region
          %s313 = smul.u32 4, %s23
          %p314 = scmp.lt.s32.totalorder %s313, 7
          %s315 = scalar_select %p314, %s313, 7
          %s316 = scalar_lea.vmem %s6, %s315
          %s317 = smul.u32 4, %s23
        $region44: #{tnet_forward.2} parent=31 // pred_fallthru
          _
      $region32: #{tnet_forward.2} parent=5 // pred_fallthru
        _
      %p318 = scmp.le.s32.totalorder 1, %s15
      %p319 = scmp.lt.s32.totalorder %s15, 5
      %p320 = pnand %p318, %p319
      %p321 = pneg %p320
      // Predicated region
      $region45: #{tnet_forward.2} parent=5 // pred_check
        _
      $region46: #{tnet_forward.2} parent=5 // pred_check_branch
        %323 = sbr.rel (%p320) target = $region48
      $region47: #{tnet_forward.2} parent=5 // pred_region
        %s324 = ssub.s32 %s15, 1
        // Predicated region
        $region49: #{tnet_forward.2} parent=47 // pred_check
          %p325 = pneg %p104
        $region50: #{tnet_forward.2} parent=47 // pred_check_branch
          %327 = sbr.rel (%p325) target = $region52
        $region51: #{tnet_forward.2} parent=47 // pred_region
          %329 = dma.done [#allocation3], 16
        $region52: #{tnet_forward.2} parent=47 // pred_fallthru
          _
        // Predicated region
        $region53: #{tnet_forward.2} parent=47 // pred_check
          %p330 = pneg %p146
        $region54: #{tnet_forward.2} parent=47 // pred_check_branch
          %332 = sbr.rel (%p330) target = $region56
        $region55: #{tnet_forward.2} parent=47 // pred_region
          %334 = dma.done [#allocation5], 16
        $region56: #{tnet_forward.2} parent=47 // pred_fallthru
          _
        %s335 = sand.u32 %s20, 1
        %s336 = scalar_lea.sflag [#allocation3], %s335
        %s337 = sand.u32 %s159, 1
        %s338 = smul.addr %s337, 256
        %s339 = scalar_lea.vmem [#allocation6], %s338
        // Predicated region
        $region57: #{tnet_forward.2} parent=47 // pred_check
          %p340 = pneg %p172
        $region58: #{tnet_forward.2} parent=47 // pred_check_branch
          %342 = sbr.rel (%p340) target = $region60
        $region59: #{tnet_forward.2} parent=47 // pred_region
          %344 = dma.done %s336, 4096
        $region60: #{tnet_forward.2} parent=47 // pred_fallthru
          _
        %s345 = smul.u32 32, %s27
        %p346 = scmp.lt.s32.totalorder %s25, 1
        %s347 = scalar_select %p346, %s25, 1
        %p348 = scmp.lt.s32.totalorder %s345, 31
        %s349 = scalar_select %p348, %s345, 31
        %s350 = smul.addr %s347, 32
        %s351 = sadd.s32 %s349, %s350
        %s352 = smul.addr %s351, 8
        %s353 = scalar_lea.vmem %s0, %s352
        %p354 = pneg %p62
        %p355 = pneg %p59
        %p356 = pneg %p83
        %p357 = pneg %p80
        %p358 = pneg %p104
        %p359 = pneg %p101
        %p360 = pneg %p125
        %p361 = pneg %p122
        %p362 = pneg %p146
        %p363 = pneg %p143
        %s364 = sand.u32 %s20, 1
        %s365 = scalar_lea.sflag [#allocation3], %s364
        %s366 = sand.u32 %s159, 1
        %s367 = smul.addr %s366, 256
        %s368 = scalar_lea.vmem [#allocation6], %s367
        %p369 = pneg %p172
        %p370 = pneg %p169
        %s371 = smul.u32 4, %s26
        %p372 = scmp.lt.s32.totalorder %s371, 7
        %s373 = scalar_select %p372, %s371, 7
        %s374 = scalar_lea.vmem %s6, %s373
        %p375 = pneg %p198
        %p376 = pneg %p195
        %p377 = pneg %p226
        %p378 = pneg %p223
        %s379 = smul.u32 4, %s26
        %p380 = scmp.lt.s32.totalorder %s25, 1
        %s381 = scalar_select %p380, %s25, 1
        %p382 = scmp.lt.s32.totalorder %s379, 7
        %s383 = scalar_select %p382, %s379, 7
        %s384 = smul.addr %s381, 8
        %s385 = sadd.s32 %s383, %s384
        %s386 = scalar_lea.vmem %s7, %s385
        %s387 = smul.u32 32, %s27
        %p388 = scmp.lt.s32.totalorder %s25, 1
        %s389 = scalar_select %p388, %s25, 1
        %p390 = scmp.lt.s32.totalorder %s387, 31
        %s391 = scalar_select %p390, %s387, 31
        %s392 = smul.addr %s389, 32
        %s393 = sadd.s32 %s391, %s392
        %s394 = smul.addr %s393, 8
        %s395 = scalar_lea.vmem %s0, %s394
        %s396 = smul.u32 32, %s27
        %s397 = smul.u32 4, %s26
        %s398 = smul.u32 4, %s26
        %p399 = scmp.lt.s32.totalorder %s398, 7
        %s400 = scalar_select %p399, %s398, 7
        %s401 = scalar_lea.vmem %s6, %s400
        %s402 = smul.u32 4, %s26
        %s403 = smul.u32 4, %s26
        %p404 = scmp.lt.s32.totalorder %s25, 1
        %s405 = scalar_select %p404, %s25, 1
        %p406 = scmp.lt.s32.totalorder %s403, 7
        %s407 = scalar_select %p406, %s403, 7
        %s408 = smul.addr %s405, 8
        %s409 = sadd.s32 %s407, %s408
        %s410 = scalar_lea.vmem %s7, %s409
        %s411 = smul.u32 4, %s26
        %p413 = scmp.eq.s32.totalorder %s27, 0
        // Predicated region
        $region61: #{tnet_forward.2} parent=47 // pred_check
          %p414 = pneg %p413
        $region62: #{tnet_forward.2} parent=47 // pred_check_branch
          %416 = sbr.rel (%p414) target = $region64
        $region63: #{tnet_forward.2} parent=47 // pred_region
          %v417 = vlaneseq
          %vm418 = vcmp.ge.s32.totalorder %v417, 0
          %vm419 = vcmp.lt.s32.totalorder %v417, 512
          %vm420 = vmand %vm418, %vm419
          %421 = vst.msk [vmem:[%s410] sm:$0xf] %vm420, -inf
        $region64: #{tnet_forward.2} parent=47 // pred_fallthru
          _
        %v422 = vld [vmem:[%s395] sm:$0xff]
        %v423 = vld [vmem:[%s395 + $0x8] sm:$0xff]
        %v424 = vld [vmem:[%s395 + $0x10] sm:$0xff]
        %v425 = vld [vmem:[%s395 + $0x18] sm:$0xff]
        %v426 = vld [vmem:[%s395 + $0x20] sm:$0xff]
        %v427 = vld [vmem:[%s395 + $0x28] sm:$0xff]
        %v428 = vld [vmem:[%s395 + $0x30] sm:$0xff]
        %v429 = vld [vmem:[%s395 + $0x38] sm:$0xff]
        %v430 = vld [vmem:[%s395 + $0x40] sm:$0xff]
        %v431 = vld [vmem:[%s395 + $0x48] sm:$0xff]
        %v432 = vld [vmem:[%s395 + $0x50] sm:$0xff]
        %v433 = vld [vmem:[%s395 + $0x58] sm:$0xff]
        %v434 = vld [vmem:[%s395 + $0x60] sm:$0xff]
        %v435 = vld [vmem:[%s395 + $0x68] sm:$0xff]
        %v436 = vld [vmem:[%s395 + $0x70] sm:$0xff]
        %v437 = vld [vmem:[%s395 + $0x78] sm:$0xff]
        %v438 = vld [vmem:[%s395 + $0x80] sm:$0xff]
        %v439 = vld [vmem:[%s395 + $0x88] sm:$0xff]
        %v440 = vld [vmem:[%s395 + $0x90] sm:$0xff]
        %v441 = vld [vmem:[%s395 + $0x98] sm:$0xff]
        %v442 = vld [vmem:[%s395 + $0xa0] sm:$0xff]
        %v443 = vld [vmem:[%s395 + $0xa8] sm:$0xff]
        %v444 = vld [vmem:[%s395 + $0xb0] sm:$0xff]
        %v445 = vld [vmem:[%s395 + $0xb8] sm:$0xff]
        %v446 = vld [vmem:[%s395 + $0xc0] sm:$0xff]
        %v447 = vld [vmem:[%s395 + $0xc8] sm:$0xff]
        %v448 = vld [vmem:[%s395 + $0xd0] sm:$0xff]
        %v449 = vld [vmem:[%s395 + $0xd8] sm:$0xff]
        %v450 = vld [vmem:[%s395 + $0xe0] sm:$0xff]
        %v451 = vld [vmem:[%s395 + $0xe8] sm:$0xff]
        %v452 = vld [vmem:[%s395 + $0xf0] sm:$0xff]
        %v453 = vld [vmem:[%s395 + $0xf8] sm:$0xff]
        %v454 = vld [vmem:[%s1] sm:$0x7]
        %456 = vset.pattern.permute.xlu0 0
        %457 = vperm.xlu0 %456, %v422
        %v458 = vpop.permute.xlu0 %457
        %461 = vset.pattern.permute.xlu0 0
        %462 = vperm.xlu0 %461, %v423
        %v463 = vpop.permute.xlu0 %462
        %466 = vset.pattern.permute.xlu0 0
        %467 = vperm.xlu0 %466, %v424
        %v468 = vpop.permute.xlu0 %467
        %471 = vset.pattern.permute.xlu0 0
        %472 = vperm.xlu0 %471, %v425
        %v473 = vpop.permute.xlu0 %472
        %476 = vset.pattern.permute.xlu0 0
        %477 = vperm.xlu0 %476, %v426
        %v478 = vpop.permute.xlu0 %477
        %481 = vset.pattern.permute.xlu0 0
        %482 = vperm.xlu0 %481, %v427
        %v483 = vpop.permute.xlu0 %482
        %486 = vset.pattern.permute.xlu0 0
        %487 = vperm.xlu0 %486, %v428
        %v488 = vpop.permute.xlu0 %487
        %491 = vset.pattern.permute.xlu0 0
        %492 = vperm.xlu0 %491, %v429
        %v493 = vpop.permute.xlu0 %492
        %496 = vset.pattern.permute.xlu0 0
        %497 = vperm.xlu0 %496, %v430
        %v498 = vpop.permute.xlu0 %497
        %501 = vset.pattern.permute.xlu0 0
        %502 = vperm.xlu0 %501, %v431
        %v503 = vpop.permute.xlu0 %502
        %506 = vset.pattern.permute.xlu0 0
        %507 = vperm.xlu0 %506, %v432
        %v508 = vpop.permute.xlu0 %507
        %511 = vset.pattern.permute.xlu0 0
        %512 = vperm.xlu0 %511, %v433
        %v513 = vpop.permute.xlu0 %512
        %516 = vset.pattern.permute.xlu0 0
        %517 = vperm.xlu0 %516, %v434
        %v518 = vpop.permute.xlu0 %517
        %521 = vset.pattern.permute.xlu0 0
        %522 = vperm.xlu0 %521, %v435
        %v523 = vpop.permute.xlu0 %522
        %526 = vset.pattern.permute.xlu0 0
        %527 = vperm.xlu0 %526, %v436
        %v528 = vpop.permute.xlu0 %527
        %531 = vset.pattern.permute.xlu0 0
        %532 = vperm.xlu0 %531, %v437
        %v533 = vpop.permute.xlu0 %532
        %536 = vset.pattern.permute.xlu0 0
        %537 = vperm.xlu0 %536, %v438
        %v538 = vpop.permute.xlu0 %537
        %541 = vset.pattern.permute.xlu0 0
        %542 = vperm.xlu0 %541, %v439
        %v543 = vpop.permute.xlu0 %542
        %546 = vset.pattern.permute.xlu0 0
        %547 = vperm.xlu0 %546, %v440
        %v548 = vpop.permute.xlu0 %547
        %551 = vset.pattern.permute.xlu0 0
        %552 = vperm.xlu0 %551, %v441
        %v553 = vpop.permute.xlu0 %552
        %556 = vset.pattern.permute.xlu0 0
        %557 = vperm.xlu0 %556, %v442
        %v558 = vpop.permute.xlu0 %557
        %561 = vset.pattern.permute.xlu0 0
        %562 = vperm.xlu0 %561, %v443
        %v563 = vpop.permute.xlu0 %562
        %566 = vset.pattern.permute.xlu0 0
        %567 = vperm.xlu0 %566, %v444
        %v568 = vpop.permute.xlu0 %567
        %571 = vset.pattern.permute.xlu0 0
        %572 = vperm.xlu0 %571, %v445
        %v573 = vpop.permute.xlu0 %572
        %576 = vset.pattern.permute.xlu0 0
        %577 = vperm.xlu0 %576, %v446
        %v578 = vpop.permute.xlu0 %577
        %581 = vset.pattern.permute.xlu0 0
        %582 = vperm.xlu0 %581, %v447
        %v583 = vpop.permute.xlu0 %582
        %586 = vset.pattern.permute.xlu0 0
        %587 = vperm.xlu0 %586, %v448
        %v588 = vpop.permute.xlu0 %587
        %591 = vset.pattern.permute.xlu0 0
        %592 = vperm.xlu0 %591, %v449
        %v593 = vpop.permute.xlu0 %592
        %596 = vset.pattern.permute.xlu0 0
        %597 = vperm.xlu0 %596, %v450
        %v598 = vpop.permute.xlu0 %597
        %601 = vset.pattern.permute.xlu0 0
        %602 = vperm.xlu0 %601, %v451
        %v603 = vpop.permute.xlu0 %602
        %606 = vset.pattern.permute.xlu0 0
        %607 = vperm.xlu0 %606, %v452
        %v608 = vpop.permute.xlu0 %607
        %611 = vset.pattern.permute.xlu0 0
        %612 = vperm.xlu0 %611, %v453
        %v613 = vpop.permute.xlu0 %612
        %v615 = vperm.slane %v454, 0
        %v616 = vmul.f32 %v458, %v615
        %v617 = vmul.f32 %v463, %v615
        %v618 = vmul.f32 %v468, %v615
        %v619 = vmul.f32 %v473, %v615
        %v620 = vmul.f32 %v478, %v615
        %v621 = vmul.f32 %v483, %v615
        %v622 = vmul.f32 %v488, %v615
        %v623 = vmul.f32 %v493, %v615
        %v624 = vmul.f32 %v498, %v615
        %v625 = vmul.f32 %v503, %v615
        %v626 = vmul.f32 %v508, %v615
        %v627 = vmul.f32 %v513, %v615
        %v628 = vmul.f32 %v518, %v615
        %v629 = vmul.f32 %v523, %v615
        %v630 = vmul.f32 %v528, %v615
        %v631 = vmul.f32 %v533, %v615
        %v632 = vmul.f32 %v538, %v615
        %v633 = vmul.f32 %v543, %v615
        %v634 = vmul.f32 %v548, %v615
        %v635 = vmul.f32 %v553, %v615
        %v636 = vmul.f32 %v558, %v615
        %v637 = vmul.f32 %v563, %v615
        %v638 = vmul.f32 %v568, %v615
        %v639 = vmul.f32 %v573, %v615
        %v640 = vmul.f32 %v578, %v615
        %v641 = vmul.f32 %v583, %v615
        %v642 = vmul.f32 %v588, %v615
        %v643 = vmul.f32 %v593, %v615
        %v644 = vmul.f32 %v598, %v615
        %v645 = vmul.f32 %v603, %v615
        %v646 = vmul.f32 %v608, %v615
        %v647 = vmul.f32 %v613, %v615
        %v648 = vld [vmem:[#allocation2] sm:$0x1]
        %v650 = vperm.slane %v648, 0
        %v652 = vadd.f32 %v616, %v650
        %v653 = vadd.f32 %v617, %v650
        %v654 = vadd.f32 %v618, %v650
        %v655 = vadd.f32 %v619, %v650
        %v656 = vadd.f32 %v620, %v650
        %v657 = vadd.f32 %v621, %v650
        %v658 = vadd.f32 %v622, %v650
        %v659 = vadd.f32 %v623, %v650
        %v660 = vadd.f32 %v624, %v650
        %v661 = vadd.f32 %v625, %v650
        %v662 = vadd.f32 %v626, %v650
        %v663 = vadd.f32 %v627, %v650
        %v664 = vadd.f32 %v628, %v650
        %v665 = vadd.f32 %v629, %v650
        %v666 = vadd.f32 %v630, %v650
        %v667 = vadd.f32 %v631, %v650
        %v668 = vadd.f32 %v632, %v650
        %v669 = vadd.f32 %v633, %v650
        %v670 = vadd.f32 %v634, %v650
        %v671 = vadd.f32 %v635, %v650
        %v672 = vadd.f32 %v636, %v650
        %v673 = vadd.f32 %v637, %v650
        %v674 = vadd.f32 %v638, %v650
        %v675 = vadd.f32 %v639, %v650
        %v676 = vadd.f32 %v640, %v650
        %v677 = vadd.f32 %v641, %v650
        %v678 = vadd.f32 %v642, %v650
        %v679 = vadd.f32 %v643, %v650
        %v680 = vadd.f32 %v644, %v650
        %v681 = vadd.f32 %v645, %v650
        %v682 = vadd.f32 %v646, %v650
        %v683 = vadd.f32 %v647, %v650
        %684 = vset.pattern.permute.xlu0 1
        %685 = vperm.xlu0 %684, %v422
        %v686 = vpop.permute.xlu0 %685
        %688 = vset.pattern.permute.xlu0 1
        %689 = vperm.xlu0 %688, %v423
        %v690 = vpop.permute.xlu0 %689
        %692 = vset.pattern.permute.xlu0 1
        %693 = vperm.xlu0 %692, %v424
        %v694 = vpop.permute.xlu0 %693
        %696 = vset.pattern.permute.xlu0 1
        %697 = vperm.xlu0 %696, %v425
        %v698 = vpop.permute.xlu0 %697
        %700 = vset.pattern.permute.xlu0 1
        %701 = vperm.xlu0 %700, %v426
        %v702 = vpop.permute.xlu0 %701
        %704 = vset.pattern.permute.xlu0 1
        %705 = vperm.xlu0 %704, %v427
        %v706 = vpop.permute.xlu0 %705
        %708 = vset.pattern.permute.xlu0 1
        %709 = vperm.xlu0 %708, %v428
        %v710 = vpop.permute.xlu0 %709
        %712 = vset.pattern.permute.xlu0 1
        %713 = vperm.xlu0 %712, %v429
        %v714 = vpop.permute.xlu0 %713
        %716 = vset.pattern.permute.xlu0 1
        %717 = vperm.xlu0 %716, %v430
        %v718 = vpop.permute.xlu0 %717
        %720 = vset.pattern.permute.xlu0 1
        %721 = vperm.xlu0 %720, %v431
        %v722 = vpop.permute.xlu0 %721
        %724 = vset.pattern.permute.xlu0 1
        %725 = vperm.xlu0 %724, %v432
        %v726 = vpop.permute.xlu0 %725
        %728 = vset.pattern.permute.xlu0 1
        %729 = vperm.xlu0 %728, %v433
        %v730 = vpop.permute.xlu0 %729
        %732 = vset.pattern.permute.xlu0 1
        %733 = vperm.xlu0 %732, %v434
        %v734 = vpop.permute.xlu0 %733
        %736 = vset.pattern.permute.xlu0 1
        %737 = vperm.xlu0 %736, %v435
        %v738 = vpop.permute.xlu0 %737
        %740 = vset.pattern.permute.xlu0 1
        %741 = vperm.xlu0 %740, %v436
        %v742 = vpop.permute.xlu0 %741
        %744 = vset.pattern.permute.xlu0 1
        %745 = vperm.xlu0 %744, %v437
        %v746 = vpop.permute.xlu0 %745
        %748 = vset.pattern.permute.xlu0 1
        %749 = vperm.xlu0 %748, %v438
        %v750 = vpop.permute.xlu0 %749
        %752 = vset.pattern.permute.xlu0 1
        %753 = vperm.xlu0 %752, %v439
        %v754 = vpop.permute.xlu0 %753
        %756 = vset.pattern.permute.xlu0 1
        %757 = vperm.xlu0 %756, %v440
        %v758 = vpop.permute.xlu0 %757
        %760 = vset.pattern.permute.xlu0 1
        %761 = vperm.xlu0 %760, %v441
        %v762 = vpop.permute.xlu0 %761
        %764 = vset.pattern.permute.xlu0 1
        %765 = vperm.xlu0 %764, %v442
        %v766 = vpop.permute.xlu0 %765
        %768 = vset.pattern.permute.xlu0 1
        %769 = vperm.xlu0 %768, %v443
        %v770 = vpop.permute.xlu0 %769
        %772 = vset.pattern.permute.xlu0 1
        %773 = vperm.xlu0 %772, %v444
        %v774 = vpop.permute.xlu0 %773
        %776 = vset.pattern.permute.xlu0 1
        %777 = vperm.xlu0 %776, %v445
        %v778 = vpop.permute.xlu0 %777
        %780 = vset.pattern.permute.xlu0 1
        %781 = vperm.xlu0 %780, %v446
        %v782 = vpop.permute.xlu0 %781
        %784 = vset.pattern.permute.xlu0 1
        %785 = vperm.xlu0 %784, %v447
        %v786 = vpop.permute.xlu0 %785
        %788 = vset.pattern.permute.xlu0 1
        %789 = vperm.xlu0 %788, %v448
        %v790 = vpop.permute.xlu0 %789
        %792 = vset.pattern.permute.xlu0 1
        %793 = vperm.xlu0 %792, %v449
        %v794 = vpop.permute.xlu0 %793
        %796 = vset.pattern.permute.xlu0 1
        %797 = vperm.xlu0 %796, %v450
        %v798 = vpop.permute.xlu0 %797
        %800 = vset.pattern.permute.xlu0 1
        %801 = vperm.xlu0 %800, %v451
        %v802 = vpop.permute.xlu0 %801
        %804 = vset.pattern.permute.xlu0 1
        %805 = vperm.xlu0 %804, %v452
        %v806 = vpop.permute.xlu0 %805
        %808 = vset.pattern.permute.xlu0 1
        %809 = vperm.xlu0 %808, %v453
        %v810 = vpop.permute.xlu0 %809
        %v812 = vperm.slane %v454, 1
        %v813 = vmul.f32 %v686, %v812
        %v814 = vmul.f32 %v690, %v812
        %v815 = vmul.f32 %v694, %v812
        %v816 = vmul.f32 %v698, %v812
        %v817 = vmul.f32 %v702, %v812
        %v818 = vmul.f32 %v706, %v812
        %v819 = vmul.f32 %v710, %v812
        %v820 = vmul.f32 %v714, %v812
        %v821 = vmul.f32 %v718, %v812
        %v822 = vmul.f32 %v722, %v812
        %v823 = vmul.f32 %v726, %v812
        %v824 = vmul.f32 %v730, %v812
        %v825 = vmul.f32 %v734, %v812
        %v826 = vmul.f32 %v738, %v812
        %v827 = vmul.f32 %v742, %v812
        %v828 = vmul.f32 %v746, %v812
        %v829 = vmul.f32 %v750, %v812
        %v830 = vmul.f32 %v754, %v812
        %v831 = vmul.f32 %v758, %v812
        %v832 = vmul.f32 %v762, %v812
        %v833 = vmul.f32 %v766, %v812
        %v834 = vmul.f32 %v770, %v812
        %v835 = vmul.f32 %v774, %v812
        %v836 = vmul.f32 %v778, %v812
        %v837 = vmul.f32 %v782, %v812
        %v838 = vmul.f32 %v786, %v812
        %v839 = vmul.f32 %v790, %v812
        %v840 = vmul.f32 %v794, %v812
        %v841 = vmul.f32 %v798, %v812
        %v842 = vmul.f32 %v802, %v812
        %v843 = vmul.f32 %v806, %v812
        %v844 = vmul.f32 %v810, %v812
        %v845 = vadd.f32 %v652, %v813
        %v846 = vadd.f32 %v653, %v814
        %v847 = vadd.f32 %v654, %v815
        %v848 = vadd.f32 %v655, %v816
        %v849 = vadd.f32 %v656, %v817
        %v850 = vadd.f32 %v657, %v818
        %v851 = vadd.f32 %v658, %v819
        %v852 = vadd.f32 %v659, %v820
        %v853 = vadd.f32 %v660, %v821
        %v854 = vadd.f32 %v661, %v822
        %v855 = vadd.f32 %v662, %v823
        %v856 = vadd.f32 %v663, %v824
        %v857 = vadd.f32 %v664, %v825
        %v858 = vadd.f32 %v665, %v826
        %v859 = vadd.f32 %v666, %v827
        %v860 = vadd.f32 %v667, %v828
        %v861 = vadd.f32 %v668, %v829
        %v862 = vadd.f32 %v669, %v830
        %v863 = vadd.f32 %v670, %v831
        %v864 = vadd.f32 %v671, %v832
        %v865 = vadd.f32 %v672, %v833
        %v866 = vadd.f32 %v673, %v834
        %v867 = vadd.f32 %v674, %v835
        %v868 = vadd.f32 %v675, %v836
        %v869 = vadd.f32 %v676, %v837
        %v870 = vadd.f32 %v677, %v838
        %v871 = vadd.f32 %v678, %v839
        %v872 = vadd.f32 %v679, %v840
        %v873 = vadd.f32 %v680, %v841
        %v874 = vadd.f32 %v681, %v842
        %v875 = vadd.f32 %v682, %v843
        %v876 = vadd.f32 %v683, %v844
        %877 = vset.pattern.permute.xlu0 2
        %878 = vperm.xlu0 %877, %v422
        %v879 = vpop.permute.xlu0 %878
        %881 = vset.pattern.permute.xlu0 2
        %882 = vperm.xlu0 %881, %v423
        %v883 = vpop.permute.xlu0 %882
        %885 = vset.pattern.permute.xlu0 2
        %886 = vperm.xlu0 %885, %v424
        %v887 = vpop.permute.xlu0 %886
        %889 = vset.pattern.permute.xlu0 2
        %890 = vperm.xlu0 %889, %v425
        %v891 = vpop.permute.xlu0 %890
        %893 = vset.pattern.permute.xlu0 2
        %894 = vperm.xlu0 %893, %v426
        %v895 = vpop.permute.xlu0 %894
        %897 = vset.pattern.permute.xlu0 2
        %898 = vperm.xlu0 %897, %v427
        %v899 = vpop.permute.xlu0 %898
        %901 = vset.pattern.permute.xlu0 2
        %902 = vperm.xlu0 %901, %v428
        %v903 = vpop.permute.xlu0 %902
        %905 = vset.pattern.permute.xlu0 2
        %906 = vperm.xlu0 %905, %v429
        %v907 = vpop.permute.xlu0 %906
        %909 = vset.pattern.permute.xlu0 2
        %910 = vperm.xlu0 %909, %v430
        %v911 = vpop.permute.xlu0 %910
        %913 = vset.pattern.permute.xlu0 2
        %914 = vperm.xlu0 %913, %v431
        %v915 = vpop.permute.xlu0 %914
        %917 = vset.pattern.permute.xlu0 2
        %918 = vperm.xlu0 %917, %v432
        %v919 = vpop.permute.xlu0 %918
        %921 = vset.pattern.permute.xlu0 2
        %922 = vperm.xlu0 %921, %v433
        %v923 = vpop.permute.xlu0 %922
        %925 = vset.pattern.permute.xlu0 2
        %926 = vperm.xlu0 %925, %v434
        %v927 = vpop.permute.xlu0 %926
        %929 = vset.pattern.permute.xlu0 2
        %930 = vperm.xlu0 %929, %v435
        %v931 = vpop.permute.xlu0 %930
        %933 = vset.pattern.permute.xlu0 2
        %934 = vperm.xlu0 %933, %v436
        %v935 = vpop.permute.xlu0 %934
        %937 = vset.pattern.permute.xlu0 2
        %938 = vperm.xlu0 %937, %v437
        %v939 = vpop.permute.xlu0 %938
        %941 = vset.pattern.permute.xlu0 2
        %942 = vperm.xlu0 %941, %v438
        %v943 = vpop.permute.xlu0 %942
        %945 = vset.pattern.permute.xlu0 2
        %946 = vperm.xlu0 %945, %v439
        %v947 = vpop.permute.xlu0 %946
        %949 = vset.pattern.permute.xlu0 2
        %950 = vperm.xlu0 %949, %v440
        %v951 = vpop.permute.xlu0 %950
        %953 = vset.pattern.permute.xlu0 2
        %954 = vperm.xlu0 %953, %v441
        %v955 = vpop.permute.xlu0 %954
        %957 = vset.pattern.permute.xlu0 2
        %958 = vperm.xlu0 %957, %v442
        %v959 = vpop.permute.xlu0 %958
        %961 = vset.pattern.permute.xlu0 2
        %962 = vperm.xlu0 %961, %v443
        %v963 = vpop.permute.xlu0 %962
        %965 = vset.pattern.permute.xlu0 2
        %966 = vperm.xlu0 %965, %v444
        %v967 = vpop.permute.xlu0 %966
        %969 = vset.pattern.permute.xlu0 2
        %970 = vperm.xlu0 %969, %v445
        %v971 = vpop.permute.xlu0 %970
        %973 = vset.pattern.permute.xlu0 2
        %974 = vperm.xlu0 %973, %v446
        %v975 = vpop.permute.xlu0 %974
        %977 = vset.pattern.permute.xlu0 2
        %978 = vperm.xlu0 %977, %v447
        %v979 = vpop.permute.xlu0 %978
        %981 = vset.pattern.permute.xlu0 2
        %982 = vperm.xlu0 %981, %v448
        %v983 = vpop.permute.xlu0 %982
        %985 = vset.pattern.permute.xlu0 2
        %986 = vperm.xlu0 %985, %v449
        %v987 = vpop.permute.xlu0 %986
        %989 = vset.pattern.permute.xlu0 2
        %990 = vperm.xlu0 %989, %v450
        %v991 = vpop.permute.xlu0 %990
        %993 = vset.pattern.permute.xlu0 2
        %994 = vperm.xlu0 %993, %v451
        %v995 = vpop.permute.xlu0 %994
        %997 = vset.pattern.permute.xlu0 2
        %998 = vperm.xlu0 %997, %v452
        %v999 = vpop.permute.xlu0 %998
        %1001 = vset.pattern.permute.xlu0 2
        %1002 = vperm.xlu0 %1001, %v453
        %v1003 = vpop.permute.xlu0 %1002
        %v1005 = vperm.slane %v454, 2
        %v1006 = vmul.f32 %v879, %v1005
        %v1007 = vmul.f32 %v883, %v1005
        %v1008 = vmul.f32 %v887, %v1005
        %v1009 = vmul.f32 %v891, %v1005
        %v1010 = vmul.f32 %v895, %v1005
        %v1011 = vmul.f32 %v899, %v1005
        %v1012 = vmul.f32 %v903, %v1005
        %v1013 = vmul.f32 %v907, %v1005
        %v1014 = vmul.f32 %v911, %v1005
        %v1015 = vmul.f32 %v915, %v1005
        %v1016 = vmul.f32 %v919, %v1005
        %v1017 = vmul.f32 %v923, %v1005
        %v1018 = vmul.f32 %v927, %v1005
        %v1019 = vmul.f32 %v931, %v1005
        %v1020 = vmul.f32 %v935, %v1005
        %v1021 = vmul.f32 %v939, %v1005
        %v1022 = vmul.f32 %v943, %v1005
        %v1023 = vmul.f32 %v947, %v1005
        %v1024 = vmul.f32 %v951, %v1005
        %v1025 = vmul.f32 %v955, %v1005
        %v1026 = vmul.f32 %v959, %v1005
        %v1027 = vmul.f32 %v963, %v1005
        %v1028 = vmul.f32 %v967, %v1005
        %v1029 = vmul.f32 %v971, %v1005
        %v1030 = vmul.f32 %v975, %v1005
        %v1031 = vmul.f32 %v979, %v1005
        %v1032 = vmul.f32 %v983, %v1005
        %v1033 = vmul.f32 %v987, %v1005
        %v1034 = vmul.f32 %v991, %v1005
        %v1035 = vmul.f32 %v995, %v1005
        %v1036 = vmul.f32 %v999, %v1005
        %v1037 = vmul.f32 %v1003, %v1005
        %v1038 = vadd.f32 %v845, %v1006
        %v1039 = vadd.f32 %v846, %v1007
        %v1040 = vadd.f32 %v847, %v1008
        %v1041 = vadd.f32 %v848, %v1009
        %v1042 = vadd.f32 %v849, %v1010
        %v1043 = vadd.f32 %v850, %v1011
        %v1044 = vadd.f32 %v851, %v1012
        %v1045 = vadd.f32 %v852, %v1013
        %v1046 = vadd.f32 %v853, %v1014
        %v1047 = vadd.f32 %v854, %v1015
        %v1048 = vadd.f32 %v855, %v1016
        %v1049 = vadd.f32 %v856, %v1017
        %v1050 = vadd.f32 %v857, %v1018
        %v1051 = vadd.f32 %v858, %v1019
        %v1052 = vadd.f32 %v859, %v1020
        %v1053 = vadd.f32 %v860, %v1021
        %v1054 = vadd.f32 %v861, %v1022
        %v1055 = vadd.f32 %v862, %v1023
        %v1056 = vadd.f32 %v863, %v1024
        %v1057 = vadd.f32 %v864, %v1025
        %v1058 = vadd.f32 %v865, %v1026
        %v1059 = vadd.f32 %v866, %v1027
        %v1060 = vadd.f32 %v867, %v1028
        %v1061 = vadd.f32 %v868, %v1029
        %v1062 = vadd.f32 %v869, %v1030
        %v1063 = vadd.f32 %v870, %v1031
        %v1064 = vadd.f32 %v871, %v1032
        %v1065 = vadd.f32 %v872, %v1033
        %v1066 = vadd.f32 %v873, %v1034
        %v1067 = vadd.f32 %v874, %v1035
        %v1068 = vadd.f32 %v875, %v1036
        %v1069 = vadd.f32 %v876, %v1037
        %v1070 = vmax.f32 %v1038, 0.0
        %v1071 = vmax.f32 %v1039, 0.0
        %v1072 = vmax.f32 %v1040, 0.0
        %v1073 = vmax.f32 %v1041, 0.0
        %v1074 = vmax.f32 %v1042, 0.0
        %v1075 = vmax.f32 %v1043, 0.0
        %v1076 = vmax.f32 %v1044, 0.0
        %v1077 = vmax.f32 %v1045, 0.0
        %v1078 = vmax.f32 %v1046, 0.0
        %v1079 = vmax.f32 %v1047, 0.0
        %v1080 = vmax.f32 %v1048, 0.0
        %v1081 = vmax.f32 %v1049, 0.0
        %v1082 = vmax.f32 %v1050, 0.0
        %v1083 = vmax.f32 %v1051, 0.0
        %v1084 = vmax.f32 %v1052, 0.0
        %v1085 = vmax.f32 %v1053, 0.0
        %v1086 = vmax.f32 %v1054, 0.0
        %v1087 = vmax.f32 %v1055, 0.0
        %v1088 = vmax.f32 %v1056, 0.0
        %v1089 = vmax.f32 %v1057, 0.0
        %v1090 = vmax.f32 %v1058, 0.0
        %v1091 = vmax.f32 %v1059, 0.0
        %v1092 = vmax.f32 %v1060, 0.0
        %v1093 = vmax.f32 %v1061, 0.0
        %v1094 = vmax.f32 %v1062, 0.0
        %v1095 = vmax.f32 %v1063, 0.0
        %v1096 = vmax.f32 %v1064, 0.0
        %v1097 = vmax.f32 %v1065, 0.0
        %v1098 = vmax.f32 %v1066, 0.0
        %v1099 = vmax.f32 %v1067, 0.0
        %v1100 = vmax.f32 %v1068, 0.0
        %v1101 = vmax.f32 %v1069, 0.0
        %v1102 = vpack.c.bf16 %v1071, %v1070
        %v1103 = vpack.c.bf16 %v1073, %v1072
        %v1104 = vpack.c.bf16 %v1075, %v1074
        %v1105 = vpack.c.bf16 %v1077, %v1076
        %v1106 = vpack.c.bf16 %v1079, %v1078
        %v1107 = vpack.c.bf16 %v1081, %v1080
        %v1108 = vpack.c.bf16 %v1083, %v1082
        %v1109 = vpack.c.bf16 %v1085, %v1084
        %v1110 = vpack.c.bf16 %v1087, %v1086
        %v1111 = vpack.c.bf16 %v1089, %v1088
        %v1112 = vpack.c.bf16 %v1091, %v1090
        %v1113 = vpack.c.bf16 %v1093, %v1092
        %v1114 = vpack.c.bf16 %v1095, %v1094
        %v1115 = vpack.c.bf16 %v1097, %v1096
        %v1116 = vpack.c.bf16 %v1099, %v1098
        %v1117 = vpack.c.bf16 %v1101, %v1100
        %v1118 = vld [vmem:[%s3] sm:$0xf]
        %v1119 = vld [vmem:[%s3 + $0x4] sm:$0xf]
        %v1120 = vld [vmem:[%s3 + $0x8] sm:$0xf]
        %v1121 = vld [vmem:[%s3 + $0xc] sm:$0xf]
        %v1122 = vld [vmem:[%s3 + $0x10] sm:$0xf]
        %v1123 = vld [vmem:[%s3 + $0x14] sm:$0xf]
        %v1124 = vld [vmem:[%s3 + $0x18] sm:$0xf]
        %v1125 = vld [vmem:[%s3 + $0x1c] sm:$0xf]
        %v1126 = vld [vmem:[#allocation4] sm:$0x1]
        %v1128 = vperm.slane %v1126, 0
        %v1138 = vunpack.c.l.b16 %v1118
        %v1139 = vunpack.c.l.b16 %v1119
        %v1140 = vunpack.c.l.b16 %v1120
        %v1141 = vunpack.c.l.b16 %v1121
        %v1142 = vunpack.c.l.b16 %v1122
        %v1143 = vunpack.c.l.b16 %v1123
        %v1144 = vunpack.c.l.b16 %v1124
        %v1145 = vunpack.c.l.b16 %v1125
        %v1146 = vpack.c.b16 %v1139, %v1138
        %v1147 = vpack.c.b16 %v1141, %v1140
        %v1148 = vpack.c.b16 %v1143, %v1142
        %v1149 = vpack.c.b16 %v1145, %v1144
        %vm1154 = vcmask 523264
        %v1156 = vsel %vm1154, %v1102, 0
        %v1159 = vsel %vm1154, %v1103, 0
        %v1162 = vsel %vm1154, %v1104, 0
        %v1165 = vsel %vm1154, %v1105, 0
        %v1168 = vsel %vm1154, %v1106, 0
        %v1171 = vsel %vm1154, %v1107, 0
        %v1174 = vsel %vm1154, %v1108, 0
        %v1177 = vsel %vm1154, %v1109, 0
        %v1180 = vsel %vm1154, %v1110, 0
        %v1183 = vsel %vm1154, %v1111, 0
        %v1186 = vsel %vm1154, %v1112, 0
        %v1189 = vsel %vm1154, %v1113, 0
        %v1192 = vsel %vm1154, %v1114, 0
        %v1195 = vsel %vm1154, %v1115, 0
        %v1198 = vsel %vm1154, %v1116, 0
        %v1201 = vsel %vm1154, %v1117, 0
        %1203 = vmatpush.bf16.msra.mxu0 0
        %1204 = vmatpush.bf16.msra.mxu0 0
        %1205 = vmatpush.bf16.msra.mxu0 0
        %1206 = vmatpush.bf16.msra.mxu0 0
        %1207 = vmatpush.bf16.msra.mxu0 %v1149
        %1208 = vmatpush.bf16.msra.mxu0 %v1148
        %1209 = vmatpush.bf16.msra.mxu0 %v1147
        %1210 = vmatpush.bf16.msra.mxu0 %v1146
        %1211 = vmatmul.bf16.gmra.mxu0 %v1156
        %v1212 = vpop.f32.mrf.mxu0
        %v1213 = vadd.f32 %v1128, %v1212
        %v1214 = vpop.f32.mrf.mxu0
        %v1215 = vadd.f32 %v1128, %v1214
        %1216 = vmatmul.bf16.gmra.mxu0 %v1159
        %v1217 = vpop.f32.mrf.mxu0
        %v1218 = vadd.f32 %v1128, %v1217
        %v1219 = vpop.f32.mrf.mxu0
        %v1220 = vadd.f32 %v1128, %v1219
        %1221 = vmatmul.bf16.gmra.mxu0 %v1162
        %v1222 = vpop.f32.mrf.mxu0
        %v1223 = vadd.f32 %v1128, %v1222
        %v1224 = vpop.f32.mrf.mxu0
        %v1225 = vadd.f32 %v1128, %v1224
        %1226 = vmatmul.bf16.gmra.mxu0 %v1165
        %v1227 = vpop.f32.mrf.mxu0
        %v1228 = vadd.f32 %v1128, %v1227
        %v1229 = vpop.f32.mrf.mxu0
        %v1230 = vadd.f32 %v1128, %v1229
        %1231 = vmatmul.bf16.gmra.mxu0 %v1168
        %v1232 = vpop.f32.mrf.mxu0
        %v1233 = vadd.f32 %v1128, %v1232
        %v1234 = vpop.f32.mrf.mxu0
        %v1235 = vadd.f32 %v1128, %v1234
        %1236 = vmatmul.bf16.gmra.mxu0 %v1171
        %v1237 = vpop.f32.mrf.mxu0
        %v1238 = vadd.f32 %v1128, %v1237
        %v1239 = vpop.f32.mrf.mxu0
        %v1240 = vadd.f32 %v1128, %v1239
        %1241 = vmatmul.bf16.gmra.mxu0 %v1174
        %v1242 = vpop.f32.mrf.mxu0
        %v1243 = vadd.f32 %v1128, %v1242
        %v1244 = vpop.f32.mrf.mxu0
        %v1245 = vadd.f32 %v1128, %v1244
        %1246 = vmatmul.bf16.gmra.mxu0 %v1177
        %v1247 = vpop.f32.mrf.mxu0
        %v1248 = vadd.f32 %v1128, %v1247
        %v1249 = vpop.f32.mrf.mxu0
        %v1250 = vadd.f32 %v1128, %v1249
        %1251 = vmatmul.bf16.gmra.mxu0 %v1180
        %v1252 = vpop.f32.mrf.mxu0
        %v1253 = vadd.f32 %v1128, %v1252
        %v1254 = vpop.f32.mrf.mxu0
        %v1255 = vadd.f32 %v1128, %v1254
        %1256 = vmatmul.bf16.gmra.mxu0 %v1183
        %v1257 = vpop.f32.mrf.mxu0
        %v1258 = vadd.f32 %v1128, %v1257
        %v1259 = vpop.f32.mrf.mxu0
        %v1260 = vadd.f32 %v1128, %v1259
        %1261 = vmatmul.bf16.gmra.mxu0 %v1186
        %v1262 = vpop.f32.mrf.mxu0
        %v1263 = vadd.f32 %v1128, %v1262
        %v1264 = vpop.f32.mrf.mxu0
        %v1265 = vadd.f32 %v1128, %v1264
        %1266 = vmatmul.bf16.gmra.mxu0 %v1189
        %v1267 = vpop.f32.mrf.mxu0
        %v1268 = vadd.f32 %v1128, %v1267
        %v1269 = vpop.f32.mrf.mxu0
        %v1270 = vadd.f32 %v1128, %v1269
        %1271 = vmatmul.bf16.gmra.mxu0 %v1192
        %v1272 = vpop.f32.mrf.mxu0
        %v1273 = vadd.f32 %v1128, %v1272
        %v1274 = vpop.f32.mrf.mxu0
        %v1275 = vadd.f32 %v1128, %v1274
        %1276 = vmatmul.bf16.gmra.mxu0 %v1195
        %v1277 = vpop.f32.mrf.mxu0
        %v1278 = vadd.f32 %v1128, %v1277
        %v1279 = vpop.f32.mrf.mxu0
        %v1280 = vadd.f32 %v1128, %v1279
        %1281 = vmatmul.bf16.gmra.mxu0 %v1198
        %v1282 = vpop.f32.mrf.mxu0
        %v1283 = vadd.f32 %v1128, %v1282
        %v1284 = vpop.f32.mrf.mxu0
        %v1285 = vadd.f32 %v1128, %v1284
        %1286 = vmatmul.bf16.gmra.mxu0 %v1201
        %v1287 = vpop.f32.mrf.mxu0
        %v1288 = vadd.f32 %v1128, %v1287
        %v1289 = vpop.f32.mrf.mxu0
        %v1290 = vadd.f32 %v1128, %v1289
        %1291 = vdwg.mxu0
        %v1292 = vmax.f32 %v1213, 0.0
        %v1293 = vmax.f32 %v1215, 0.0
        %v1294 = vmax.f32 %v1218, 0.0
        %v1295 = vmax.f32 %v1220, 0.0
        %v1296 = vmax.f32 %v1223, 0.0
        %v1297 = vmax.f32 %v1225, 0.0
        %v1298 = vmax.f32 %v1228, 0.0
        %v1299 = vmax.f32 %v1230, 0.0
        %v1300 = vmax.f32 %v1233, 0.0
        %v1301 = vmax.f32 %v1235, 0.0
        %v1302 = vmax.f32 %v1238, 0.0
        %v1303 = vmax.f32 %v1240, 0.0
        %v1304 = vmax.f32 %v1243, 0.0
        %v1305 = vmax.f32 %v1245, 0.0
        %v1306 = vmax.f32 %v1248, 0.0
        %v1307 = vmax.f32 %v1250, 0.0
        %v1308 = vmax.f32 %v1253, 0.0
        %v1309 = vmax.f32 %v1255, 0.0
        %v1310 = vmax.f32 %v1258, 0.0
        %v1311 = vmax.f32 %v1260, 0.0
        %v1312 = vmax.f32 %v1263, 0.0
        %v1313 = vmax.f32 %v1265, 0.0
        %v1314 = vmax.f32 %v1268, 0.0
        %v1315 = vmax.f32 %v1270, 0.0
        %v1316 = vmax.f32 %v1273, 0.0
        %v1317 = vmax.f32 %v1275, 0.0
        %v1318 = vmax.f32 %v1278, 0.0
        %v1319 = vmax.f32 %v1280, 0.0
        %v1320 = vmax.f32 %v1283, 0.0
        %v1321 = vmax.f32 %v1285, 0.0
        %v1322 = vmax.f32 %v1288, 0.0
        %v1323 = vmax.f32 %v1290, 0.0
        %v1324 = vpack.c.bf16 %v1293, %v1292
        %v1325 = vpack.c.bf16 %v1295, %v1294
        %v1326 = vpack.c.bf16 %v1297, %v1296
        %v1327 = vpack.c.bf16 %v1299, %v1298
        %v1328 = vpack.c.bf16 %v1301, %v1300
        %v1329 = vpack.c.bf16 %v1303, %v1302
        %v1330 = vpack.c.bf16 %v1305, %v1304
        %v1331 = vpack.c.bf16 %v1307, %v1306
        %v1332 = vpack.c.bf16 %v1309, %v1308
        %v1333 = vpack.c.bf16 %v1311, %v1310
        %v1334 = vpack.c.bf16 %v1313, %v1312
        %v1335 = vpack.c.bf16 %v1315, %v1314
        %v1336 = vpack.c.bf16 %v1317, %v1316
        %v1337 = vpack.c.bf16 %v1319, %v1318
        %v1338 = vpack.c.bf16 %v1321, %v1320
        %v1339 = vpack.c.bf16 %v1323, %v1322
        %v1340 = vld [vmem:[%s339] sm:$0xff]
        %v1341 = vld [vmem:[%s339 + $0x8] sm:$0xff]
        %v1342 = vld [vmem:[%s339 + $0x10] sm:$0xff]
        %v1343 = vld [vmem:[%s339 + $0x18] sm:$0xff]
        %v1344 = vld [vmem:[%s339 + $0x20] sm:$0xff]
        %v1345 = vld [vmem:[%s339 + $0x28] sm:$0xff]
        %v1346 = vld [vmem:[%s339 + $0x30] sm:$0xff]
        %v1347 = vld [vmem:[%s339 + $0x38] sm:$0xff]
        %v1348 = vld [vmem:[%s339 + $0x40] sm:$0xff]
        %v1349 = vld [vmem:[%s339 + $0x48] sm:$0xff]
        %v1350 = vld [vmem:[%s339 + $0x50] sm:$0xff]
        %v1351 = vld [vmem:[%s339 + $0x58] sm:$0xff]
        %v1352 = vld [vmem:[%s339 + $0x60] sm:$0xff]
        %v1353 = vld [vmem:[%s339 + $0x68] sm:$0xff]
        %v1354 = vld [vmem:[%s339 + $0x70] sm:$0xff]
        %v1355 = vld [vmem:[%s339 + $0x78] sm:$0xff]
        %v1356 = vld [vmem:[%s339 + $0x80] sm:$0xff]
        %v1357 = vld [vmem:[%s339 + $0x88] sm:$0xff]
        %v1358 = vld [vmem:[%s339 + $0x90] sm:$0xff]
        %v1359 = vld [vmem:[%s339 + $0x98] sm:$0xff]
        %v1360 = vld [vmem:[%s339 + $0xa0] sm:$0xff]
        %v1361 = vld [vmem:[%s339 + $0xa8] sm:$0xff]
        %v1362 = vld [vmem:[%s339 + $0xb0] sm:$0xff]
        %v1363 = vld [vmem:[%s339 + $0xb8] sm:$0xff]
        %v1364 = vld [vmem:[%s339 + $0xc0] sm:$0xff]
        %v1365 = vld [vmem:[%s339 + $0xc8] sm:$0xff]
        %v1366 = vld [vmem:[%s339 + $0xd0] sm:$0xff]
        %v1367 = vld [vmem:[%s339 + $0xd8] sm:$0xff]
        %v1368 = vld [vmem:[%s339 + $0xe0] sm:$0xff]
        %v1369 = vld [vmem:[%s339 + $0xe8] sm:$0xff]
        %v1370 = vld [vmem:[%s339 + $0xf0] sm:$0xff]
        %v1371 = vld [vmem:[%s339 + $0xf8] sm:$0xff]
        %v1404 = vunpack.c.l.b16 %v1340
        %v1405 = vunpack.c.h.b16 %v1340
        %v1406 = vunpack.c.l.b16 %v1341
        %v1407 = vunpack.c.h.b16 %v1341
        %v1408 = vunpack.c.l.b16 %v1342
        %v1409 = vunpack.c.h.b16 %v1342
        %v1410 = vunpack.c.l.b16 %v1343
        %v1411 = vunpack.c.h.b16 %v1343
        %v1412 = vunpack.c.l.b16 %v1344
        %v1413 = vunpack.c.h.b16 %v1344
        %v1414 = vunpack.c.l.b16 %v1345
        %v1415 = vunpack.c.h.b16 %v1345
        %v1416 = vunpack.c.l.b16 %v1346
        %v1417 = vunpack.c.h.b16 %v1346
        %v1418 = vunpack.c.l.b16 %v1347
        %v1419 = vunpack.c.h.b16 %v1347
        %v1420 = vunpack.c.l.b16 %v1348
        %v1421 = vunpack.c.h.b16 %v1348
        %v1422 = vunpack.c.l.b16 %v1349
        %v1423 = vunpack.c.h.b16 %v1349
        %v1424 = vunpack.c.l.b16 %v1350
        %v1425 = vunpack.c.h.b16 %v1350
        %v1426 = vunpack.c.l.b16 %v1351
        %v1427 = vunpack.c.h.b16 %v1351
        %v1428 = vunpack.c.l.b16 %v1352
        %v1429 = vunpack.c.h.b16 %v1352
        %v1430 = vunpack.c.l.b16 %v1353
        %v1431 = vunpack.c.h.b16 %v1353
        %v1432 = vunpack.c.l.b16 %v1354
        %v1433 = vunpack.c.h.b16 %v1354
        %v1434 = vunpack.c.l.b16 %v1355
        %v1435 = vunpack.c.h.b16 %v1355
        %v1436 = vunpack.c.l.b16 %v1356
        %v1437 = vunpack.c.h.b16 %v1356
        %v1438 = vunpack.c.l.b16 %v1357
        %v1439 = vunpack.c.h.b16 %v1357
        %v1440 = vunpack.c.l.b16 %v1358
        %v1441 = vunpack.c.h.b16 %v1358
        %v1442 = vunpack.c.l.b16 %v1359
        %v1443 = vunpack.c.h.b16 %v1359
        %v1444 = vunpack.c.l.b16 %v1360
        %v1445 = vunpack.c.h.b16 %v1360
        %v1446 = vunpack.c.l.b16 %v1361
        %v1447 = vunpack.c.h.b16 %v1361
        %v1448 = vunpack.c.l.b16 %v1362
        %v1449 = vunpack.c.h.b16 %v1362
        %v1450 = vunpack.c.l.b16 %v1363
        %v1451 = vunpack.c.h.b16 %v1363
        %v1452 = vunpack.c.l.b16 %v1364
        %v1453 = vunpack.c.h.b16 %v1364
        %v1454 = vunpack.c.l.b16 %v1365
        %v1455 = vunpack.c.h.b16 %v1365
        %v1456 = vunpack.c.l.b16 %v1366
        %v1457 = vunpack.c.h.b16 %v1366
        %v1458 = vunpack.c.l.b16 %v1367
        %v1459 = vunpack.c.h.b16 %v1367
        %v1460 = vunpack.c.l.b16 %v1368
        %v1461 = vunpack.c.h.b16 %v1368
        %v1462 = vunpack.c.l.b16 %v1369
        %v1463 = vunpack.c.h.b16 %v1369
        %v1464 = vunpack.c.l.b16 %v1370
        %v1465 = vunpack.c.h.b16 %v1370
        %v1466 = vunpack.c.l.b16 %v1371
        %v1467 = vunpack.c.h.b16 %v1371
        %v1468 = vpack.c.b16 %v1408, %v1404
        %v1469 = vpack.c.b16 %v1409, %v1405
        %v1470 = vpack.c.b16 %v1410, %v1406
        %v1471 = vpack.c.b16 %v1411, %v1407
        %v1472 = vpack.c.b16 %v1416, %v1412
        %v1473 = vpack.c.b16 %v1417, %v1413
        %v1474 = vpack.c.b16 %v1418, %v1414
        %v1475 = vpack.c.b16 %v1419, %v1415
        %v1476 = vpack.c.b16 %v1424, %v1420
        %v1477 = vpack.c.b16 %v1425, %v1421
        %v1478 = vpack.c.b16 %v1426, %v1422
        %v1479 = vpack.c.b16 %v1427, %v1423
        %v1480 = vpack.c.b16 %v1432, %v1428
        %v1481 = vpack.c.b16 %v1433, %v1429
        %v1482 = vpack.c.b16 %v1434, %v1430
        %v1483 = vpack.c.b16 %v1435, %v1431
        %v1484 = vpack.c.b16 %v1440, %v1436
        %v1485 = vpack.c.b16 %v1441, %v1437
        %v1486 = vpack.c.b16 %v1442, %v1438
        %v1487 = vpack.c.b16 %v1443, %v1439
        %v1488 = vpack.c.b16 %v1448, %v1444
        %v1489 = vpack.c.b16 %v1449, %v1445
        %v1490 = vpack.c.b16 %v1450, %v1446
        %v1491 = vpack.c.b16 %v1451, %v1447
        %v1492 = vpack.c.b16 %v1456, %v1452
        %v1493 = vpack.c.b16 %v1457, %v1453
        %v1494 = vpack.c.b16 %v1458, %v1454
        %v1495 = vpack.c.b16 %v1459, %v1455
        %v1496 = vpack.c.b16 %v1464, %v1460
        %v1497 = vpack.c.b16 %v1465, %v1461
        %v1498 = vpack.c.b16 %v1466, %v1462
        %v1499 = vpack.c.b16 %v1467, %v1463
        %1532 = vmatpush.bf16.msra.mxu0 %v1496
        %1533 = vmatpush.bf16.msra.mxu0 %v1492
        %1534 = vmatpush.bf16.msra.mxu0 %v1488
        %1535 = vmatpush.bf16.msra.mxu0 %v1484
        %1536 = vmatpush.bf16.msra.mxu0 %v1480
        %1537 = vmatpush.bf16.msra.mxu0 %v1476
        %1538 = vmatpush.bf16.msra.mxu0 %v1472
        %1539 = vmatpush.bf16.msra.mxu0 %v1468
        %1540 = vmatmul.bf16.gmra.mxu0 %v1324
        %v1541 = vpop.f32.mrf.mxu0
        %v1542 = vadd.f32 0.0, %v1541
        %v1543 = vpop.f32.mrf.mxu0
        %v1544 = vadd.f32 0.0, %v1543
        %1545 = vmatmul.bf16.gmra.mxu0 %v1325
        %v1546 = vpop.f32.mrf.mxu0
        %v1547 = vadd.f32 0.0, %v1546
        %v1548 = vpop.f32.mrf.mxu0
        %v1549 = vadd.f32 0.0, %v1548
        %1550 = vmatmul.bf16.gmra.mxu0 %v1326
        %v1551 = vpop.f32.mrf.mxu0
        %v1552 = vadd.f32 0.0, %v1551
        %v1553 = vpop.f32.mrf.mxu0
        %v1554 = vadd.f32 0.0, %v1553
        %1555 = vmatmul.bf16.gmra.mxu0 %v1327
        %v1556 = vpop.f32.mrf.mxu0
        %v1557 = vadd.f32 0.0, %v1556
        %v1558 = vpop.f32.mrf.mxu0
        %v1559 = vadd.f32 0.0, %v1558
        %1560 = vmatmul.bf16.gmra.mxu0 %v1328
        %v1561 = vpop.f32.mrf.mxu0
        %v1562 = vadd.f32 0.0, %v1561
        %v1563 = vpop.f32.mrf.mxu0
        %v1564 = vadd.f32 0.0, %v1563
        %1565 = vmatmul.bf16.gmra.mxu0 %v1329
        %v1566 = vpop.f32.mrf.mxu0
        %v1567 = vadd.f32 0.0, %v1566
        %v1568 = vpop.f32.mrf.mxu0
        %v1569 = vadd.f32 0.0, %v1568
        %1570 = vmatmul.bf16.gmra.mxu0 %v1330
        %v1571 = vpop.f32.mrf.mxu0
        %v1572 = vadd.f32 0.0, %v1571
        %v1573 = vpop.f32.mrf.mxu0
        %v1574 = vadd.f32 0.0, %v1573
        %1575 = vmatmul.bf16.gmra.mxu0 %v1331
        %v1576 = vpop.f32.mrf.mxu0
        %v1577 = vadd.f32 0.0, %v1576
        %v1578 = vpop.f32.mrf.mxu0
        %v1579 = vadd.f32 0.0, %v1578
        %1580 = vmatmul.bf16.gmra.mxu0 %v1332
        %v1581 = vpop.f32.mrf.mxu0
        %v1582 = vadd.f32 0.0, %v1581
        %v1583 = vpop.f32.mrf.mxu0
        %v1584 = vadd.f32 0.0, %v1583
        %1585 = vmatmul.bf16.gmra.mxu0 %v1333
        %v1586 = vpop.f32.mrf.mxu0
        %v1587 = vadd.f32 0.0, %v1586
        %v1588 = vpop.f32.mrf.mxu0
        %v1589 = vadd.f32 0.0, %v1588
        %1590 = vmatmul.bf16.gmra.mxu0 %v1334
        %v1591 = vpop.f32.mrf.mxu0
        %v1592 = vadd.f32 0.0, %v1591
        %v1593 = vpop.f32.mrf.mxu0
        %v1594 = vadd.f32 0.0, %v1593
        %1595 = vmatmul.bf16.gmra.mxu0 %v1335
        %v1596 = vpop.f32.mrf.mxu0
        %v1597 = vadd.f32 0.0, %v1596
        %v1598 = vpop.f32.mrf.mxu0
        %v1599 = vadd.f32 0.0, %v1598
        %1600 = vmatmul.bf16.gmra.mxu0 %v1336
        %v1601 = vpop.f32.mrf.mxu0
        %v1602 = vadd.f32 0.0, %v1601
        %v1603 = vpop.f32.mrf.mxu0
        %v1604 = vadd.f32 0.0, %v1603
        %1605 = vmatmul.bf16.gmra.mxu0 %v1337
        %v1606 = vpop.f32.mrf.mxu0
        %v1607 = vadd.f32 0.0, %v1606
        %v1608 = vpop.f32.mrf.mxu0
        %v1609 = vadd.f32 0.0, %v1608
        %1610 = vmatmul.bf16.gmra.mxu0 %v1338
        %v1611 = vpop.f32.mrf.mxu0
        %v1612 = vadd.f32 0.0, %v1611
        %v1613 = vpop.f32.mrf.mxu0
        %v1614 = vadd.f32 0.0, %v1613
        %1615 = vmatmul.bf16.gmra.mxu0 %v1339
        %v1616 = vpop.f32.mrf.mxu0
        %v1617 = vadd.f32 0.0, %v1616
        %v1618 = vpop.f32.mrf.mxu0
        %v1619 = vadd.f32 0.0, %v1618
        %1620 = vdwg.mxu0
        %1621 = vmatpush.bf16.msra.mxu0 %v1497
        %1622 = vmatpush.bf16.msra.mxu0 %v1493
        %1623 = vmatpush.bf16.msra.mxu0 %v1489
        %1624 = vmatpush.bf16.msra.mxu0 %v1485
        %1625 = vmatpush.bf16.msra.mxu0 %v1481
        %1626 = vmatpush.bf16.msra.mxu0 %v1477
        %1627 = vmatpush.bf16.msra.mxu0 %v1473
        %1628 = vmatpush.bf16.msra.mxu0 %v1469
        %1629 = vmatmul.bf16.gmra.mxu0 %v1324
        %v1630 = vpop.f32.mrf.mxu0
        %v1631 = vadd.f32 0.0, %v1630
        %v1632 = vpop.f32.mrf.mxu0
        %v1633 = vadd.f32 0.0, %v1632
        %1634 = vmatmul.bf16.gmra.mxu0 %v1325
        %v1635 = vpop.f32.mrf.mxu0
        %v1636 = vadd.f32 0.0, %v1635
        %v1637 = vpop.f32.mrf.mxu0
        %v1638 = vadd.f32 0.0, %v1637
        %1639 = vmatmul.bf16.gmra.mxu0 %v1326
        %v1640 = vpop.f32.mrf.mxu0
        %v1641 = vadd.f32 0.0, %v1640
        %v1642 = vpop.f32.mrf.mxu0
        %v1643 = vadd.f32 0.0, %v1642
        %1644 = vmatmul.bf16.gmra.mxu0 %v1327
        %v1645 = vpop.f32.mrf.mxu0
        %v1646 = vadd.f32 0.0, %v1645
        %v1647 = vpop.f32.mrf.mxu0
        %v1648 = vadd.f32 0.0, %v1647
        %1649 = vmatmul.bf16.gmra.mxu0 %v1328
        %v1650 = vpop.f32.mrf.mxu0
        %v1651 = vadd.f32 0.0, %v1650
        %v1652 = vpop.f32.mrf.mxu0
        %v1653 = vadd.f32 0.0, %v1652
        %1654 = vmatmul.bf16.gmra.mxu0 %v1329
        %v1655 = vpop.f32.mrf.mxu0
        %v1656 = vadd.f32 0.0, %v1655
        %v1657 = vpop.f32.mrf.mxu0
        %v1658 = vadd.f32 0.0, %v1657
        %1659 = vmatmul.bf16.gmra.mxu0 %v1330
        %v1660 = vpop.f32.mrf.mxu0
        %v1661 = vadd.f32 0.0, %v1660
        %v1662 = vpop.f32.mrf.mxu0
        %v1663 = vadd.f32 0.0, %v1662
        %1664 = vmatmul.bf16.gmra.mxu0 %v1331
        %v1665 = vpop.f32.mrf.mxu0
        %v1666 = vadd.f32 0.0, %v1665
        %v1667 = vpop.f32.mrf.mxu0
        %v1668 = vadd.f32 0.0, %v1667
        %1669 = vmatmul.bf16.gmra.mxu0 %v1332
        %v1670 = vpop.f32.mrf.mxu0
        %v1671 = vadd.f32 0.0, %v1670
        %v1672 = vpop.f32.mrf.mxu0
        %v1673 = vadd.f32 0.0, %v1672
        %1674 = vmatmul.bf16.gmra.mxu0 %v1333
        %v1675 = vpop.f32.mrf.mxu0
        %v1676 = vadd.f32 0.0, %v1675
        %v1677 = vpop.f32.mrf.mxu0
        %v1678 = vadd.f32 0.0, %v1677
        %1679 = vmatmul.bf16.gmra.mxu0 %v1334
        %v1680 = vpop.f32.mrf.mxu0
        %v1681 = vadd.f32 0.0, %v1680
        %v1682 = vpop.f32.mrf.mxu0
        %v1683 = vadd.f32 0.0, %v1682
        %1684 = vmatmul.bf16.gmra.mxu0 %v1335
        %v1685 = vpop.f32.mrf.mxu0
        %v1686 = vadd.f32 0.0, %v1685
        %v1687 = vpop.f32.mrf.mxu0
        %v1688 = vadd.f32 0.0, %v1687
        %1689 = vmatmul.bf16.gmra.mxu0 %v1336
        %v1690 = vpop.f32.mrf.mxu0
        %v1691 = vadd.f32 0.0, %v1690
        %v1692 = vpop.f32.mrf.mxu0
        %v1693 = vadd.f32 0.0, %v1692
        %1694 = vmatmul.bf16.gmra.mxu0 %v1337
        %v1695 = vpop.f32.mrf.mxu0
        %v1696 = vadd.f32 0.0, %v1695
        %v1697 = vpop.f32.mrf.mxu0
        %v1698 = vadd.f32 0.0, %v1697
        %1699 = vmatmul.bf16.gmra.mxu0 %v1338
        %v1700 = vpop.f32.mrf.mxu0
        %v1701 = vadd.f32 0.0, %v1700
        %v1702 = vpop.f32.mrf.mxu0
        %v1703 = vadd.f32 0.0, %v1702
        %1704 = vmatmul.bf16.gmra.mxu0 %v1339
        %v1705 = vpop.f32.mrf.mxu0
        %v1706 = vadd.f32 0.0, %v1705
        %v1707 = vpop.f32.mrf.mxu0
        %v1708 = vadd.f32 0.0, %v1707
        %1709 = vdwg.mxu0
        %1710 = vmatpush.bf16.msra.mxu0 %v1498
        %1711 = vmatpush.bf16.msra.mxu0 %v1494
        %1712 = vmatpush.bf16.msra.mxu0 %v1490
        %1713 = vmatpush.bf16.msra.mxu0 %v1486
        %1714 = vmatpush.bf16.msra.mxu0 %v1482
        %1715 = vmatpush.bf16.msra.mxu0 %v1478
        %1716 = vmatpush.bf16.msra.mxu0 %v1474
        %1717 = vmatpush.bf16.msra.mxu0 %v1470
        %1718 = vmatmul.bf16.gmra.mxu0 %v1324
        %v1719 = vpop.f32.mrf.mxu0
        %v1720 = vadd.f32 0.0, %v1719
        %v1721 = vpop.f32.mrf.mxu0
        %v1722 = vadd.f32 0.0, %v1721
        %1723 = vmatmul.bf16.gmra.mxu0 %v1325
        %v1724 = vpop.f32.mrf.mxu0
        %v1725 = vadd.f32 0.0, %v1724
        %v1726 = vpop.f32.mrf.mxu0
        %v1727 = vadd.f32 0.0, %v1726
        %1728 = vmatmul.bf16.gmra.mxu0 %v1326
        %v1729 = vpop.f32.mrf.mxu0
        %v1730 = vadd.f32 0.0, %v1729
        %v1731 = vpop.f32.mrf.mxu0
        %v1732 = vadd.f32 0.0, %v1731
        %1733 = vmatmul.bf16.gmra.mxu0 %v1327
        %v1734 = vpop.f32.mrf.mxu0
        %v1735 = vadd.f32 0.0, %v1734
        %v1736 = vpop.f32.mrf.mxu0
        %v1737 = vadd.f32 0.0, %v1736
        %1738 = vmatmul.bf16.gmra.mxu0 %v1328
        %v1739 = vpop.f32.mrf.mxu0
        %v1740 = vadd.f32 0.0, %v1739
        %v1741 = vpop.f32.mrf.mxu0
        %v1742 = vadd.f32 0.0, %v1741
        %1743 = vmatmul.bf16.gmra.mxu0 %v1329
        %v1744 = vpop.f32.mrf.mxu0
        %v1745 = vadd.f32 0.0, %v1744
        %v1746 = vpop.f32.mrf.mxu0
        %v1747 = vadd.f32 0.0, %v1746
        %1748 = vmatmul.bf16.gmra.mxu0 %v1330
        %v1749 = vpop.f32.mrf.mxu0
        %v1750 = vadd.f32 0.0, %v1749
        %v1751 = vpop.f32.mrf.mxu0
        %v1752 = vadd.f32 0.0, %v1751
        %1753 = vmatmul.bf16.gmra.mxu0 %v1331
        %v1754 = vpop.f32.mrf.mxu0
        %v1755 = vadd.f32 0.0, %v1754
        %v1756 = vpop.f32.mrf.mxu0
        %v1757 = vadd.f32 0.0, %v1756
        %1758 = vmatmul.bf16.gmra.mxu0 %v1332
        %v1759 = vpop.f32.mrf.mxu0
        %v1760 = vadd.f32 0.0, %v1759
        %v1761 = vpop.f32.mrf.mxu0
        %v1762 = vadd.f32 0.0, %v1761
        %1763 = vmatmul.bf16.gmra.mxu0 %v1333
        %v1764 = vpop.f32.mrf.mxu0
        %v1765 = vadd.f32 0.0, %v1764
        %v1766 = vpop.f32.mrf.mxu0
        %v1767 = vadd.f32 0.0, %v1766
        %1768 = vmatmul.bf16.gmra.mxu0 %v1334
        %v1769 = vpop.f32.mrf.mxu0
        %v1770 = vadd.f32 0.0, %v1769
        %v1771 = vpop.f32.mrf.mxu0
        %v1772 = vadd.f32 0.0, %v1771
        %1773 = vmatmul.bf16.gmra.mxu0 %v1335
        %v1774 = vpop.f32.mrf.mxu0
        %v1775 = vadd.f32 0.0, %v1774
        %v1776 = vpop.f32.mrf.mxu0
        %v1777 = vadd.f32 0.0, %v1776
        %1778 = vmatmul.bf16.gmra.mxu0 %v1336
        %v1779 = vpop.f32.mrf.mxu0
        %v1780 = vadd.f32 0.0, %v1779
        %v1781 = vpop.f32.mrf.mxu0
        %v1782 = vadd.f32 0.0, %v1781
        %1783 = vmatmul.bf16.gmra.mxu0 %v1337
        %v1784 = vpop.f32.mrf.mxu0
        %v1785 = vadd.f32 0.0, %v1784
        %v1786 = vpop.f32.mrf.mxu0
        %v1787 = vadd.f32 0.0, %v1786
        %1788 = vmatmul.bf16.gmra.mxu0 %v1338
        %v1789 = vpop.f32.mrf.mxu0
        %v1790 = vadd.f32 0.0, %v1789
        %v1791 = vpop.f32.mrf.mxu0
        %v1792 = vadd.f32 0.0, %v1791
        %1793 = vmatmul.bf16.gmra.mxu0 %v1339
        %v1794 = vpop.f32.mrf.mxu0
        %v1795 = vadd.f32 0.0, %v1794
        %v1796 = vpop.f32.mrf.mxu0
        %v1797 = vadd.f32 0.0, %v1796
        %1798 = vdwg.mxu0
        %1799 = vmatpush.bf16.msra.mxu0 %v1499
        %1800 = vmatpush.bf16.msra.mxu0 %v1495
        %1801 = vmatpush.bf16.msra.mxu0 %v1491
        %1802 = vmatpush.bf16.msra.mxu0 %v1487
        %1803 = vmatpush.bf16.msra.mxu0 %v1483
        %1804 = vmatpush.bf16.msra.mxu0 %v1479
        %1805 = vmatpush.bf16.msra.mxu0 %v1475
        %1806 = vmatpush.bf16.msra.mxu0 %v1471
        %1807 = vmatmul.bf16.gmra.mxu0 %v1324
        %v1808 = vpop.f32.mrf.mxu0
        %v1809 = vadd.f32 0.0, %v1808
        %v1810 = vpop.f32.mrf.mxu0
        %v1811 = vadd.f32 0.0, %v1810
        %1812 = vmatmul.bf16.gmra.mxu0 %v1325
        %v1813 = vpop.f32.mrf.mxu0
        %v1814 = vadd.f32 0.0, %v1813
        %v1815 = vpop.f32.mrf.mxu0
        %v1816 = vadd.f32 0.0, %v1815
        %1817 = vmatmul.bf16.gmra.mxu0 %v1326
        %v1818 = vpop.f32.mrf.mxu0
        %v1819 = vadd.f32 0.0, %v1818
        %v1820 = vpop.f32.mrf.mxu0
        %v1821 = vadd.f32 0.0, %v1820
        %1822 = vmatmul.bf16.gmra.mxu0 %v1327
        %v1823 = vpop.f32.mrf.mxu0
        %v1824 = vadd.f32 0.0, %v1823
        %v1825 = vpop.f32.mrf.mxu0
        %v1826 = vadd.f32 0.0, %v1825
        %1827 = vmatmul.bf16.gmra.mxu0 %v1328
        %v1828 = vpop.f32.mrf.mxu0
        %v1829 = vadd.f32 0.0, %v1828
        %v1830 = vpop.f32.mrf.mxu0
        %v1831 = vadd.f32 0.0, %v1830
        %1832 = vmatmul.bf16.gmra.mxu0 %v1329
        %v1833 = vpop.f32.mrf.mxu0
        %v1834 = vadd.f32 0.0, %v1833
        %v1835 = vpop.f32.mrf.mxu0
        %v1836 = vadd.f32 0.0, %v1835
        %1837 = vmatmul.bf16.gmra.mxu0 %v1330
        %v1838 = vpop.f32.mrf.mxu0
        %v1839 = vadd.f32 0.0, %v1838
        %v1840 = vpop.f32.mrf.mxu0
        %v1841 = vadd.f32 0.0, %v1840
        %1842 = vmatmul.bf16.gmra.mxu0 %v1331
        %v1843 = vpop.f32.mrf.mxu0
        %v1844 = vadd.f32 0.0, %v1843
        %v1845 = vpop.f32.mrf.mxu0
        %v1846 = vadd.f32 0.0, %v1845
        %1847 = vmatmul.bf16.gmra.mxu0 %v1332
        %v1848 = vpop.f32.mrf.mxu0
        %v1849 = vadd.f32 0.0, %v1848
        %v1850 = vpop.f32.mrf.mxu0
        %v1851 = vadd.f32 0.0, %v1850
        %1852 = vmatmul.bf16.gmra.mxu0 %v1333
        %v1853 = vpop.f32.mrf.mxu0
        %v1854 = vadd.f32 0.0, %v1853
        %v1855 = vpop.f32.mrf.mxu0
        %v1856 = vadd.f32 0.0, %v1855
        %1857 = vmatmul.bf16.gmra.mxu0 %v1334
        %v1858 = vpop.f32.mrf.mxu0
        %v1859 = vadd.f32 0.0, %v1858
        %v1860 = vpop.f32.mrf.mxu0
        %v1861 = vadd.f32 0.0, %v1860
        %1862 = vmatmul.bf16.gmra.mxu0 %v1335
        %v1863 = vpop.f32.mrf.mxu0
        %v1864 = vadd.f32 0.0, %v1863
        %v1865 = vpop.f32.mrf.mxu0
        %v1866 = vadd.f32 0.0, %v1865
        %1867 = vmatmul.bf16.gmra.mxu0 %v1336
        %v1868 = vpop.f32.mrf.mxu0
        %v1869 = vadd.f32 0.0, %v1868
        %v1870 = vpop.f32.mrf.mxu0
        %v1871 = vadd.f32 0.0, %v1870
        %1872 = vmatmul.bf16.gmra.mxu0 %v1337
        %v1873 = vpop.f32.mrf.mxu0
        %v1874 = vadd.f32 0.0, %v1873
        %v1875 = vpop.f32.mrf.mxu0
        %v1876 = vadd.f32 0.0, %v1875
        %1877 = vmatmul.bf16.gmra.mxu0 %v1338
        %v1878 = vpop.f32.mrf.mxu0
        %v1879 = vadd.f32 0.0, %v1878
        %v1880 = vpop.f32.mrf.mxu0
        %v1881 = vadd.f32 0.0, %v1880
        %1882 = vmatmul.bf16.gmra.mxu0 %v1339
        %v1883 = vpop.f32.mrf.mxu0
        %v1884 = vadd.f32 0.0, %v1883
        %v1885 = vpop.f32.mrf.mxu0
        %v1886 = vadd.f32 0.0, %v1885
        %1887 = vdwg.mxu0
        %v1888 = vmax.f32 %v1542, %v1544
        %v1889 = vmax.f32 %v1888, %v1547
        %v1890 = vmax.f32 %v1889, %v1549
        %v1891 = vmax.f32 %v1890, %v1552
        %v1892 = vmax.f32 %v1891, %v1554
        %v1893 = vmax.f32 %v1892, %v1557
        %v1894 = vmax.f32 %v1893, %v1559
        %v1895 = vmax.f32 %v1894, %v1562
        %v1896 = vmax.f32 %v1895, %v1564
        %v1897 = vmax.f32 %v1896, %v1567
        %v1898 = vmax.f32 %v1897, %v1569
        %v1899 = vmax.f32 %v1898, %v1572
        %v1900 = vmax.f32 %v1899, %v1574
        %v1901 = vmax.f32 %v1900, %v1577
        %v1902 = vmax.f32 %v1901, %v1579
        %v1903 = vmax.f32 %v1902, %v1582
        %v1904 = vmax.f32 %v1903, %v1584
        %v1905 = vmax.f32 %v1904, %v1587
        %v1906 = vmax.f32 %v1905, %v1589
        %v1907 = vmax.f32 %v1906, %v1592
        %v1908 = vmax.f32 %v1907, %v1594
        %v1909 = vmax.f32 %v1908, %v1597
        %v1910 = vmax.f32 %v1909, %v1599
        %v1911 = vmax.f32 %v1910, %v1602
        %v1912 = vmax.f32 %v1911, %v1604
        %v1913 = vmax.f32 %v1912, %v1607
        %v1914 = vmax.f32 %v1913, %v1609
        %v1915 = vmax.f32 %v1914, %v1612
        %v1916 = vmax.f32 %v1915, %v1614
        %v1917 = vmax.f32 %v1916, %v1617
        %v1918 = vmax.f32 %v1917, %v1619
        %v1919 = vrot.slane %v1918, 4
        %v1920 = vmax.f32 %v1918, %v1919
        %v1921 = vrot.slane %v1920, 2
        %v1922 = vmax.f32 %v1920, %v1921
        %v1923 = vrot.slane %v1922, 1
        %v1924 = vmax.f32 %v1922, %v1923
        %v1925 = vmax.f32 %v1631, %v1633
        %v1926 = vmax.f32 %v1925, %v1636
        %v1927 = vmax.f32 %v1926, %v1638
        %v1928 = vmax.f32 %v1927, %v1641
        %v1929 = vmax.f32 %v1928, %v1643
        %v1930 = vmax.f32 %v1929, %v1646
        %v1931 = vmax.f32 %v1930, %v1648
        %v1932 = vmax.f32 %v1931, %v1651
        %v1933 = vmax.f32 %v1932, %v1653
        %v1934 = vmax.f32 %v1933, %v1656
        %v1935 = vmax.f32 %v1934, %v1658
        %v1936 = vmax.f32 %v1935, %v1661
        %v1937 = vmax.f32 %v1936, %v1663
        %v1938 = vmax.f32 %v1937, %v1666
        %v1939 = vmax.f32 %v1938, %v1668
        %v1940 = vmax.f32 %v1939, %v1671
        %v1941 = vmax.f32 %v1940, %v1673
        %v1942 = vmax.f32 %v1941, %v1676
        %v1943 = vmax.f32 %v1942, %v1678
        %v1944 = vmax.f32 %v1943, %v1681
        %v1945 = vmax.f32 %v1944, %v1683
        %v1946 = vmax.f32 %v1945, %v1686
        %v1947 = vmax.f32 %v1946, %v1688
        %v1948 = vmax.f32 %v1947, %v1691
        %v1949 = vmax.f32 %v1948, %v1693
        %v1950 = vmax.f32 %v1949, %v1696
        %v1951 = vmax.f32 %v1950, %v1698
        %v1952 = vmax.f32 %v1951, %v1701
        %v1953 = vmax.f32 %v1952, %v1703
        %v1954 = vmax.f32 %v1953, %v1706
        %v1955 = vmax.f32 %v1954, %v1708
        %v1956 = vrot.slane %v1955, 4
        %v1957 = vmax.f32 %v1955, %v1956
        %v1958 = vrot.slane %v1957, 2
        %v1959 = vmax.f32 %v1957, %v1958
        %v1960 = vrot.slane %v1959, 1
        %v1961 = vmax.f32 %v1959, %v1960
        %v1962 = vmax.f32 %v1720, %v1722
        %v1963 = vmax.f32 %v1962, %v1725
        %v1964 = vmax.f32 %v1963, %v1727
        %v1965 = vmax.f32 %v1964, %v1730
        %v1966 = vmax.f32 %v1965, %v1732
        %v1967 = vmax.f32 %v1966, %v1735
        %v1968 = vmax.f32 %v1967, %v1737
        %v1969 = vmax.f32 %v1968, %v1740
        %v1970 = vmax.f32 %v1969, %v1742
        %v1971 = vmax.f32 %v1970, %v1745
        %v1972 = vmax.f32 %v1971, %v1747
        %v1973 = vmax.f32 %v1972, %v1750
        %v1974 = vmax.f32 %v1973, %v1752
        %v1975 = vmax.f32 %v1974, %v1755
        %v1976 = vmax.f32 %v1975, %v1757
        %v1977 = vmax.f32 %v1976, %v1760
        %v1978 = vmax.f32 %v1977, %v1762
        %v1979 = vmax.f32 %v1978, %v1765
        %v1980 = vmax.f32 %v1979, %v1767
        %v1981 = vmax.f32 %v1980, %v1770
        %v1982 = vmax.f32 %v1981, %v1772
        %v1983 = vmax.f32 %v1982, %v1775
        %v1984 = vmax.f32 %v1983, %v1777
        %v1985 = vmax.f32 %v1984, %v1780
        %v1986 = vmax.f32 %v1985, %v1782
        %v1987 = vmax.f32 %v1986, %v1785
        %v1988 = vmax.f32 %v1987, %v1787
        %v1989 = vmax.f32 %v1988, %v1790
        %v1990 = vmax.f32 %v1989, %v1792
        %v1991 = vmax.f32 %v1990, %v1795
        %v1992 = vmax.f32 %v1991, %v1797
        %v1993 = vrot.slane %v1992, 4
        %v1994 = vmax.f32 %v1992, %v1993
        %v1995 = vrot.slane %v1994, 2
        %v1996 = vmax.f32 %v1994, %v1995
        %v1997 = vrot.slane %v1996, 1
        %v1998 = vmax.f32 %v1996, %v1997
        %v1999 = vmax.f32 %v1809, %v1811
        %v2000 = vmax.f32 %v1999, %v1814
        %v2001 = vmax.f32 %v2000, %v1816
        %v2002 = vmax.f32 %v2001, %v1819
        %v2003 = vmax.f32 %v2002, %v1821
        %v2004 = vmax.f32 %v2003, %v1824
        %v2005 = vmax.f32 %v2004, %v1826
        %v2006 = vmax.f32 %v2005, %v1829
        %v2007 = vmax.f32 %v2006, %v1831
        %v2008 = vmax.f32 %v2007, %v1834
        %v2009 = vmax.f32 %v2008, %v1836
        %v2010 = vmax.f32 %v2009, %v1839
        %v2011 = vmax.f32 %v2010, %v1841
        %v2012 = vmax.f32 %v2011, %v1844
        %v2013 = vmax.f32 %v2012, %v1846
        %v2014 = vmax.f32 %v2013, %v1849
        %v2015 = vmax.f32 %v2014, %v1851
        %v2016 = vmax.f32 %v2015, %v1854
        %v2017 = vmax.f32 %v2016, %v1856
        %v2018 = vmax.f32 %v2017, %v1859
        %v2019 = vmax.f32 %v2018, %v1861
        %v2020 = vmax.f32 %v2019, %v1864
        %v2021 = vmax.f32 %v2020, %v1866
        %v2022 = vmax.f32 %v2021, %v1869
        %v2023 = vmax.f32 %v2022, %v1871
        %v2024 = vmax.f32 %v2023, %v1874
        %v2025 = vmax.f32 %v2024, %v1876
        %v2026 = vmax.f32 %v2025, %v1879
        %v2027 = vmax.f32 %v2026, %v1881
        %v2028 = vmax.f32 %v2027, %v1884
        %v2029 = vmax.f32 %v2028, %v1886
        %v2030 = vrot.slane %v2029, 4
        %v2031 = vmax.f32 %v2029, %v2030
        %v2032 = vrot.slane %v2031, 2
        %v2033 = vmax.f32 %v2031, %v2032
        %v2034 = vrot.slane %v2033, 1
        %v2035 = vmax.f32 %v2033, %v2034
        %v2036 = vld [vmem:[%s410] sm:$0xf]
        %v2041 = vrot.slane %v1961, 7
        %v2042 = vrot.slane %v1998, 6
        %v2043 = vrot.slane %v2035, 5
        %vm2044 = vcmask 1040384
        %v2045 = vsel %vm2044, %v1924, %v2041
        %vm2046 = vcmask 1042434
        %v2047 = vsel %vm2046, %v2042, %v2043
        %vm2048 = vcmask 1041408
        %v2049 = vsel %vm2048, %v2045, %v2047
        %v2051 = vmax.f32 %v2036, %v2049
        %v2052 = vlaneseq
        %vm2053 = vcmp.ge.s32.totalorder %v2052, 0
        %vm2054 = vcmp.lt.s32.totalorder %v2052, 512
        %vm2055 = vmand %vm2053, %vm2054
        %2056 = vst.msk [vmem:[%s410] sm:$0xf] %vm2055, %v2051
        // Predicated region
        $region65: #{tnet_forward.2} parent=47 // pred_check
          %p2057 = pneg %p413
        $region66: #{tnet_forward.2} parent=47 // pred_check_branch
          %2059 = sbr.rel (%p2057) target = $region68
        $region67: #{tnet_forward.2} parent=47 // pred_region
          %v2060 = vld [vmem:[%s410] sm:$0xf]
          %v2061 = vld [vmem:[%s401] sm:$0xf]
          %v2062 = vadd.f32 %v2060, %v2061
          %v2063 = vmax.f32 %v2062, 0.0
          %2064 = vst.msk [vmem:[%s410] sm:$0xf] %vm2055, %v2063
        $region68: #{tnet_forward.2} parent=47 // pred_fallthru
          _
        %s2065 = smul.u32 4, %s26
        %p2066 = scmp.lt.s32.totalorder %s25, 1
        %s2067 = scalar_select %p2066, %s25, 1
        %p2068 = scmp.lt.s32.totalorder %s2065, 7
        %s2069 = scalar_select %p2068, %s2065, 7
        %s2070 = smul.addr %s2067, 8
        %s2071 = sadd.s32 %s2069, %s2070
        %s2072 = scalar_lea.vmem %s7, %s2071
        // Predicated region
        $region69: #{tnet_forward.2} parent=47 // pred_check
          %p2073 = pneg %p223
        $region70: #{tnet_forward.2} parent=47 // pred_check_branch
          %2075 = sbr.rel (%p2073) target = $region72
        $region71: #{tnet_forward.2} parent=47 // pred_region
          %s2076 = smul.u32 4, %s26
        $region72: #{tnet_forward.2} parent=47 // pred_fallthru
          _
      $region48: #{tnet_forward.2} parent=5 // pred_fallthru
        _
      %p2077 = scmp.le.s32.totalorder 2, %s15
      // Predicated region
      $region73: #{tnet_forward.2} parent=5 // pred_check
        %p2078 = pneg %p2077
      $region74: #{tnet_forward.2} parent=5 // pred_check_branch
        %2080 = sbr.rel (%p2078) target = $region76
      $region75: #{tnet_forward.2} parent=5 // pred_region
        %s2081 = ssub.s32 %s15, 2
        // Predicated region
        $region77: #{tnet_forward.2} parent=75 // pred_check
          %p2082 = pneg %p229
        $region78: #{tnet_forward.2} parent=75 // pred_check_branch
          %2084 = sbr.rel (%p2082) target = $region80
        $region79: #{tnet_forward.2} parent=75 // pred_region
          %s2085 = smul.u32 4, %s29
          %p2086 = scmp.lt.s32.totalorder %s28, 1
          %s2087 = scalar_select %p2086, %s28, 1
          %p2088 = scmp.lt.s32.totalorder %s2085, 7
          %s2089 = scalar_select %p2088, %s2085, 7
          %s2090 = smul.addr %s2087, 8
          %s2091 = sadd.s32 %s2089, %s2090
          %s2092 = scalar_lea.vmem %s7, %s2091
        $region80: #{tnet_forward.2} parent=75 // pred_fallthru
          _
      $region76: #{tnet_forward.2} parent=5 // pred_fallthru
        _
    $region6: #{tnet_forward.2} parent=1 // loop_footer
      %s19 = sadd.s32 1, %s15
    $region7: #{tnet_forward.2} parent=1 // loop_footer_branch
      %14 = sbr.rel target = $region3
    $region8: #{tnet_forward.2} parent=1 // loop_exit
      _
    %2093 = vsyncpa [#allocation3], 1
    %s2094 = scalar_lea.sflag [#allocation3], 1
    %2095 = vsyncpa %s2094, 1
    %2096 = vsyncpa [#allocation5], 1

// kernel: tnet_forward.3
$region0: #{tnet_forward.3}
  #allocation0 [shape = 'u32[]', space=smem, size = 0x4, offset = 0x4, fixed_abs, tag = 'smem constant byte address 0x4 - core index']
  #allocation1 [shape = 'u32[72,128]{1,0:T(1,128)}', space=vmem, size = 0x9000, scoped, tag = 'internal scratch']
  %s0 = inlined_call_operand.vmem [shape: f32[2,1024], index: 0, kind: input, shape index: {}]
  %s1 = inlined_call_operand.hbm [shape: bf16[1024,512], index: 1, kind: input, shape index: {}]
  %s2 = inlined_call_operand.vmem [shape: f32[1,512], index: 2, kind: input, shape index: {}]
  %s3 = inlined_call_operand.vmem [shape: bf16[512,256], index: 3, kind: input, shape index: {}]
  %s4 = inlined_call_operand.vmem [shape: f32[1,256], index: 4, kind: input, shape index: {}]
  %s5 = inlined_call_operand.hbm [shape: bf16[256,9], index: 5, kind: input, shape index: {}]
  %s6 = inlined_call_operand.vmem [shape: f32[1,9], index: 6, kind: input, shape index: {}]
  %s7 = inlined_call_operand.vmem [shape: f32[2,9], index: 7, kind: output, shape index: {}]
  %s8 = sld [smem:[#allocation0]]
  $region46: #{tnet_forward.3} parent=0
    _
  %s10 = ssub.s32 1, %s8
  %s11 = scalar_select 0, %s10, %s8
  $region1: #{tnet_forward.3} parent=0
    #allocation2 [shape = 'u8[1048576]{0}', space=vmem, size = 0x100000, scoped, tag = 'input window, operand 1, single buffered']
    #allocation3 [shape = 's32[1]{0}', space=sflag, size = 0x4, scoped, tag = 'scoped memory for tnet_forward.3']
    #allocation4 [shape = 'u8[65536]{0}', space=vmem, size = 0x10000, scoped, tag = 'input window, operand 5, single buffered']
    #allocation5 [shape = 's32[1]{0}', space=sflag, size = 0x4, scoped, tag = 'scoped memory for tnet_forward.3']
    %12 = vsyncpa [#allocation3], 0
    %13 = vsyncpa [#allocation5], 0
    // Predicated region
    $region2: #{tnet_forward.3} parent=1 // pred_check
      _
    $region3: #{tnet_forward.3} parent=1 // pred_check_branch
      %15 = sbr.rel (0) target = $region5
    $region4: #{tnet_forward.3} parent=1 // pred_region
      _
    $region5: #{tnet_forward.3} parent=1 // pred_fallthru
      _
    // Predicated region
    $region6: #{tnet_forward.3} parent=1 // pred_check
      _
    $region7: #{tnet_forward.3} parent=1 // pred_check_branch
      %17 = sbr.rel (0) target = $region9
    $region8: #{tnet_forward.3} parent=1 // pred_region
      %19 = vsyncadd [#allocation3], 0
      %s20 = sshll.u32 %s1, 4
      %s21 = int_to_ptr.hbm [resolvable:$true] %s20
      %s22 = sshll.u32 [#allocation2], 4
      %s23 = int_to_ptr.vmem [resolvable:$true] %s22
      %28 = dma.hbm_to_vmem [thread:$0]  %s21, 32768, %s23, [#allocation3], 256, 256, 16
    $region9: #{tnet_forward.3} parent=1 // pred_fallthru
      _
    // Predicated region
    $region10: #{tnet_forward.3} parent=1 // pred_check
      _
    $region11: #{tnet_forward.3} parent=1 // pred_check_branch
      %30 = sbr.rel (0) target = $region13
    $region12: #{tnet_forward.3} parent=1 // pred_region
      _
    $region13: #{tnet_forward.3} parent=1 // pred_fallthru
      _
    // Predicated region
    $region14: #{tnet_forward.3} parent=1 // pred_check
      _
    $region15: #{tnet_forward.3} parent=1 // pred_check_branch
      %32 = sbr.rel (0) target = $region17
    $region16: #{tnet_forward.3} parent=1 // pred_region
      _
    $region17: #{tnet_forward.3} parent=1 // pred_fallthru
      _
    // Predicated region
    $region18: #{tnet_forward.3} parent=1 // pred_check
      _
    $region19: #{tnet_forward.3} parent=1 // pred_check_branch
      %34 = sbr.rel (0) target = $region21
    $region20: #{tnet_forward.3} parent=1 // pred_region
      _
    $region21: #{tnet_forward.3} parent=1 // pred_fallthru
      _
    // Predicated region
    $region22: #{tnet_forward.3} parent=1 // pred_check
      _
    $region23: #{tnet_forward.3} parent=1 // pred_check_branch
      %36 = sbr.rel (0) target = $region25
    $region24: #{tnet_forward.3} parent=1 // pred_region
      %38 = vsyncadd [#allocation5], 0
      %s39 = sshll.u32 %s5, 4
      %s40 = int_to_ptr.hbm [resolvable:$true] %s39
      %s41 = sshll.u32 [#allocation4], 4
      %s42 = int_to_ptr.vmem [resolvable:$true] %s41
      %47 = dma.hbm_to_vmem [thread:$0]  %s40, 2048, %s42, [#allocation5], 64, 64, 4
    $region25: #{tnet_forward.3} parent=1 // pred_fallthru
      _
    // Predicated region
    $region26: #{tnet_forward.3} parent=1 // pred_check
      _
    $region27: #{tnet_forward.3} parent=1 // pred_check_branch
      %49 = sbr.rel (0) target = $region29
    $region28: #{tnet_forward.3} parent=1 // pred_region
      _
    $region29: #{tnet_forward.3} parent=1 // pred_fallthru
      _
    // Predicated region
    $region30: #{tnet_forward.3} parent=1 // pred_check
      _
    $region31: #{tnet_forward.3} parent=1 // pred_check_branch
      %51 = sbr.rel (0) target = $region33
    $region32: #{tnet_forward.3} parent=1 // pred_region
      %53 = dma.done [#allocation3], 32768
    $region33: #{tnet_forward.3} parent=1 // pred_fallthru
      _
    // Predicated region
    $region34: #{tnet_forward.3} parent=1 // pred_check
      _
    $region35: #{tnet_forward.3} parent=1 // pred_check_branch
      %55 = sbr.rel (0) target = $region37
    $region36: #{tnet_forward.3} parent=1 // pred_region
      %57 = dma.done [#allocation5], 2048
    $region37: #{tnet_forward.3} parent=1 // pred_fallthru
      _
    %v58 = vld [vmem:[%s0] sm:$0xff]
    %v59 = vld [vmem:[%s0 + $0x8] sm:$0xff]
    %62 = vst [vmem:[#allocation1] ss:$4 sm:$0xff] %v58
    %s63 = scalar_lea.vmem [#allocation1], 32
    %64 = vst [vmem:[%s63] ss:$4 sm:$0xff] %v59
    %v65 = vld.sshfl [vmem:[#allocation1] sm:$0xff pattern:$0x73625140]
    %v66 = vld.sshfl [vmem:[#allocation1 + $0x8] sm:$0xff pattern:$0x73625140]
    %v67 = vld.sshfl [vmem:[#allocation1 + $0x10] sm:$0xff pattern:$0x73625140]
    %v68 = vld.sshfl [vmem:[#allocation1 + $0x18] sm:$0xff pattern:$0x73625140]
    %v69 = vld.sshfl [vmem:[#allocation1 + $0x20] sm:$0xff pattern:$0x73625140]
    %v70 = vld.sshfl [vmem:[#allocation1 + $0x28] sm:$0xff pattern:$0x73625140]
    %v71 = vld.sshfl [vmem:[#allocation1 + $0x30] sm:$0xff pattern:$0x73625140]
    %v72 = vld.sshfl [vmem:[#allocation1 + $0x38] sm:$0xff pattern:$0x73625140]
    %v81 = vpack.c.bf16 %v65, %v65
    %v82 = vpack.c.bf16 %v66, %v66
    %v83 = vpack.c.bf16 %v67, %v67
    %v84 = vpack.c.bf16 %v68, %v68
    %v85 = vpack.c.bf16 %v69, %v69
    %v86 = vpack.c.bf16 %v70, %v70
    %v87 = vpack.c.bf16 %v71, %v71
    %v88 = vpack.c.bf16 %v72, %v72
    %v89 = vld [vmem:[#allocation2] sm:$0xff]
    %v90 = vld [vmem:[#allocation2 + $0x8] sm:$0xff]
    %v91 = vld [vmem:[#allocation2 + $0x10] sm:$0xff]
    %v92 = vld [vmem:[#allocation2 + $0x18] sm:$0xff]
    %v93 = vld [vmem:[#allocation2 + $0x20] sm:$0xff]
    %v94 = vld [vmem:[#allocation2 + $0x28] sm:$0xff]
    %v95 = vld [vmem:[#allocation2 + $0x30] sm:$0xff]
    %v96 = vld [vmem:[#allocation2 + $0x38] sm:$0xff]
    %v97 = vld [vmem:[#allocation2 + $0x40] sm:$0xff]
    %v98 = vld [vmem:[#allocation2 + $0x48] sm:$0xff]
    %v99 = vld [vmem:[#allocation2 + $0x50] sm:$0xff]
    %v100 = vld [vmem:[#allocation2 + $0x58] sm:$0xff]
    %v101 = vld [vmem:[#allocation2 + $0x60] sm:$0xff]
    %v102 = vld [vmem:[#allocation2 + $0x68] sm:$0xff]
    %v103 = vld [vmem:[#allocation2 + $0x70] sm:$0xff]
    %v104 = vld [vmem:[#allocation2 + $0x78] sm:$0xff]
    %v105 = vld [vmem:[#allocation2 + $0x80] sm:$0xff]
    %v106 = vld [vmem:[#allocation2 + $0x88] sm:$0xff]
    %v107 = vld [vmem:[#allocation2 + $0x90] sm:$0xff]
    %v108 = vld [vmem:[#allocation2 + $0x98] sm:$0xff]
    %v109 = vld [vmem:[#allocation2 + $0xa0] sm:$0xff]
    %v110 = vld [vmem:[#allocation2 + $0xa8] sm:$0xff]
    %v111 = vld [vmem:[#allocation2 + $0xb0] sm:$0xff]
    %v112 = vld [vmem:[#allocation2 + $0xb8] sm:$0xff]
    %v113 = vld [vmem:[#allocation2 + $0xc0] sm:$0xff]
    %v114 = vld [vmem:[#allocation2 + $0xc8] sm:$0xff]
    %v115 = vld [vmem:[#allocation2 + $0xd0] sm:$0xff]
    %v116 = vld [vmem:[#allocation2 + $0xd8] sm:$0xff]
    %v117 = vld [vmem:[#allocation2 + $0xe0] sm:$0xff]
    %v118 = vld [vmem:[#allocation2 + $0xe8] sm:$0xff]
    %v119 = vld [vmem:[#allocation2 + $0xf0] sm:$0xff]
    %v120 = vld [vmem:[#allocation2 + $0xf8] sm:$0xff]
    %v121 = vld [vmem:[#allocation2 + $0x100] sm:$0xff]
    %v122 = vld [vmem:[#allocation2 + $0x108] sm:$0xff]
    %v123 = vld [vmem:[#allocation2 + $0x110] sm:$0xff]
    %v124 = vld [vmem:[#allocation2 + $0x118] sm:$0xff]
    %v125 = vld [vmem:[#allocation2 + $0x120] sm:$0xff]
    %v126 = vld [vmem:[#allocation2 + $0x128] sm:$0xff]
    %v127 = vld [vmem:[#allocation2 + $0x130] sm:$0xff]
    %v128 = vld [vmem:[#allocation2 + $0x138] sm:$0xff]
    %v129 = vld [vmem:[#allocation2 + $0x140] sm:$0xff]
    %v130 = vld [vmem:[#allocation2 + $0x148] sm:$0xff]
    %v131 = vld [vmem:[#allocation2 + $0x150] sm:$0xff]
    %v132 = vld [vmem:[#allocation2 + $0x158] sm:$0xff]
    %v133 = vld [vmem:[#allocation2 + $0x160] sm:$0xff]
    %v134 = vld [vmem:[#allocation2 + $0x168] sm:$0xff]
    %v135 = vld [vmem:[#allocation2 + $0x170] sm:$0xff]
    %v136 = vld [vmem:[#allocation2 + $0x178] sm:$0xff]
    %v137 = vld [vmem:[#allocation2 + $0x180] sm:$0xff]
    %v138 = vld [vmem:[#allocation2 + $0x188] sm:$0xff]
    %v139 = vld [vmem:[#allocation2 + $0x190] sm:$0xff]
    %v140 = vld [vmem:[#allocation2 + $0x198] sm:$0xff]
    %v141 = vld [vmem:[#allocation2 + $0x1a0] sm:$0xff]
    %v142 = vld [vmem:[#allocation2 + $0x1a8] sm:$0xff]
    %v143 = vld [vmem:[#allocation2 + $0x1b0] sm:$0xff]
    %v144 = vld [vmem:[#allocation2 + $0x1b8] sm:$0xff]
    %v145 = vld [vmem:[#allocation2 + $0x1c0] sm:$0xff]
    %v146 = vld [vmem:[#allocation2 + $0x1c8] sm:$0xff]
    %v147 = vld [vmem:[#allocation2 + $0x1d0] sm:$0xff]
    %v148 = vld [vmem:[#allocation2 + $0x1d8] sm:$0xff]
    %v149 = vld [vmem:[#allocation2 + $0x1e0] sm:$0xff]
    %v150 = vld [vmem:[#allocation2 + $0x1e8] sm:$0xff]
    %v151 = vld [vmem:[#allocation2 + $0x1f0] sm:$0xff]
    %v152 = vld [vmem:[#allocation2 + $0x1f8] sm:$0xff]
    %v153 = vld [vmem:[#allocation2 + $0x200] sm:$0xff]
    %v154 = vld [vmem:[#allocation2 + $0x208] sm:$0xff]
    %v155 = vld [vmem:[#allocation2 + $0x210] sm:$0xff]
    %v156 = vld [vmem:[#allocation2 + $0x218] sm:$0xff]
    %v157 = vld [vmem:[#allocation2 + $0x220] sm:$0xff]
    %v158 = vld [vmem:[#allocation2 + $0x228] sm:$0xff]
    %v159 = vld [vmem:[#allocation2 + $0x230] sm:$0xff]
    %v160 = vld [vmem:[#allocation2 + $0x238] sm:$0xff]
    %v161 = vld [vmem:[#allocation2 + $0x240] sm:$0xff]
    %v162 = vld [vmem:[#allocation2 + $0x248] sm:$0xff]
    %v163 = vld [vmem:[#allocation2 + $0x250] sm:$0xff]
    %v164 = vld [vmem:[#allocation2 + $0x258] sm:$0xff]
    %v165 = vld [vmem:[#allocation2 + $0x260] sm:$0xff]
    %v166 = vld [vmem:[#allocation2 + $0x268] sm:$0xff]
    %v167 = vld [vmem:[#allocation2 + $0x270] sm:$0xff]
    %v168 = vld [vmem:[#allocation2 + $0x278] sm:$0xff]
    %v169 = vld [vmem:[#allocation2 + $0x280] sm:$0xff]
    %v170 = vld [vmem:[#allocation2 + $0x288] sm:$0xff]
    %v171 = vld [vmem:[#allocation2 + $0x290] sm:$0xff]
    %v172 = vld [vmem:[#allocation2 + $0x298] sm:$0xff]
    %v173 = vld [vmem:[#allocation2 + $0x2a0] sm:$0xff]
    %v174 = vld [vmem:[#allocation2 + $0x2a8] sm:$0xff]
    %v175 = vld [vmem:[#allocation2 + $0x2b0] sm:$0xff]
    %v176 = vld [vmem:[#allocation2 + $0x2b8] sm:$0xff]
    %v177 = vld [vmem:[#allocation2 + $0x2c0] sm:$0xff]
    %v178 = vld [vmem:[#allocation2 + $0x2c8] sm:$0xff]
    %v179 = vld [vmem:[#allocation2 + $0x2d0] sm:$0xff]
    %v180 = vld [vmem:[#allocation2 + $0x2d8] sm:$0xff]
    %v181 = vld [vmem:[#allocation2 + $0x2e0] sm:$0xff]
    %v182 = vld [vmem:[#allocation2 + $0x2e8] sm:$0xff]
    %v183 = vld [vmem:[#allocation2 + $0x2f0] sm:$0xff]
    %v184 = vld [vmem:[#allocation2 + $0x2f8] sm:$0xff]
    %v185 = vld [vmem:[#allocation2 + $0x300] sm:$0xff]
    %v186 = vld [vmem:[#allocation2 + $0x308] sm:$0xff]
    %v187 = vld [vmem:[#allocation2 + $0x310] sm:$0xff]
    %v188 = vld [vmem:[#allocation2 + $0x318] sm:$0xff]
    %v189 = vld [vmem:[#allocation2 + $0x320] sm:$0xff]
    %v190 = vld [vmem:[#allocation2 + $0x328] sm:$0xff]
    %v191 = vld [vmem:[#allocation2 + $0x330] sm:$0xff]
    %v192 = vld [vmem:[#allocation2 + $0x338] sm:$0xff]
    %v193 = vld [vmem:[#allocation2 + $0x340] sm:$0xff]
    %v194 = vld [vmem:[#allocation2 + $0x348] sm:$0xff]
    %v195 = vld [vmem:[#allocation2 + $0x350] sm:$0xff]
    %v196 = vld [vmem:[#allocation2 + $0x358] sm:$0xff]
    %v197 = vld [vmem:[#allocation2 + $0x360] sm:$0xff]
    %v198 = vld [vmem:[#allocation2 + $0x368] sm:$0xff]
    %v199 = vld [vmem:[#allocation2 + $0x370] sm:$0xff]
    %v200 = vld [vmem:[#allocation2 + $0x378] sm:$0xff]
    %v201 = vld [vmem:[#allocation2 + $0x380] sm:$0xff]
    %v202 = vld [vmem:[#allocation2 + $0x388] sm:$0xff]
    %v203 = vld [vmem:[#allocation2 + $0x390] sm:$0xff]
    %v204 = vld [vmem:[#allocation2 + $0x398] sm:$0xff]
    %v205 = vld [vmem:[#allocation2 + $0x3a0] sm:$0xff]
    %v206 = vld [vmem:[#allocation2 + $0x3a8] sm:$0xff]
    %v207 = vld [vmem:[#allocation2 + $0x3b0] sm:$0xff]
    %v208 = vld [vmem:[#allocation2 + $0x3b8] sm:$0xff]
    %v209 = vld [vmem:[#allocation2 + $0x3c0] sm:$0xff]
    %v210 = vld [vmem:[#allocation2 + $0x3c8] sm:$0xff]
    %v211 = vld [vmem:[#allocation2 + $0x3d0] sm:$0xff]
    %v212 = vld [vmem:[#allocation2 + $0x3d8] sm:$0xff]
    %v213 = vld [vmem:[#allocation2 + $0x3e0] sm:$0xff]
    %v214 = vld [vmem:[#allocation2 + $0x3e8] sm:$0xff]
    %v215 = vld [vmem:[#allocation2 + $0x3f0] sm:$0xff]
    %v216 = vld [vmem:[#allocation2 + $0x3f8] sm:$0xff]
    %v217 = vld [vmem:[#allocation2 + $0x400] sm:$0xff]
    %v218 = vld [vmem:[#allocation2 + $0x408] sm:$0xff]
    %v219 = vld [vmem:[#allocation2 + $0x410] sm:$0xff]
    %v220 = vld [vmem:[#allocation2 + $0x418] sm:$0xff]
    %v221 = vld [vmem:[#allocation2 + $0x420] sm:$0xff]
    %v222 = vld [vmem:[#allocation2 + $0x428] sm:$0xff]
    %v223 = vld [vmem:[#allocation2 + $0x430] sm:$0xff]
    %v224 = vld [vmem:[#allocation2 + $0x438] sm:$0xff]
    %v225 = vld [vmem:[#allocation2 + $0x440] sm:$0xff]
    %v226 = vld [vmem:[#allocation2 + $0x448] sm:$0xff]
    %v227 = vld [vmem:[#allocation2 + $0x450] sm:$0xff]
    %v228 = vld [vmem:[#allocation2 + $0x458] sm:$0xff]
    %v229 = vld [vmem:[#allocation2 + $0x460] sm:$0xff]
    %v230 = vld [vmem:[#allocation2 + $0x468] sm:$0xff]
    %v231 = vld [vmem:[#allocation2 + $0x470] sm:$0xff]
    %v232 = vld [vmem:[#allocation2 + $0x478] sm:$0xff]
    %v233 = vld [vmem:[#allocation2 + $0x480] sm:$0xff]
    %v234 = vld [vmem:[#allocation2 + $0x488] sm:$0xff]
    %v235 = vld [vmem:[#allocation2 + $0x490] sm:$0xff]
    %v236 = vld [vmem:[#allocation2 + $0x498] sm:$0xff]
    %v237 = vld [vmem:[#allocation2 + $0x4a0] sm:$0xff]
    %v238 = vld [vmem:[#allocation2 + $0x4a8] sm:$0xff]
    %v239 = vld [vmem:[#allocation2 + $0x4b0] sm:$0xff]
    %v240 = vld [vmem:[#allocation2 + $0x4b8] sm:$0xff]
    %v241 = vld [vmem:[#allocation2 + $0x4c0] sm:$0xff]
    %v242 = vld [vmem:[#allocation2 + $0x4c8] sm:$0xff]
    %v243 = vld [vmem:[#allocation2 + $0x4d0] sm:$0xff]
    %v244 = vld [vmem:[#allocation2 + $0x4d8] sm:$0xff]
    %v245 = vld [vmem:[#allocation2 + $0x4e0] sm:$0xff]
    %v246 = vld [vmem:[#allocation2 + $0x4e8] sm:$0xff]
    %v247 = vld [vmem:[#allocation2 + $0x4f0] sm:$0xff]
    %v248 = vld [vmem:[#allocation2 + $0x4f8] sm:$0xff]
    %v249 = vld [vmem:[#allocation2 + $0x500] sm:$0xff]
    %v250 = vld [vmem:[#allocation2 + $0x508] sm:$0xff]
    %v251 = vld [vmem:[#allocation2 + $0x510] sm:$0xff]
    %v252 = vld [vmem:[#allocation2 + $0x518] sm:$0xff]
    %v253 = vld [vmem:[#allocation2 + $0x520] sm:$0xff]
    %v254 = vld [vmem:[#allocation2 + $0x528] sm:$0xff]
    %v255 = vld [vmem:[#allocation2 + $0x530] sm:$0xff]
    %v256 = vld [vmem:[#allocation2 + $0x538] sm:$0xff]
    %v257 = vld [vmem:[#allocation2 + $0x540] sm:$0xff]
    %v258 = vld [vmem:[#allocation2 + $0x548] sm:$0xff]
    %v259 = vld [vmem:[#allocation2 + $0x550] sm:$0xff]
    %v260 = vld [vmem:[#allocation2 + $0x558] sm:$0xff]
    %v261 = vld [vmem:[#allocation2 + $0x560] sm:$0xff]
    %v262 = vld [vmem:[#allocation2 + $0x568] sm:$0xff]
    %v263 = vld [vmem:[#allocation2 + $0x570] sm:$0xff]
    %v264 = vld [vmem:[#allocation2 + $0x578] sm:$0xff]
    %v265 = vld [vmem:[#allocation2 + $0x580] sm:$0xff]
    %v266 = vld [vmem:[#allocation2 + $0x588] sm:$0xff]
    %v267 = vld [vmem:[#allocation2 + $0x590] sm:$0xff]
    %v268 = vld [vmem:[#allocation2 + $0x598] sm:$0xff]
    %v269 = vld [vmem:[#allocation2 + $0x5a0] sm:$0xff]
    %v270 = vld [vmem:[#allocation2 + $0x5a8] sm:$0xff]
    %v271 = vld [vmem:[#allocation2 + $0x5b0] sm:$0xff]
    %v272 = vld [vmem:[#allocation2 + $0x5b8] sm:$0xff]
    %v273 = vld [vmem:[#allocation2 + $0x5c0] sm:$0xff]
    %v274 = vld [vmem:[#allocation2 + $0x5c8] sm:$0xff]
    %v275 = vld [vmem:[#allocation2 + $0x5d0] sm:$0xff]
    %v276 = vld [vmem:[#allocation2 + $0x5d8] sm:$0xff]
    %v277 = vld [vmem:[#allocation2 + $0x5e0] sm:$0xff]
    %v278 = vld [vmem:[#allocation2 + $0x5e8] sm:$0xff]
    %v279 = vld [vmem:[#allocation2 + $0x5f0] sm:$0xff]
    %v280 = vld [vmem:[#allocation2 + $0x5f8] sm:$0xff]
    %v281 = vld [vmem:[#allocation2 + $0x600] sm:$0xff]
    %v282 = vld [vmem:[#allocation2 + $0x608] sm:$0xff]
    %v283 = vld [vmem:[#allocation2 + $0x610] sm:$0xff]
    %v284 = vld [vmem:[#allocation2 + $0x618] sm:$0xff]
    %v285 = vld [vmem:[#allocation2 + $0x620] sm:$0xff]
    %v286 = vld [vmem:[#allocation2 + $0x628] sm:$0xff]
    %v287 = vld [vmem:[#allocation2 + $0x630] sm:$0xff]
    %v288 = vld [vmem:[#allocation2 + $0x638] sm:$0xff]
    %v289 = vld [vmem:[#allocation2 + $0x640] sm:$0xff]
    %v290 = vld [vmem:[#allocation2 + $0x648] sm:$0xff]
    %v291 = vld [vmem:[#allocation2 + $0x650] sm:$0xff]
    %v292 = vld [vmem:[#allocation2 + $0x658] sm:$0xff]
    %v293 = vld [vmem:[#allocation2 + $0x660] sm:$0xff]
    %v294 = vld [vmem:[#allocation2 + $0x668] sm:$0xff]
    %v295 = vld [vmem:[#allocation2 + $0x670] sm:$0xff]
    %v296 = vld [vmem:[#allocation2 + $0x678] sm:$0xff]
    %v297 = vld [vmem:[#allocation2 + $0x680] sm:$0xff]
    %v298 = vld [vmem:[#allocation2 + $0x688] sm:$0xff]
    %v299 = vld [vmem:[#allocation2 + $0x690] sm:$0xff]
    %v300 = vld [vmem:[#allocation2 + $0x698] sm:$0xff]
    %v301 = vld [vmem:[#allocation2 + $0x6a0] sm:$0xff]
    %v302 = vld [vmem:[#allocation2 + $0x6a8] sm:$0xff]
    %v303 = vld [vmem:[#allocation2 + $0x6b0] sm:$0xff]
    %v304 = vld [vmem:[#allocation2 + $0x6b8] sm:$0xff]
    %v305 = vld [vmem:[#allocation2 + $0x6c0] sm:$0xff]
    %v306 = vld [vmem:[#allocation2 + $0x6c8] sm:$0xff]
    %v307 = vld [vmem:[#allocation2 + $0x6d0] sm:$0xff]
    %v308 = vld [vmem:[#allocation2 + $0x6d8] sm:$0xff]
    %v309 = vld [vmem:[#allocation2 + $0x6e0] sm:$0xff]
    %v310 = vld [vmem:[#allocation2 + $0x6e8] sm:$0xff]
    %v311 = vld [vmem:[#allocation2 + $0x6f0] sm:$0xff]
    %v312 = vld [vmem:[#allocation2 + $0x6f8] sm:$0xff]
    %v313 = vld [vmem:[#allocation2 + $0x700] sm:$0xff]
    %v314 = vld [vmem:[#allocation2 + $0x708] sm:$0xff]
    %v315 = vld [vmem:[#allocation2 + $0x710] sm:$0xff]
    %v316 = vld [vmem:[#allocation2 + $0x718] sm:$0xff]
    %v317 = vld [vmem:[#allocation2 + $0x720] sm:$0xff]
    %v318 = vld [vmem:[#allocation2 + $0x728] sm:$0xff]
    %v319 = vld [vmem:[#allocation2 + $0x730] sm:$0xff]
    %v320 = vld [vmem:[#allocation2 + $0x738] sm:$0xff]
    %v321 = vld [vmem:[#allocation2 + $0x740] sm:$0xff]
    %v322 = vld [vmem:[#allocation2 + $0x748] sm:$0xff]
    %v323 = vld [vmem:[#allocation2 + $0x750] sm:$0xff]
    %v324 = vld [vmem:[#allocation2 + $0x758] sm:$0xff]
    %v325 = vld [vmem:[#allocation2 + $0x760] sm:$0xff]
    %v326 = vld [vmem:[#allocation2 + $0x768] sm:$0xff]
    %v327 = vld [vmem:[#allocation2 + $0x770] sm:$0xff]
    %v328 = vld [vmem:[#allocation2 + $0x778] sm:$0xff]
    %v329 = vld [vmem:[#allocation2 + $0x780] sm:$0xff]
    %v330 = vld [vmem:[#allocation2 + $0x788] sm:$0xff]
    %v331 = vld [vmem:[#allocation2 + $0x790] sm:$0xff]
    %v332 = vld [vmem:[#allocation2 + $0x798] sm:$0xff]
    %v333 = vld [vmem:[#allocation2 + $0x7a0] sm:$0xff]
    %v334 = vld [vmem:[#allocation2 + $0x7a8] sm:$0xff]
    %v335 = vld [vmem:[#allocation2 + $0x7b0] sm:$0xff]
    %v336 = vld [vmem:[#allocation2 + $0x7b8] sm:$0xff]
    %v337 = vld [vmem:[#allocation2 + $0x7c0] sm:$0xff]
    %v338 = vld [vmem:[#allocation2 + $0x7c8] sm:$0xff]
    %v339 = vld [vmem:[#allocation2 + $0x7d0] sm:$0xff]
    %v340 = vld [vmem:[#allocation2 + $0x7d8] sm:$0xff]
    %v341 = vld [vmem:[#allocation2 + $0x7e0] sm:$0xff]
    %v342 = vld [vmem:[#allocation2 + $0x7e8] sm:$0xff]
    %v343 = vld [vmem:[#allocation2 + $0x7f0] sm:$0xff]
    %v344 = vld [vmem:[#allocation2 + $0x7f8] sm:$0xff]
    %v345 = vld [vmem:[%s2] sm:$0xf]
    %v347 = vperm.slane %v345, 0
    %v348 = vperm.slane %v345, 1
    %v349 = vperm.slane %v345, 2
    %v350 = vperm.slane %v345, 3
    %v611 = vunpack.c.l.b16 %v89
    %v612 = vunpack.c.h.b16 %v89
    %v613 = vunpack.c.l.b16 %v90
    %v614 = vunpack.c.h.b16 %v90
    %v615 = vunpack.c.l.b16 %v91
    %v616 = vunpack.c.h.b16 %v91
    %v617 = vunpack.c.l.b16 %v92
    %v618 = vunpack.c.h.b16 %v92
    %v619 = vunpack.c.l.b16 %v93
    %v620 = vunpack.c.h.b16 %v93
    %v621 = vunpack.c.l.b16 %v94
    %v622 = vunpack.c.h.b16 %v94
    %v623 = vunpack.c.l.b16 %v95
    %v624 = vunpack.c.h.b16 %v95
    %v625 = vunpack.c.l.b16 %v96
    %v626 = vunpack.c.h.b16 %v96
    %v627 = vunpack.c.l.b16 %v97
    %v628 = vunpack.c.h.b16 %v97
    %v629 = vunpack.c.l.b16 %v98
    %v630 = vunpack.c.h.b16 %v98
    %v631 = vunpack.c.l.b16 %v99
    %v632 = vunpack.c.h.b16 %v99
    %v633 = vunpack.c.l.b16 %v100
    %v634 = vunpack.c.h.b16 %v100
    %v635 = vunpack.c.l.b16 %v101
    %v636 = vunpack.c.h.b16 %v101
    %v637 = vunpack.c.l.b16 %v102
    %v638 = vunpack.c.h.b16 %v102
    %v639 = vunpack.c.l.b16 %v103
    %v640 = vunpack.c.h.b16 %v103
    %v641 = vunpack.c.l.b16 %v104
    %v642 = vunpack.c.h.b16 %v104
    %v643 = vunpack.c.l.b16 %v105
    %v644 = vunpack.c.h.b16 %v105
    %v645 = vunpack.c.l.b16 %v106
    %v646 = vunpack.c.h.b16 %v106
    %v647 = vunpack.c.l.b16 %v107
    %v648 = vunpack.c.h.b16 %v107
    %v649 = vunpack.c.l.b16 %v108
    %v650 = vunpack.c.h.b16 %v108
    %v651 = vunpack.c.l.b16 %v109
    %v652 = vunpack.c.h.b16 %v109
    %v653 = vunpack.c.l.b16 %v110
    %v654 = vunpack.c.h.b16 %v110
    %v655 = vunpack.c.l.b16 %v111
    %v656 = vunpack.c.h.b16 %v111
    %v657 = vunpack.c.l.b16 %v112
    %v658 = vunpack.c.h.b16 %v112
    %v659 = vunpack.c.l.b16 %v113
    %v660 = vunpack.c.h.b16 %v113
    %v661 = vunpack.c.l.b16 %v114
    %v662 = vunpack.c.h.b16 %v114
    %v663 = vunpack.c.l.b16 %v115
    %v664 = vunpack.c.h.b16 %v115
    %v665 = vunpack.c.l.b16 %v116
    %v666 = vunpack.c.h.b16 %v116
    %v667 = vunpack.c.l.b16 %v117
    %v668 = vunpack.c.h.b16 %v117
    %v669 = vunpack.c.l.b16 %v118
    %v670 = vunpack.c.h.b16 %v118
    %v671 = vunpack.c.l.b16 %v119
    %v672 = vunpack.c.h.b16 %v119
    %v673 = vunpack.c.l.b16 %v120
    %v674 = vunpack.c.h.b16 %v120
    %v675 = vunpack.c.l.b16 %v121
    %v676 = vunpack.c.h.b16 %v121
    %v677 = vunpack.c.l.b16 %v122
    %v678 = vunpack.c.h.b16 %v122
    %v679 = vunpack.c.l.b16 %v123
    %v680 = vunpack.c.h.b16 %v123
    %v681 = vunpack.c.l.b16 %v124
    %v682 = vunpack.c.h.b16 %v124
    %v683 = vunpack.c.l.b16 %v125
    %v684 = vunpack.c.h.b16 %v125
    %v685 = vunpack.c.l.b16 %v126
    %v686 = vunpack.c.h.b16 %v126
    %v687 = vunpack.c.l.b16 %v127
    %v688 = vunpack.c.h.b16 %v127
    %v689 = vunpack.c.l.b16 %v128
    %v690 = vunpack.c.h.b16 %v128
    %v691 = vunpack.c.l.b16 %v129
    %v692 = vunpack.c.h.b16 %v129
    %v693 = vunpack.c.l.b16 %v130
    %v694 = vunpack.c.h.b16 %v130
    %v695 = vunpack.c.l.b16 %v131
    %v696 = vunpack.c.h.b16 %v131
    %v697 = vunpack.c.l.b16 %v132
    %v698 = vunpack.c.h.b16 %v132
    %v699 = vunpack.c.l.b16 %v133
    %v700 = vunpack.c.h.b16 %v133
    %v701 = vunpack.c.l.b16 %v134
    %v702 = vunpack.c.h.b16 %v134
    %v703 = vunpack.c.l.b16 %v135
    %v704 = vunpack.c.h.b16 %v135
    %v705 = vunpack.c.l.b16 %v136
    %v706 = vunpack.c.h.b16 %v136
    %v707 = vunpack.c.l.b16 %v137
    %v708 = vunpack.c.h.b16 %v137
    %v709 = vunpack.c.l.b16 %v138
    %v710 = vunpack.c.h.b16 %v138
    %v711 = vunpack.c.l.b16 %v139
    %v712 = vunpack.c.h.b16 %v139
    %v713 = vunpack.c.l.b16 %v140
    %v714 = vunpack.c.h.b16 %v140
    %v715 = vunpack.c.l.b16 %v141
    %v716 = vunpack.c.h.b16 %v141
    %v717 = vunpack.c.l.b16 %v142
    %v718 = vunpack.c.h.b16 %v142
    %v719 = vunpack.c.l.b16 %v143
    %v720 = vunpack.c.h.b16 %v143
    %v721 = vunpack.c.l.b16 %v144
    %v722 = vunpack.c.h.b16 %v144
    %v723 = vunpack.c.l.b16 %v145
    %v724 = vunpack.c.h.b16 %v145
    %v725 = vunpack.c.l.b16 %v146
    %v726 = vunpack.c.h.b16 %v146
    %v727 = vunpack.c.l.b16 %v147
    %v728 = vunpack.c.h.b16 %v147
    %v729 = vunpack.c.l.b16 %v148
    %v730 = vunpack.c.h.b16 %v148
    %v731 = vunpack.c.l.b16 %v149
    %v732 = vunpack.c.h.b16 %v149
    %v733 = vunpack.c.l.b16 %v150
    %v734 = vunpack.c.h.b16 %v150
    %v735 = vunpack.c.l.b16 %v151
    %v736 = vunpack.c.h.b16 %v151
    %v737 = vunpack.c.l.b16 %v152
    %v738 = vunpack.c.h.b16 %v152
    %v739 = vunpack.c.l.b16 %v153
    %v740 = vunpack.c.h.b16 %v153
    %v741 = vunpack.c.l.b16 %v154
    %v742 = vunpack.c.h.b16 %v154
    %v743 = vunpack.c.l.b16 %v155
    %v744 = vunpack.c.h.b16 %v155
    %v745 = vunpack.c.l.b16 %v156
    %v746 = vunpack.c.h.b16 %v156
    %v747 = vunpack.c.l.b16 %v157
    %v748 = vunpack.c.h.b16 %v157
    %v749 = vunpack.c.l.b16 %v158
    %v750 = vunpack.c.h.b16 %v158
    %v751 = vunpack.c.l.b16 %v159
    %v752 = vunpack.c.h.b16 %v159
    %v753 = vunpack.c.l.b16 %v160
    %v754 = vunpack.c.h.b16 %v160
    %v755 = vunpack.c.l.b16 %v161
    %v756 = vunpack.c.h.b16 %v161
    %v757 = vunpack.c.l.b16 %v162
    %v758 = vunpack.c.h.b16 %v162
    %v759 = vunpack.c.l.b16 %v163
    %v760 = vunpack.c.h.b16 %v163
    %v761 = vunpack.c.l.b16 %v164
    %v762 = vunpack.c.h.b16 %v164
    %v763 = vunpack.c.l.b16 %v165
    %v764 = vunpack.c.h.b16 %v165
    %v765 = vunpack.c.l.b16 %v166
    %v766 = vunpack.c.h.b16 %v166
    %v767 = vunpack.c.l.b16 %v167
    %v768 = vunpack.c.h.b16 %v167
    %v769 = vunpack.c.l.b16 %v168
    %v770 = vunpack.c.h.b16 %v168
    %v771 = vunpack.c.l.b16 %v169
    %v772 = vunpack.c.h.b16 %v169
    %v773 = vunpack.c.l.b16 %v170
    %v774 = vunpack.c.h.b16 %v170
    %v775 = vunpack.c.l.b16 %v171
    %v776 = vunpack.c.h.b16 %v171
    %v777 = vunpack.c.l.b16 %v172
    %v778 = vunpack.c.h.b16 %v172
    %v779 = vunpack.c.l.b16 %v173
    %v780 = vunpack.c.h.b16 %v173
    %v781 = vunpack.c.l.b16 %v174
    %v782 = vunpack.c.h.b16 %v174
    %v783 = vunpack.c.l.b16 %v175
    %v784 = vunpack.c.h.b16 %v175
    %v785 = vunpack.c.l.b16 %v176
    %v786 = vunpack.c.h.b16 %v176
    %v787 = vunpack.c.l.b16 %v177
    %v788 = vunpack.c.h.b16 %v177
    %v789 = vunpack.c.l.b16 %v178
    %v790 = vunpack.c.h.b16 %v178
    %v791 = vunpack.c.l.b16 %v179
    %v792 = vunpack.c.h.b16 %v179
    %v793 = vunpack.c.l.b16 %v180
    %v794 = vunpack.c.h.b16 %v180
    %v795 = vunpack.c.l.b16 %v181
    %v796 = vunpack.c.h.b16 %v181
    %v797 = vunpack.c.l.b16 %v182
    %v798 = vunpack.c.h.b16 %v182
    %v799 = vunpack.c.l.b16 %v183
    %v800 = vunpack.c.h.b16 %v183
    %v801 = vunpack.c.l.b16 %v184
    %v802 = vunpack.c.h.b16 %v184
    %v803 = vunpack.c.l.b16 %v185
    %v804 = vunpack.c.h.b16 %v185
    %v805 = vunpack.c.l.b16 %v186
    %v806 = vunpack.c.h.b16 %v186
    %v807 = vunpack.c.l.b16 %v187
    %v808 = vunpack.c.h.b16 %v187
    %v809 = vunpack.c.l.b16 %v188
    %v810 = vunpack.c.h.b16 %v188
    %v811 = vunpack.c.l.b16 %v189
    %v812 = vunpack.c.h.b16 %v189
    %v813 = vunpack.c.l.b16 %v190
    %v814 = vunpack.c.h.b16 %v190
    %v815 = vunpack.c.l.b16 %v191
    %v816 = vunpack.c.h.b16 %v191
    %v817 = vunpack.c.l.b16 %v192
    %v818 = vunpack.c.h.b16 %v192
    %v819 = vunpack.c.l.b16 %v193
    %v820 = vunpack.c.h.b16 %v193
    %v821 = vunpack.c.l.b16 %v194
    %v822 = vunpack.c.h.b16 %v194
    %v823 = vunpack.c.l.b16 %v195
    %v824 = vunpack.c.h.b16 %v195
    %v825 = vunpack.c.l.b16 %v196
    %v826 = vunpack.c.h.b16 %v196
    %v827 = vunpack.c.l.b16 %v197
    %v828 = vunpack.c.h.b16 %v197
    %v829 = vunpack.c.l.b16 %v198
    %v830 = vunpack.c.h.b16 %v198
    %v831 = vunpack.c.l.b16 %v199
    %v832 = vunpack.c.h.b16 %v199
    %v833 = vunpack.c.l.b16 %v200
    %v834 = vunpack.c.h.b16 %v200
    %v835 = vunpack.c.l.b16 %v201
    %v836 = vunpack.c.h.b16 %v201
    %v837 = vunpack.c.l.b16 %v202
    %v838 = vunpack.c.h.b16 %v202
    %v839 = vunpack.c.l.b16 %v203
    %v840 = vunpack.c.h.b16 %v203
    %v841 = vunpack.c.l.b16 %v204
    %v842 = vunpack.c.h.b16 %v204
    %v843 = vunpack.c.l.b16 %v205
    %v844 = vunpack.c.h.b16 %v205
    %v845 = vunpack.c.l.b16 %v206
    %v846 = vunpack.c.h.b16 %v206
    %v847 = vunpack.c.l.b16 %v207
    %v848 = vunpack.c.h.b16 %v207
    %v849 = vunpack.c.l.b16 %v208
    %v850 = vunpack.c.h.b16 %v208
    %v851 = vunpack.c.l.b16 %v209
    %v852 = vunpack.c.h.b16 %v209
    %v853 = vunpack.c.l.b16 %v210
    %v854 = vunpack.c.h.b16 %v210
    %v855 = vunpack.c.l.b16 %v211
    %v856 = vunpack.c.h.b16 %v211
    %v857 = vunpack.c.l.b16 %v212
    %v858 = vunpack.c.h.b16 %v212
    %v859 = vunpack.c.l.b16 %v213
    %v860 = vunpack.c.h.b16 %v213
    %v861 = vunpack.c.l.b16 %v214
    %v862 = vunpack.c.h.b16 %v214
    %v863 = vunpack.c.l.b16 %v215
    %v864 = vunpack.c.h.b16 %v215
    %v865 = vunpack.c.l.b16 %v216
    %v866 = vunpack.c.h.b16 %v216
    %v867 = vunpack.c.l.b16 %v217
    %v868 = vunpack.c.h.b16 %v217
    %v869 = vunpack.c.l.b16 %v218
    %v870 = vunpack.c.h.b16 %v218
    %v871 = vunpack.c.l.b16 %v219
    %v872 = vunpack.c.h.b16 %v219
    %v873 = vunpack.c.l.b16 %v220
    %v874 = vunpack.c.h.b16 %v220
    %v875 = vunpack.c.l.b16 %v221
    %v876 = vunpack.c.h.b16 %v221
    %v877 = vunpack.c.l.b16 %v222
    %v878 = vunpack.c.h.b16 %v222
    %v879 = vunpack.c.l.b16 %v223
    %v880 = vunpack.c.h.b16 %v223
    %v881 = vunpack.c.l.b16 %v224
    %v882 = vunpack.c.h.b16 %v224
    %v883 = vunpack.c.l.b16 %v225
    %v884 = vunpack.c.h.b16 %v225
    %v885 = vunpack.c.l.b16 %v226
    %v886 = vunpack.c.h.b16 %v226
    %v887 = vunpack.c.l.b16 %v227
    %v888 = vunpack.c.h.b16 %v227
    %v889 = vunpack.c.l.b16 %v228
    %v890 = vunpack.c.h.b16 %v228
    %v891 = vunpack.c.l.b16 %v229
    %v892 = vunpack.c.h.b16 %v229
    %v893 = vunpack.c.l.b16 %v230
    %v894 = vunpack.c.h.b16 %v230
    %v895 = vunpack.c.l.b16 %v231
    %v896 = vunpack.c.h.b16 %v231
    %v897 = vunpack.c.l.b16 %v232
    %v898 = vunpack.c.h.b16 %v232
    %v899 = vunpack.c.l.b16 %v233
    %v900 = vunpack.c.h.b16 %v233
    %v901 = vunpack.c.l.b16 %v234
    %v902 = vunpack.c.h.b16 %v234
    %v903 = vunpack.c.l.b16 %v235
    %v904 = vunpack.c.h.b16 %v235
    %v905 = vunpack.c.l.b16 %v236
    %v906 = vunpack.c.h.b16 %v236
    %v907 = vunpack.c.l.b16 %v237
    %v908 = vunpack.c.h.b16 %v237
    %v909 = vunpack.c.l.b16 %v238
    %v910 = vunpack.c.h.b16 %v238
    %v911 = vunpack.c.l.b16 %v239
    %v912 = vunpack.c.h.b16 %v239
    %v913 = vunpack.c.l.b16 %v240
    %v914 = vunpack.c.h.b16 %v240
    %v915 = vunpack.c.l.b16 %v241
    %v916 = vunpack.c.h.b16 %v241
    %v917 = vunpack.c.l.b16 %v242
    %v918 = vunpack.c.h.b16 %v242
    %v919 = vunpack.c.l.b16 %v243
    %v920 = vunpack.c.h.b16 %v243
    %v921 = vunpack.c.l.b16 %v244
    %v922 = vunpack.c.h.b16 %v244
    %v923 = vunpack.c.l.b16 %v245
    %v924 = vunpack.c.h.b16 %v245
    %v925 = vunpack.c.l.b16 %v246
    %v926 = vunpack.c.h.b16 %v246
    %v927 = vunpack.c.l.b16 %v247
    %v928 = vunpack.c.h.b16 %v247
    %v929 = vunpack.c.l.b16 %v248
    %v930 = vunpack.c.h.b16 %v248
    %v931 = vunpack.c.l.b16 %v249
    %v932 = vunpack.c.h.b16 %v249
    %v933 = vunpack.c.l.b16 %v250
    %v934 = vunpack.c.h.b16 %v250
    %v935 = vunpack.c.l.b16 %v251
    %v936 = vunpack.c.h.b16 %v251
    %v937 = vunpack.c.l.b16 %v252
    %v938 = vunpack.c.h.b16 %v252
    %v939 = vunpack.c.l.b16 %v253
    %v940 = vunpack.c.h.b16 %v253
    %v941 = vunpack.c.l.b16 %v254
    %v942 = vunpack.c.h.b16 %v254
    %v943 = vunpack.c.l.b16 %v255
    %v944 = vunpack.c.h.b16 %v255
    %v945 = vunpack.c.l.b16 %v256
    %v946 = vunpack.c.h.b16 %v256
    %v947 = vunpack.c.l.b16 %v257
    %v948 = vunpack.c.h.b16 %v257
    %v949 = vunpack.c.l.b16 %v258
    %v950 = vunpack.c.h.b16 %v258
    %v951 = vunpack.c.l.b16 %v259
    %v952 = vunpack.c.h.b16 %v259
    %v953 = vunpack.c.l.b16 %v260
    %v954 = vunpack.c.h.b16 %v260
    %v955 = vunpack.c.l.b16 %v261
    %v956 = vunpack.c.h.b16 %v261
    %v957 = vunpack.c.l.b16 %v262
    %v958 = vunpack.c.h.b16 %v262
    %v959 = vunpack.c.l.b16 %v263
    %v960 = vunpack.c.h.b16 %v263
    %v961 = vunpack.c.l.b16 %v264
    %v962 = vunpack.c.h.b16 %v264
    %v963 = vunpack.c.l.b16 %v265
    %v964 = vunpack.c.h.b16 %v265
    %v965 = vunpack.c.l.b16 %v266
    %v966 = vunpack.c.h.b16 %v266
    %v967 = vunpack.c.l.b16 %v267
    %v968 = vunpack.c.h.b16 %v267
    %v969 = vunpack.c.l.b16 %v268
    %v970 = vunpack.c.h.b16 %v268
    %v971 = vunpack.c.l.b16 %v269
    %v972 = vunpack.c.h.b16 %v269
    %v973 = vunpack.c.l.b16 %v270
    %v974 = vunpack.c.h.b16 %v270
    %v975 = vunpack.c.l.b16 %v271
    %v976 = vunpack.c.h.b16 %v271
    %v977 = vunpack.c.l.b16 %v272
    %v978 = vunpack.c.h.b16 %v272
    %v979 = vunpack.c.l.b16 %v273
    %v980 = vunpack.c.h.b16 %v273
    %v981 = vunpack.c.l.b16 %v274
    %v982 = vunpack.c.h.b16 %v274
    %v983 = vunpack.c.l.b16 %v275
    %v984 = vunpack.c.h.b16 %v275
    %v985 = vunpack.c.l.b16 %v276
    %v986 = vunpack.c.h.b16 %v276
    %v987 = vunpack.c.l.b16 %v277
    %v988 = vunpack.c.h.b16 %v277
    %v989 = vunpack.c.l.b16 %v278
    %v990 = vunpack.c.h.b16 %v278
    %v991 = vunpack.c.l.b16 %v279
    %v992 = vunpack.c.h.b16 %v279
    %v993 = vunpack.c.l.b16 %v280
    %v994 = vunpack.c.h.b16 %v280
    %v995 = vunpack.c.l.b16 %v281
    %v996 = vunpack.c.h.b16 %v281
    %v997 = vunpack.c.l.b16 %v282
    %v998 = vunpack.c.h.b16 %v282
    %v999 = vunpack.c.l.b16 %v283
    %v1000 = vunpack.c.h.b16 %v283
    %v1001 = vunpack.c.l.b16 %v284
    %v1002 = vunpack.c.h.b16 %v284
    %v1003 = vunpack.c.l.b16 %v285
    %v1004 = vunpack.c.h.b16 %v285
    %v1005 = vunpack.c.l.b16 %v286
    %v1006 = vunpack.c.h.b16 %v286
    %v1007 = vunpack.c.l.b16 %v287
    %v1008 = vunpack.c.h.b16 %v287
    %v1009 = vunpack.c.l.b16 %v288
    %v1010 = vunpack.c.h.b16 %v288
    %v1011 = vunpack.c.l.b16 %v289
    %v1012 = vunpack.c.h.b16 %v289
    %v1013 = vunpack.c.l.b16 %v290
    %v1014 = vunpack.c.h.b16 %v290
    %v1015 = vunpack.c.l.b16 %v291
    %v1016 = vunpack.c.h.b16 %v291
    %v1017 = vunpack.c.l.b16 %v292
    %v1018 = vunpack.c.h.b16 %v292
    %v1019 = vunpack.c.l.b16 %v293
    %v1020 = vunpack.c.h.b16 %v293
    %v1021 = vunpack.c.l.b16 %v294
    %v1022 = vunpack.c.h.b16 %v294
    %v1023 = vunpack.c.l.b16 %v295
    %v1024 = vunpack.c.h.b16 %v295
    %v1025 = vunpack.c.l.b16 %v296
    %v1026 = vunpack.c.h.b16 %v296
    %v1027 = vunpack.c.l.b16 %v297
    %v1028 = vunpack.c.h.b16 %v297
    %v1029 = vunpack.c.l.b16 %v298
    %v1030 = vunpack.c.h.b16 %v298
    %v1031 = vunpack.c.l.b16 %v299
    %v1032 = vunpack.c.h.b16 %v299
    %v1033 = vunpack.c.l.b16 %v300
    %v1034 = vunpack.c.h.b16 %v300
    %v1035 = vunpack.c.l.b16 %v301
    %v1036 = vunpack.c.h.b16 %v301
    %v1037 = vunpack.c.l.b16 %v302
    %v1038 = vunpack.c.h.b16 %v302
    %v1039 = vunpack.c.l.b16 %v303
    %v1040 = vunpack.c.h.b16 %v303
    %v1041 = vunpack.c.l.b16 %v304
    %v1042 = vunpack.c.h.b16 %v304
    %v1043 = vunpack.c.l.b16 %v305
    %v1044 = vunpack.c.h.b16 %v305
    %v1045 = vunpack.c.l.b16 %v306
    %v1046 = vunpack.c.h.b16 %v306
    %v1047 = vunpack.c.l.b16 %v307
    %v1048 = vunpack.c.h.b16 %v307
    %v1049 = vunpack.c.l.b16 %v308
    %v1050 = vunpack.c.h.b16 %v308
    %v1051 = vunpack.c.l.b16 %v309
    %v1052 = vunpack.c.h.b16 %v309
    %v1053 = vunpack.c.l.b16 %v310
    %v1054 = vunpack.c.h.b16 %v310
    %v1055 = vunpack.c.l.b16 %v311
    %v1056 = vunpack.c.h.b16 %v311
    %v1057 = vunpack.c.l.b16 %v312
    %v1058 = vunpack.c.h.b16 %v312
    %v1059 = vunpack.c.l.b16 %v313
    %v1060 = vunpack.c.h.b16 %v313
    %v1061 = vunpack.c.l.b16 %v314
    %v1062 = vunpack.c.h.b16 %v314
    %v1063 = vunpack.c.l.b16 %v315
    %v1064 = vunpack.c.h.b16 %v315
    %v1065 = vunpack.c.l.b16 %v316
    %v1066 = vunpack.c.h.b16 %v316
    %v1067 = vunpack.c.l.b16 %v317
    %v1068 = vunpack.c.h.b16 %v317
    %v1069 = vunpack.c.l.b16 %v318
    %v1070 = vunpack.c.h.b16 %v318
    %v1071 = vunpack.c.l.b16 %v319
    %v1072 = vunpack.c.h.b16 %v319
    %v1073 = vunpack.c.l.b16 %v320
    %v1074 = vunpack.c.h.b16 %v320
    %v1075 = vunpack.c.l.b16 %v321
    %v1076 = vunpack.c.h.b16 %v321
    %v1077 = vunpack.c.l.b16 %v322
    %v1078 = vunpack.c.h.b16 %v322
    %v1079 = vunpack.c.l.b16 %v323
    %v1080 = vunpack.c.h.b16 %v323
    %v1081 = vunpack.c.l.b16 %v324
    %v1082 = vunpack.c.h.b16 %v324
    %v1083 = vunpack.c.l.b16 %v325
    %v1084 = vunpack.c.h.b16 %v325
    %v1085 = vunpack.c.l.b16 %v326
    %v1086 = vunpack.c.h.b16 %v326
    %v1087 = vunpack.c.l.b16 %v327
    %v1088 = vunpack.c.h.b16 %v327
    %v1089 = vunpack.c.l.b16 %v328
    %v1090 = vunpack.c.h.b16 %v328
    %v1091 = vunpack.c.l.b16 %v329
    %v1092 = vunpack.c.h.b16 %v329
    %v1093 = vunpack.c.l.b16 %v330
    %v1094 = vunpack.c.h.b16 %v330
    %v1095 = vunpack.c.l.b16 %v331
    %v1096 = vunpack.c.h.b16 %v331
    %v1097 = vunpack.c.l.b16 %v332
    %v1098 = vunpack.c.h.b16 %v332
    %v1099 = vunpack.c.l.b16 %v333
    %v1100 = vunpack.c.h.b16 %v333
    %v1101 = vunpack.c.l.b16 %v334
    %v1102 = vunpack.c.h.b16 %v334
    %v1103 = vunpack.c.l.b16 %v335
    %v1104 = vunpack.c.h.b16 %v335
    %v1105 = vunpack.c.l.b16 %v336
    %v1106 = vunpack.c.h.b16 %v336
    %v1107 = vunpack.c.l.b16 %v337
    %v1108 = vunpack.c.h.b16 %v337
    %v1109 = vunpack.c.l.b16 %v338
    %v1110 = vunpack.c.h.b16 %v338
    %v1111 = vunpack.c.l.b16 %v339
    %v1112 = vunpack.c.h.b16 %v339
    %v1113 = vunpack.c.l.b16 %v340
    %v1114 = vunpack.c.h.b16 %v340
    %v1115 = vunpack.c.l.b16 %v341
    %v1116 = vunpack.c.h.b16 %v341
    %v1117 = vunpack.c.l.b16 %v342
    %v1118 = vunpack.c.h.b16 %v342
    %v1119 = vunpack.c.l.b16 %v343
    %v1120 = vunpack.c.h.b16 %v343
    %v1121 = vunpack.c.l.b16 %v344
    %v1122 = vunpack.c.h.b16 %v344
    %v1123 = vpack.c.b16 %v615, %v611
    %v1124 = vpack.c.b16 %v616, %v612
    %v1125 = vpack.c.b16 %v617, %v613
    %v1126 = vpack.c.b16 %v618, %v614
    %v1127 = vpack.c.b16 %v623, %v619
    %v1128 = vpack.c.b16 %v624, %v620
    %v1129 = vpack.c.b16 %v625, %v621
    %v1130 = vpack.c.b16 %v626, %v622
    %v1131 = vpack.c.b16 %v631, %v627
    %v1132 = vpack.c.b16 %v632, %v628
    %v1133 = vpack.c.b16 %v633, %v629
    %v1134 = vpack.c.b16 %v634, %v630
    %v1135 = vpack.c.b16 %v639, %v635
    %v1136 = vpack.c.b16 %v640, %v636
    %v1137 = vpack.c.b16 %v641, %v637
    %v1138 = vpack.c.b16 %v642, %v638
    %v1139 = vpack.c.b16 %v647, %v643
    %v1140 = vpack.c.b16 %v648, %v644
    %v1141 = vpack.c.b16 %v649, %v645
    %v1142 = vpack.c.b16 %v650, %v646
    %v1143 = vpack.c.b16 %v655, %v651
    %v1144 = vpack.c.b16 %v656, %v652
    %v1145 = vpack.c.b16 %v657, %v653
    %v1146 = vpack.c.b16 %v658, %v654
    %v1147 = vpack.c.b16 %v663, %v659
    %v1148 = vpack.c.b16 %v664, %v660
    %v1149 = vpack.c.b16 %v665, %v661
    %v1150 = vpack.c.b16 %v666, %v662
    %v1151 = vpack.c.b16 %v671, %v667
    %v1152 = vpack.c.b16 %v672, %v668
    %v1153 = vpack.c.b16 %v673, %v669
    %v1154 = vpack.c.b16 %v674, %v670
    %v1155 = vpack.c.b16 %v679, %v675
    %v1156 = vpack.c.b16 %v680, %v676
    %v1157 = vpack.c.b16 %v681, %v677
    %v1158 = vpack.c.b16 %v682, %v678
    %v1159 = vpack.c.b16 %v687, %v683
    %v1160 = vpack.c.b16 %v688, %v684
    %v1161 = vpack.c.b16 %v689, %v685
    %v1162 = vpack.c.b16 %v690, %v686
    %v1163 = vpack.c.b16 %v695, %v691
    %v1164 = vpack.c.b16 %v696, %v692
    %v1165 = vpack.c.b16 %v697, %v693
    %v1166 = vpack.c.b16 %v698, %v694
    %v1167 = vpack.c.b16 %v703, %v699
    %v1168 = vpack.c.b16 %v704, %v700
    %v1169 = vpack.c.b16 %v705, %v701
    %v1170 = vpack.c.b16 %v706, %v702
    %v1171 = vpack.c.b16 %v711, %v707
    %v1172 = vpack.c.b16 %v712, %v708
    %v1173 = vpack.c.b16 %v713, %v709
    %v1174 = vpack.c.b16 %v714, %v710
    %v1175 = vpack.c.b16 %v719, %v715
    %v1176 = vpack.c.b16 %v720, %v716
    %v1177 = vpack.c.b16 %v721, %v717
    %v1178 = vpack.c.b16 %v722, %v718
    %v1179 = vpack.c.b16 %v727, %v723
    %v1180 = vpack.c.b16 %v728, %v724
    %v1181 = vpack.c.b16 %v729, %v725
    %v1182 = vpack.c.b16 %v730, %v726
    %v1183 = vpack.c.b16 %v735, %v731
    %v1184 = vpack.c.b16 %v736, %v732
    %v1185 = vpack.c.b16 %v737, %v733
    %v1186 = vpack.c.b16 %v738, %v734
    %v1187 = vpack.c.b16 %v743, %v739
    %v1188 = vpack.c.b16 %v744, %v740
    %v1189 = vpack.c.b16 %v745, %v741
    %v1190 = vpack.c.b16 %v746, %v742
    %v1191 = vpack.c.b16 %v751, %v747
    %v1192 = vpack.c.b16 %v752, %v748
    %v1193 = vpack.c.b16 %v753, %v749
    %v1194 = vpack.c.b16 %v754, %v750
    %v1195 = vpack.c.b16 %v759, %v755
    %v1196 = vpack.c.b16 %v760, %v756
    %v1197 = vpack.c.b16 %v761, %v757
    %v1198 = vpack.c.b16 %v762, %v758
    %v1199 = vpack.c.b16 %v767, %v763
    %v1200 = vpack.c.b16 %v768, %v764
    %v1201 = vpack.c.b16 %v769, %v765
    %v1202 = vpack.c.b16 %v770, %v766
    %v1203 = vpack.c.b16 %v775, %v771
    %v1204 = vpack.c.b16 %v776, %v772
    %v1205 = vpack.c.b16 %v777, %v773
    %v1206 = vpack.c.b16 %v778, %v774
    %v1207 = vpack.c.b16 %v783, %v779
    %v1208 = vpack.c.b16 %v784, %v780
    %v1209 = vpack.c.b16 %v785, %v781
    %v1210 = vpack.c.b16 %v786, %v782
    %v1211 = vpack.c.b16 %v791, %v787
    %v1212 = vpack.c.b16 %v792, %v788
    %v1213 = vpack.c.b16 %v793, %v789
    %v1214 = vpack.c.b16 %v794, %v790
    %v1215 = vpack.c.b16 %v799, %v795
    %v1216 = vpack.c.b16 %v800, %v796
    %v1217 = vpack.c.b16 %v801, %v797
    %v1218 = vpack.c.b16 %v802, %v798
    %v1219 = vpack.c.b16 %v807, %v803
    %v1220 = vpack.c.b16 %v808, %v804
    %v1221 = vpack.c.b16 %v809, %v805
    %v1222 = vpack.c.b16 %v810, %v806
    %v1223 = vpack.c.b16 %v815, %v811
    %v1224 = vpack.c.b16 %v816, %v812
    %v1225 = vpack.c.b16 %v817, %v813
    %v1226 = vpack.c.b16 %v818, %v814
    %v1227 = vpack.c.b16 %v823, %v819
    %v1228 = vpack.c.b16 %v824, %v820
    %v1229 = vpack.c.b16 %v825, %v821
    %v1230 = vpack.c.b16 %v826, %v822
    %v1231 = vpack.c.b16 %v831, %v827
    %v1232 = vpack.c.b16 %v832, %v828
    %v1233 = vpack.c.b16 %v833, %v829
    %v1234 = vpack.c.b16 %v834, %v830
    %v1235 = vpack.c.b16 %v839, %v835
    %v1236 = vpack.c.b16 %v840, %v836
    %v1237 = vpack.c.b16 %v841, %v837
    %v1238 = vpack.c.b16 %v842, %v838
    %v1239 = vpack.c.b16 %v847, %v843
    %v1240 = vpack.c.b16 %v848, %v844
    %v1241 = vpack.c.b16 %v849, %v845
    %v1242 = vpack.c.b16 %v850, %v846
    %v1243 = vpack.c.b16 %v855, %v851
    %v1244 = vpack.c.b16 %v856, %v852
    %v1245 = vpack.c.b16 %v857, %v853
    %v1246 = vpack.c.b16 %v858, %v854
    %v1247 = vpack.c.b16 %v863, %v859
    %v1248 = vpack.c.b16 %v864, %v860
    %v1249 = vpack.c.b16 %v865, %v861
    %v1250 = vpack.c.b16 %v866, %v862
    %v1251 = vpack.c.b16 %v871, %v867
    %v1252 = vpack.c.b16 %v872, %v868
    %v1253 = vpack.c.b16 %v873, %v869
    %v1254 = vpack.c.b16 %v874, %v870
    %v1255 = vpack.c.b16 %v879, %v875
    %v1256 = vpack.c.b16 %v880, %v876
    %v1257 = vpack.c.b16 %v881, %v877
    %v1258 = vpack.c.b16 %v882, %v878
    %v1259 = vpack.c.b16 %v887, %v883
    %v1260 = vpack.c.b16 %v888, %v884
    %v1261 = vpack.c.b16 %v889, %v885
    %v1262 = vpack.c.b16 %v890, %v886
    %v1263 = vpack.c.b16 %v895, %v891
    %v1264 = vpack.c.b16 %v896, %v892
    %v1265 = vpack.c.b16 %v897, %v893
    %v1266 = vpack.c.b16 %v898, %v894
    %v1267 = vpack.c.b16 %v903, %v899
    %v1268 = vpack.c.b16 %v904, %v900
    %v1269 = vpack.c.b16 %v905, %v901
    %v1270 = vpack.c.b16 %v906, %v902
    %v1271 = vpack.c.b16 %v911, %v907
    %v1272 = vpack.c.b16 %v912, %v908
    %v1273 = vpack.c.b16 %v913, %v909
    %v1274 = vpack.c.b16 %v914, %v910
    %v1275 = vpack.c.b16 %v919, %v915
    %v1276 = vpack.c.b16 %v920, %v916
    %v1277 = vpack.c.b16 %v921, %v917
    %v1278 = vpack.c.b16 %v922, %v918
    %v1279 = vpack.c.b16 %v927, %v923
    %v1280 = vpack.c.b16 %v928, %v924
    %v1281 = vpack.c.b16 %v929, %v925
    %v1282 = vpack.c.b16 %v930, %v926
    %v1283 = vpack.c.b16 %v935, %v931
    %v1284 = vpack.c.b16 %v936, %v932
    %v1285 = vpack.c.b16 %v937, %v933
    %v1286 = vpack.c.b16 %v938, %v934
    %v1287 = vpack.c.b16 %v943, %v939
    %v1288 = vpack.c.b16 %v944, %v940
    %v1289 = vpack.c.b16 %v945, %v941
    %v1290 = vpack.c.b16 %v946, %v942
    %v1291 = vpack.c.b16 %v951, %v947
    %v1292 = vpack.c.b16 %v952, %v948
    %v1293 = vpack.c.b16 %v953, %v949
    %v1294 = vpack.c.b16 %v954, %v950
    %v1295 = vpack.c.b16 %v959, %v955
    %v1296 = vpack.c.b16 %v960, %v956
    %v1297 = vpack.c.b16 %v961, %v957
    %v1298 = vpack.c.b16 %v962, %v958
    %v1299 = vpack.c.b16 %v967, %v963
    %v1300 = vpack.c.b16 %v968, %v964
    %v1301 = vpack.c.b16 %v969, %v965
    %v1302 = vpack.c.b16 %v970, %v966
    %v1303 = vpack.c.b16 %v975, %v971
    %v1304 = vpack.c.b16 %v976, %v972
    %v1305 = vpack.c.b16 %v977, %v973
    %v1306 = vpack.c.b16 %v978, %v974
    %v1307 = vpack.c.b16 %v983, %v979
    %v1308 = vpack.c.b16 %v984, %v980
    %v1309 = vpack.c.b16 %v985, %v981
    %v1310 = vpack.c.b16 %v986, %v982
    %v1311 = vpack.c.b16 %v991, %v987
    %v1312 = vpack.c.b16 %v992, %v988
    %v1313 = vpack.c.b16 %v993, %v989
    %v1314 = vpack.c.b16 %v994, %v990
    %v1315 = vpack.c.b16 %v999, %v995
    %v1316 = vpack.c.b16 %v1000, %v996
    %v1317 = vpack.c.b16 %v1001, %v997
    %v1318 = vpack.c.b16 %v1002, %v998
    %v1319 = vpack.c.b16 %v1007, %v1003
    %v1320 = vpack.c.b16 %v1008, %v1004
    %v1321 = vpack.c.b16 %v1009, %v1005
    %v1322 = vpack.c.b16 %v1010, %v1006
    %v1323 = vpack.c.b16 %v1015, %v1011
    %v1324 = vpack.c.b16 %v1016, %v1012
    %v1325 = vpack.c.b16 %v1017, %v1013
    %v1326 = vpack.c.b16 %v1018, %v1014
    %v1327 = vpack.c.b16 %v1023, %v1019
    %v1328 = vpack.c.b16 %v1024, %v1020
    %v1329 = vpack.c.b16 %v1025, %v1021
    %v1330 = vpack.c.b16 %v1026, %v1022
    %v1331 = vpack.c.b16 %v1031, %v1027
    %v1332 = vpack.c.b16 %v1032, %v1028
    %v1333 = vpack.c.b16 %v1033, %v1029
    %v1334 = vpack.c.b16 %v1034, %v1030
    %v1335 = vpack.c.b16 %v1039, %v1035
    %v1336 = vpack.c.b16 %v1040, %v1036
    %v1337 = vpack.c.b16 %v1041, %v1037
    %v1338 = vpack.c.b16 %v1042, %v1038
    %v1339 = vpack.c.b16 %v1047, %v1043
    %v1340 = vpack.c.b16 %v1048, %v1044
    %v1341 = vpack.c.b16 %v1049, %v1045
    %v1342 = vpack.c.b16 %v1050, %v1046
    %v1343 = vpack.c.b16 %v1055, %v1051
    %v1344 = vpack.c.b16 %v1056, %v1052
    %v1345 = vpack.c.b16 %v1057, %v1053
    %v1346 = vpack.c.b16 %v1058, %v1054
    %v1347 = vpack.c.b16 %v1063, %v1059
    %v1348 = vpack.c.b16 %v1064, %v1060
    %v1349 = vpack.c.b16 %v1065, %v1061
    %v1350 = vpack.c.b16 %v1066, %v1062
    %v1351 = vpack.c.b16 %v1071, %v1067
    %v1352 = vpack.c.b16 %v1072, %v1068
    %v1353 = vpack.c.b16 %v1073, %v1069
    %v1354 = vpack.c.b16 %v1074, %v1070
    %v1355 = vpack.c.b16 %v1079, %v1075
    %v1356 = vpack.c.b16 %v1080, %v1076
    %v1357 = vpack.c.b16 %v1081, %v1077
    %v1358 = vpack.c.b16 %v1082, %v1078
    %v1359 = vpack.c.b16 %v1087, %v1083
    %v1360 = vpack.c.b16 %v1088, %v1084
    %v1361 = vpack.c.b16 %v1089, %v1085
    %v1362 = vpack.c.b16 %v1090, %v1086
    %v1363 = vpack.c.b16 %v1095, %v1091
    %v1364 = vpack.c.b16 %v1096, %v1092
    %v1365 = vpack.c.b16 %v1097, %v1093
    %v1366 = vpack.c.b16 %v1098, %v1094
    %v1367 = vpack.c.b16 %v1103, %v1099
    %v1368 = vpack.c.b16 %v1104, %v1100
    %v1369 = vpack.c.b16 %v1105, %v1101
    %v1370 = vpack.c.b16 %v1106, %v1102
    %v1371 = vpack.c.b16 %v1111, %v1107
    %v1372 = vpack.c.b16 %v1112, %v1108
    %v1373 = vpack.c.b16 %v1113, %v1109
    %v1374 = vpack.c.b16 %v1114, %v1110
    %v1375 = vpack.c.b16 %v1119, %v1115
    %v1376 = vpack.c.b16 %v1120, %v1116
    %v1377 = vpack.c.b16 %v1121, %v1117
    %v1378 = vpack.c.b16 %v1122, %v1118
    %1635 = vmatpush.bf16.msra.mxu0 %v1151
    %1636 = vmatpush.bf16.msra.mxu0 %v1147
    %1637 = vmatpush.bf16.msra.mxu0 %v1143
    %1638 = vmatpush.bf16.msra.mxu0 %v1139
    %1639 = vmatpush.bf16.msra.mxu0 %v1135
    %1640 = vmatpush.bf16.msra.mxu0 %v1131
    %1641 = vmatpush.bf16.msra.mxu0 %v1127
    %1642 = vmatpush.bf16.msra.mxu0 %v1123
    %1643 = vmatmul.bf16.gmra.mxu0 %v81
    %v1644 = vpop.f32.mrf.mxu0
    %v1645 = vadd.f32 %v347, %v1644
    %v1646 = vpop.f32.mrf.mxu0
    %1647 = vdwg.mxu0
    %1648 = vmatpush.bf16.msra.mxu0 %v1183
    %1649 = vmatpush.bf16.msra.mxu0 %v1179
    %1650 = vmatpush.bf16.msra.mxu0 %v1175
    %1651 = vmatpush.bf16.msra.mxu0 %v1171
    %1652 = vmatpush.bf16.msra.mxu0 %v1167
    %1653 = vmatpush.bf16.msra.mxu0 %v1163
    %1654 = vmatpush.bf16.msra.mxu0 %v1159
    %1655 = vmatpush.bf16.msra.mxu0 %v1155
    %1656 = vmatmul.bf16.gmra.mxu0 %v82
    %v1657 = vpop.f32.mrf.mxu0
    %v1658 = vadd.f32 %v1645, %v1657
    %v1659 = vpop.f32.mrf.mxu0
    %1660 = vdwg.mxu0
    %1661 = vmatpush.bf16.msra.mxu0 %v1215
    %1662 = vmatpush.bf16.msra.mxu0 %v1211
    %1663 = vmatpush.bf16.msra.mxu0 %v1207
    %1664 = vmatpush.bf16.msra.mxu0 %v1203
    %1665 = vmatpush.bf16.msra.mxu0 %v1199
    %1666 = vmatpush.bf16.msra.mxu0 %v1195
    %1667 = vmatpush.bf16.msra.mxu0 %v1191
    %1668 = vmatpush.bf16.msra.mxu0 %v1187
    %1669 = vmatmul.bf16.gmra.mxu0 %v83
    %v1670 = vpop.f32.mrf.mxu0
    %v1671 = vadd.f32 %v1658, %v1670
    %v1672 = vpop.f32.mrf.mxu0
    %1673 = vdwg.mxu0
    %1674 = vmatpush.bf16.msra.mxu0 %v1247
    %1675 = vmatpush.bf16.msra.mxu0 %v1243
    %1676 = vmatpush.bf16.msra.mxu0 %v1239
    %1677 = vmatpush.bf16.msra.mxu0 %v1235
    %1678 = vmatpush.bf16.msra.mxu0 %v1231
    %1679 = vmatpush.bf16.msra.mxu0 %v1227
    %1680 = vmatpush.bf16.msra.mxu0 %v1223
    %1681 = vmatpush.bf16.msra.mxu0 %v1219
    %1682 = vmatmul.bf16.gmra.mxu0 %v84
    %v1683 = vpop.f32.mrf.mxu0
    %v1684 = vadd.f32 %v1671, %v1683
    %v1685 = vpop.f32.mrf.mxu0
    %1686 = vdwg.mxu0
    %1687 = vmatpush.bf16.msra.mxu0 %v1279
    %1688 = vmatpush.bf16.msra.mxu0 %v1275
    %1689 = vmatpush.bf16.msra.mxu0 %v1271
    %1690 = vmatpush.bf16.msra.mxu0 %v1267
    %1691 = vmatpush.bf16.msra.mxu0 %v1263
    %1692 = vmatpush.bf16.msra.mxu0 %v1259
    %1693 = vmatpush.bf16.msra.mxu0 %v1255
    %1694 = vmatpush.bf16.msra.mxu0 %v1251
    %1695 = vmatmul.bf16.gmra.mxu0 %v85
    %v1696 = vpop.f32.mrf.mxu0
    %v1697 = vadd.f32 %v1684, %v1696
    %v1698 = vpop.f32.mrf.mxu0
    %1699 = vdwg.mxu0
    %1700 = vmatpush.bf16.msra.mxu0 %v1311
    %1701 = vmatpush.bf16.msra.mxu0 %v1307
    %1702 = vmatpush.bf16.msra.mxu0 %v1303
    %1703 = vmatpush.bf16.msra.mxu0 %v1299
    %1704 = vmatpush.bf16.msra.mxu0 %v1295
    %1705 = vmatpush.bf16.msra.mxu0 %v1291
    %1706 = vmatpush.bf16.msra.mxu0 %v1287
    %1707 = vmatpush.bf16.msra.mxu0 %v1283
    %1708 = vmatmul.bf16.gmra.mxu0 %v86
    %v1709 = vpop.f32.mrf.mxu0
    %v1710 = vadd.f32 %v1697, %v1709
    %v1711 = vpop.f32.mrf.mxu0
    %1712 = vdwg.mxu0
    %1713 = vmatpush.bf16.msra.mxu0 %v1343
    %1714 = vmatpush.bf16.msra.mxu0 %v1339
    %1715 = vmatpush.bf16.msra.mxu0 %v1335
    %1716 = vmatpush.bf16.msra.mxu0 %v1331
    %1717 = vmatpush.bf16.msra.mxu0 %v1327
    %1718 = vmatpush.bf16.msra.mxu0 %v1323
    %1719 = vmatpush.bf16.msra.mxu0 %v1319
    %1720 = vmatpush.bf16.msra.mxu0 %v1315
    %1721 = vmatmul.bf16.gmra.mxu0 %v87
    %v1722 = vpop.f32.mrf.mxu0
    %v1723 = vadd.f32 %v1710, %v1722
    %v1724 = vpop.f32.mrf.mxu0
    %1725 = vdwg.mxu0
    %1726 = vmatpush.bf16.msra.mxu0 %v1375
    %1727 = vmatpush.bf16.msra.mxu0 %v1371
    %1728 = vmatpush.bf16.msra.mxu0 %v1367
    %1729 = vmatpush.bf16.msra.mxu0 %v1363
    %1730 = vmatpush.bf16.msra.mxu0 %v1359
    %1731 = vmatpush.bf16.msra.mxu0 %v1355
    %1732 = vmatpush.bf16.msra.mxu0 %v1351
    %1733 = vmatpush.bf16.msra.mxu0 %v1347
    %1734 = vmatmul.bf16.gmra.mxu0 %v88
    %v1735 = vpop.f32.mrf.mxu0
    %v1736 = vadd.f32 %v1723, %v1735
    %v1737 = vpop.f32.mrf.mxu0
    %1738 = vdwg.mxu0
    %1739 = vmatpush.bf16.msra.mxu0 %v1152
    %1740 = vmatpush.bf16.msra.mxu0 %v1148
    %1741 = vmatpush.bf16.msra.mxu0 %v1144
    %1742 = vmatpush.bf16.msra.mxu0 %v1140
    %1743 = vmatpush.bf16.msra.mxu0 %v1136
    %1744 = vmatpush.bf16.msra.mxu0 %v1132
    %1745 = vmatpush.bf16.msra.mxu0 %v1128
    %1746 = vmatpush.bf16.msra.mxu0 %v1124
    %1747 = vmatmul.bf16.gmra.mxu0 %v81
    %v1748 = vpop.f32.mrf.mxu0
    %v1749 = vadd.f32 %v348, %v1748
    %v1750 = vpop.f32.mrf.mxu0
    %1751 = vdwg.mxu0
    %1752 = vmatpush.bf16.msra.mxu0 %v1184
    %1753 = vmatpush.bf16.msra.mxu0 %v1180
    %1754 = vmatpush.bf16.msra.mxu0 %v1176
    %1755 = vmatpush.bf16.msra.mxu0 %v1172
    %1756 = vmatpush.bf16.msra.mxu0 %v1168
    %1757 = vmatpush.bf16.msra.mxu0 %v1164
    %1758 = vmatpush.bf16.msra.mxu0 %v1160
    %1759 = vmatpush.bf16.msra.mxu0 %v1156
    %1760 = vmatmul.bf16.gmra.mxu0 %v82
    %v1761 = vpop.f32.mrf.mxu0
    %v1762 = vadd.f32 %v1749, %v1761
    %v1763 = vpop.f32.mrf.mxu0
    %1764 = vdwg.mxu0
    %1765 = vmatpush.bf16.msra.mxu0 %v1216
    %1766 = vmatpush.bf16.msra.mxu0 %v1212
    %1767 = vmatpush.bf16.msra.mxu0 %v1208
    %1768 = vmatpush.bf16.msra.mxu0 %v1204
    %1769 = vmatpush.bf16.msra.mxu0 %v1200
    %1770 = vmatpush.bf16.msra.mxu0 %v1196
    %1771 = vmatpush.bf16.msra.mxu0 %v1192
    %1772 = vmatpush.bf16.msra.mxu0 %v1188
    %1773 = vmatmul.bf16.gmra.mxu0 %v83
    %v1774 = vpop.f32.mrf.mxu0
    %v1775 = vadd.f32 %v1762, %v1774
    %v1776 = vpop.f32.mrf.mxu0
    %1777 = vdwg.mxu0
    %1778 = vmatpush.bf16.msra.mxu0 %v1248
    %1779 = vmatpush.bf16.msra.mxu0 %v1244
    %1780 = vmatpush.bf16.msra.mxu0 %v1240
    %1781 = vmatpush.bf16.msra.mxu0 %v1236
    %1782 = vmatpush.bf16.msra.mxu0 %v1232
    %1783 = vmatpush.bf16.msra.mxu0 %v1228
    %1784 = vmatpush.bf16.msra.mxu0 %v1224
    %1785 = vmatpush.bf16.msra.mxu0 %v1220
    %1786 = vmatmul.bf16.gmra.mxu0 %v84
    %v1787 = vpop.f32.mrf.mxu0
    %v1788 = vadd.f32 %v1775, %v1787
    %v1789 = vpop.f32.mrf.mxu0
    %1790 = vdwg.mxu0
    %1791 = vmatpush.bf16.msra.mxu0 %v1280
    %1792 = vmatpush.bf16.msra.mxu0 %v1276
    %1793 = vmatpush.bf16.msra.mxu0 %v1272
    %1794 = vmatpush.bf16.msra.mxu0 %v1268
    %1795 = vmatpush.bf16.msra.mxu0 %v1264
    %1796 = vmatpush.bf16.msra.mxu0 %v1260
    %1797 = vmatpush.bf16.msra.mxu0 %v1256
    %1798 = vmatpush.bf16.msra.mxu0 %v1252
    %1799 = vmatmul.bf16.gmra.mxu0 %v85
    %v1800 = vpop.f32.mrf.mxu0
    %v1801 = vadd.f32 %v1788, %v1800
    %v1802 = vpop.f32.mrf.mxu0
    %1803 = vdwg.mxu0
    %1804 = vmatpush.bf16.msra.mxu0 %v1312
    %1805 = vmatpush.bf16.msra.mxu0 %v1308
    %1806 = vmatpush.bf16.msra.mxu0 %v1304
    %1807 = vmatpush.bf16.msra.mxu0 %v1300
    %1808 = vmatpush.bf16.msra.mxu0 %v1296
    %1809 = vmatpush.bf16.msra.mxu0 %v1292
    %1810 = vmatpush.bf16.msra.mxu0 %v1288
    %1811 = vmatpush.bf16.msra.mxu0 %v1284
    %1812 = vmatmul.bf16.gmra.mxu0 %v86
    %v1813 = vpop.f32.mrf.mxu0
    %v1814 = vadd.f32 %v1801, %v1813
    %v1815 = vpop.f32.mrf.mxu0
    %1816 = vdwg.mxu0
    %1817 = vmatpush.bf16.msra.mxu0 %v1344
    %1818 = vmatpush.bf16.msra.mxu0 %v1340
    %1819 = vmatpush.bf16.msra.mxu0 %v1336
    %1820 = vmatpush.bf16.msra.mxu0 %v1332
    %1821 = vmatpush.bf16.msra.mxu0 %v1328
    %1822 = vmatpush.bf16.msra.mxu0 %v1324
    %1823 = vmatpush.bf16.msra.mxu0 %v1320
    %1824 = vmatpush.bf16.msra.mxu0 %v1316
    %1825 = vmatmul.bf16.gmra.mxu0 %v87
    %v1826 = vpop.f32.mrf.mxu0
    %v1827 = vadd.f32 %v1814, %v1826
    %v1828 = vpop.f32.mrf.mxu0
    %1829 = vdwg.mxu0
    %1830 = vmatpush.bf16.msra.mxu0 %v1376
    %1831 = vmatpush.bf16.msra.mxu0 %v1372
    %1832 = vmatpush.bf16.msra.mxu0 %v1368
    %1833 = vmatpush.bf16.msra.mxu0 %v1364
    %1834 = vmatpush.bf16.msra.mxu0 %v1360
    %1835 = vmatpush.bf16.msra.mxu0 %v1356
    %1836 = vmatpush.bf16.msra.mxu0 %v1352
    %1837 = vmatpush.bf16.msra.mxu0 %v1348
    %1838 = vmatmul.bf16.gmra.mxu0 %v88
    %v1839 = vpop.f32.mrf.mxu0
    %v1840 = vadd.f32 %v1827, %v1839
    %v1841 = vpop.f32.mrf.mxu0
    %1842 = vdwg.mxu0
    %1843 = vmatpush.bf16.msra.mxu0 %v1153
    %1844 = vmatpush.bf16.msra.mxu0 %v1149
    %1845 = vmatpush.bf16.msra.mxu0 %v1145
    %1846 = vmatpush.bf16.msra.mxu0 %v1141
    %1847 = vmatpush.bf16.msra.mxu0 %v1137
    %1848 = vmatpush.bf16.msra.mxu0 %v1133
    %1849 = vmatpush.bf16.msra.mxu0 %v1129
    %1850 = vmatpush.bf16.msra.mxu0 %v1125
    %1851 = vmatmul.bf16.gmra.mxu0 %v81
    %v1852 = vpop.f32.mrf.mxu0
    %v1853 = vadd.f32 %v349, %v1852
    %v1854 = vpop.f32.mrf.mxu0
    %1855 = vdwg.mxu0
    %1856 = vmatpush.bf16.msra.mxu0 %v1185
    %1857 = vmatpush.bf16.msra.mxu0 %v1181
    %1858 = vmatpush.bf16.msra.mxu0 %v1177
    %1859 = vmatpush.bf16.msra.mxu0 %v1173
    %1860 = vmatpush.bf16.msra.mxu0 %v1169
    %1861 = vmatpush.bf16.msra.mxu0 %v1165
    %1862 = vmatpush.bf16.msra.mxu0 %v1161
    %1863 = vmatpush.bf16.msra.mxu0 %v1157
    %1864 = vmatmul.bf16.gmra.mxu0 %v82
    %v1865 = vpop.f32.mrf.mxu0
    %v1866 = vadd.f32 %v1853, %v1865
    %v1867 = vpop.f32.mrf.mxu0
    %1868 = vdwg.mxu0
    %1869 = vmatpush.bf16.msra.mxu0 %v1217
    %1870 = vmatpush.bf16.msra.mxu0 %v1213
    %1871 = vmatpush.bf16.msra.mxu0 %v1209
    %1872 = vmatpush.bf16.msra.mxu0 %v1205
    %1873 = vmatpush.bf16.msra.mxu0 %v1201
    %1874 = vmatpush.bf16.msra.mxu0 %v1197
    %1875 = vmatpush.bf16.msra.mxu0 %v1193
    %1876 = vmatpush.bf16.msra.mxu0 %v1189
    %1877 = vmatmul.bf16.gmra.mxu0 %v83
    %v1878 = vpop.f32.mrf.mxu0
    %v1879 = vadd.f32 %v1866, %v1878
    %v1880 = vpop.f32.mrf.mxu0
    %1881 = vdwg.mxu0
    %1882 = vmatpush.bf16.msra.mxu0 %v1249
    %1883 = vmatpush.bf16.msra.mxu0 %v1245
    %1884 = vmatpush.bf16.msra.mxu0 %v1241
    %1885 = vmatpush.bf16.msra.mxu0 %v1237
    %1886 = vmatpush.bf16.msra.mxu0 %v1233
    %1887 = vmatpush.bf16.msra.mxu0 %v1229
    %1888 = vmatpush.bf16.msra.mxu0 %v1225
    %1889 = vmatpush.bf16.msra.mxu0 %v1221
    %1890 = vmatmul.bf16.gmra.mxu0 %v84
    %v1891 = vpop.f32.mrf.mxu0
    %v1892 = vadd.f32 %v1879, %v1891
    %v1893 = vpop.f32.mrf.mxu0
    %1894 = vdwg.mxu0
    %1895 = vmatpush.bf16.msra.mxu0 %v1281
    %1896 = vmatpush.bf16.msra.mxu0 %v1277
    %1897 = vmatpush.bf16.msra.mxu0 %v1273
    %1898 = vmatpush.bf16.msra.mxu0 %v1269
    %1899 = vmatpush.bf16.msra.mxu0 %v1265
    %1900 = vmatpush.bf16.msra.mxu0 %v1261
    %1901 = vmatpush.bf16.msra.mxu0 %v1257
    %1902 = vmatpush.bf16.msra.mxu0 %v1253
    %1903 = vmatmul.bf16.gmra.mxu0 %v85
    %v1904 = vpop.f32.mrf.mxu0
    %v1905 = vadd.f32 %v1892, %v1904
    %v1906 = vpop.f32.mrf.mxu0
    %1907 = vdwg.mxu0
    %1908 = vmatpush.bf16.msra.mxu0 %v1313
    %1909 = vmatpush.bf16.msra.mxu0 %v1309
    %1910 = vmatpush.bf16.msra.mxu0 %v1305
    %1911 = vmatpush.bf16.msra.mxu0 %v1301
    %1912 = vmatpush.bf16.msra.mxu0 %v1297
    %1913 = vmatpush.bf16.msra.mxu0 %v1293
    %1914 = vmatpush.bf16.msra.mxu0 %v1289
    %1915 = vmatpush.bf16.msra.mxu0 %v1285
    %1916 = vmatmul.bf16.gmra.mxu0 %v86
    %v1917 = vpop.f32.mrf.mxu0
    %v1918 = vadd.f32 %v1905, %v1917
    %v1919 = vpop.f32.mrf.mxu0
    %1920 = vdwg.mxu0
    %1921 = vmatpush.bf16.msra.mxu0 %v1345
    %1922 = vmatpush.bf16.msra.mxu0 %v1341
    %1923 = vmatpush.bf16.msra.mxu0 %v1337
    %1924 = vmatpush.bf16.msra.mxu0 %v1333
    %1925 = vmatpush.bf16.msra.mxu0 %v1329
    %1926 = vmatpush.bf16.msra.mxu0 %v1325
    %1927 = vmatpush.bf16.msra.mxu0 %v1321
    %1928 = vmatpush.bf16.msra.mxu0 %v1317
    %1929 = vmatmul.bf16.gmra.mxu0 %v87
    %v1930 = vpop.f32.mrf.mxu0
    %v1931 = vadd.f32 %v1918, %v1930
    %v1932 = vpop.f32.mrf.mxu0
    %1933 = vdwg.mxu0
    %1934 = vmatpush.bf16.msra.mxu0 %v1377
    %1935 = vmatpush.bf16.msra.mxu0 %v1373
    %1936 = vmatpush.bf16.msra.mxu0 %v1369
    %1937 = vmatpush.bf16.msra.mxu0 %v1365
    %1938 = vmatpush.bf16.msra.mxu0 %v1361
    %1939 = vmatpush.bf16.msra.mxu0 %v1357
    %1940 = vmatpush.bf16.msra.mxu0 %v1353
    %1941 = vmatpush.bf16.msra.mxu0 %v1349
    %1942 = vmatmul.bf16.gmra.mxu0 %v88
    %v1943 = vpop.f32.mrf.mxu0
    %v1944 = vadd.f32 %v1931, %v1943
    %v1945 = vpop.f32.mrf.mxu0
    %1946 = vdwg.mxu0
    %1947 = vmatpush.bf16.msra.mxu0 %v1154
    %1948 = vmatpush.bf16.msra.mxu0 %v1150
    %1949 = vmatpush.bf16.msra.mxu0 %v1146
    %1950 = vmatpush.bf16.msra.mxu0 %v1142
    %1951 = vmatpush.bf16.msra.mxu0 %v1138
    %1952 = vmatpush.bf16.msra.mxu0 %v1134
    %1953 = vmatpush.bf16.msra.mxu0 %v1130
    %1954 = vmatpush.bf16.msra.mxu0 %v1126
    %1955 = vmatmul.bf16.gmra.mxu0 %v81
    %v1956 = vpop.f32.mrf.mxu0
    %v1957 = vadd.f32 %v350, %v1956
    %v1958 = vpop.f32.mrf.mxu0
    %1959 = vdwg.mxu0
    %1960 = vmatpush.bf16.msra.mxu0 %v1186
    %1961 = vmatpush.bf16.msra.mxu0 %v1182
    %1962 = vmatpush.bf16.msra.mxu0 %v1178
    %1963 = vmatpush.bf16.msra.mxu0 %v1174
    %1964 = vmatpush.bf16.msra.mxu0 %v1170
    %1965 = vmatpush.bf16.msra.mxu0 %v1166
    %1966 = vmatpush.bf16.msra.mxu0 %v1162
    %1967 = vmatpush.bf16.msra.mxu0 %v1158
    %1968 = vmatmul.bf16.gmra.mxu0 %v82
    %v1969 = vpop.f32.mrf.mxu0
    %v1970 = vadd.f32 %v1957, %v1969
    %v1971 = vpop.f32.mrf.mxu0
    %1972 = vdwg.mxu0
    %1973 = vmatpush.bf16.msra.mxu0 %v1218
    %1974 = vmatpush.bf16.msra.mxu0 %v1214
    %1975 = vmatpush.bf16.msra.mxu0 %v1210
    %1976 = vmatpush.bf16.msra.mxu0 %v1206
    %1977 = vmatpush.bf16.msra.mxu0 %v1202
    %1978 = vmatpush.bf16.msra.mxu0 %v1198
    %1979 = vmatpush.bf16.msra.mxu0 %v1194
    %1980 = vmatpush.bf16.msra.mxu0 %v1190
    %1981 = vmatmul.bf16.gmra.mxu0 %v83
    %v1982 = vpop.f32.mrf.mxu0
    %v1983 = vadd.f32 %v1970, %v1982
    %v1984 = vpop.f32.mrf.mxu0
    %1985 = vdwg.mxu0
    %1986 = vmatpush.bf16.msra.mxu0 %v1250
    %1987 = vmatpush.bf16.msra.mxu0 %v1246
    %1988 = vmatpush.bf16.msra.mxu0 %v1242
    %1989 = vmatpush.bf16.msra.mxu0 %v1238
    %1990 = vmatpush.bf16.msra.mxu0 %v1234
    %1991 = vmatpush.bf16.msra.mxu0 %v1230
    %1992 = vmatpush.bf16.msra.mxu0 %v1226
    %1993 = vmatpush.bf16.msra.mxu0 %v1222
    %1994 = vmatmul.bf16.gmra.mxu0 %v84
    %v1995 = vpop.f32.mrf.mxu0
    %v1996 = vadd.f32 %v1983, %v1995
    %v1997 = vpop.f32.mrf.mxu0
    %1998 = vdwg.mxu0
    %1999 = vmatpush.bf16.msra.mxu0 %v1282
    %2000 = vmatpush.bf16.msra.mxu0 %v1278
    %2001 = vmatpush.bf16.msra.mxu0 %v1274
    %2002 = vmatpush.bf16.msra.mxu0 %v1270
    %2003 = vmatpush.bf16.msra.mxu0 %v1266
    %2004 = vmatpush.bf16.msra.mxu0 %v1262
    %2005 = vmatpush.bf16.msra.mxu0 %v1258
    %2006 = vmatpush.bf16.msra.mxu0 %v1254
    %2007 = vmatmul.bf16.gmra.mxu0 %v85
    %v2008 = vpop.f32.mrf.mxu0
    %v2009 = vadd.f32 %v1996, %v2008
    %v2010 = vpop.f32.mrf.mxu0
    %2011 = vdwg.mxu0
    %2012 = vmatpush.bf16.msra.mxu0 %v1314
    %2013 = vmatpush.bf16.msra.mxu0 %v1310
    %2014 = vmatpush.bf16.msra.mxu0 %v1306
    %2015 = vmatpush.bf16.msra.mxu0 %v1302
    %2016 = vmatpush.bf16.msra.mxu0 %v1298
    %2017 = vmatpush.bf16.msra.mxu0 %v1294
    %2018 = vmatpush.bf16.msra.mxu0 %v1290
    %2019 = vmatpush.bf16.msra.mxu0 %v1286
    %2020 = vmatmul.bf16.gmra.mxu0 %v86
    %v2021 = vpop.f32.mrf.mxu0
    %v2022 = vadd.f32 %v2009, %v2021
    %v2023 = vpop.f32.mrf.mxu0
    %2024 = vdwg.mxu0
    %2025 = vmatpush.bf16.msra.mxu0 %v1346
    %2026 = vmatpush.bf16.msra.mxu0 %v1342
    %2027 = vmatpush.bf16.msra.mxu0 %v1338
    %2028 = vmatpush.bf16.msra.mxu0 %v1334
    %2029 = vmatpush.bf16.msra.mxu0 %v1330
    %2030 = vmatpush.bf16.msra.mxu0 %v1326
    %2031 = vmatpush.bf16.msra.mxu0 %v1322
    %2032 = vmatpush.bf16.msra.mxu0 %v1318
    %2033 = vmatmul.bf16.gmra.mxu0 %v87
    %v2034 = vpop.f32.mrf.mxu0
    %v2035 = vadd.f32 %v2022, %v2034
    %v2036 = vpop.f32.mrf.mxu0
    %2037 = vdwg.mxu0
    %2038 = vmatpush.bf16.msra.mxu0 %v1378
    %2039 = vmatpush.bf16.msra.mxu0 %v1374
    %2040 = vmatpush.bf16.msra.mxu0 %v1370
    %2041 = vmatpush.bf16.msra.mxu0 %v1366
    %2042 = vmatpush.bf16.msra.mxu0 %v1362
    %2043 = vmatpush.bf16.msra.mxu0 %v1358
    %2044 = vmatpush.bf16.msra.mxu0 %v1354
    %2045 = vmatpush.bf16.msra.mxu0 %v1350
    %2046 = vmatmul.bf16.gmra.mxu0 %v88
    %v2047 = vpop.f32.mrf.mxu0
    %v2048 = vadd.f32 %v2035, %v2047
    %v2049 = vpop.f32.mrf.mxu0
    %2050 = vdwg.mxu0
    %v2051 = vmax.f32 %v1736, 0.0
    %v2052 = vmax.f32 %v1840, 0.0
    %v2053 = vmax.f32 %v1944, 0.0
    %v2054 = vmax.f32 %v2048, 0.0
    %v2055 = vpack.c.bf16 %v2051, %v2051
    %v2056 = vpack.c.bf16 %v2052, %v2052
    %v2057 = vpack.c.bf16 %v2053, %v2053
    %v2058 = vpack.c.bf16 %v2054, %v2054
    %v2059 = vld [vmem:[%s3] sm:$0xff]
    %v2060 = vld [vmem:[%s3 + $0x8] sm:$0xff]
    %v2061 = vld [vmem:[%s3 + $0x10] sm:$0xff]
    %v2062 = vld [vmem:[%s3 + $0x18] sm:$0xff]
    %v2063 = vld [vmem:[%s3 + $0x20] sm:$0xff]
    %v2064 = vld [vmem:[%s3 + $0x28] sm:$0xff]
    %v2065 = vld [vmem:[%s3 + $0x30] sm:$0xff]
    %v2066 = vld [vmem:[%s3 + $0x38] sm:$0xff]
    %v2067 = vld [vmem:[%s3 + $0x40] sm:$0xff]
    %v2068 = vld [vmem:[%s3 + $0x48] sm:$0xff]
    %v2069 = vld [vmem:[%s3 + $0x50] sm:$0xff]
    %v2070 = vld [vmem:[%s3 + $0x58] sm:$0xff]
    %v2071 = vld [vmem:[%s3 + $0x60] sm:$0xff]
    %v2072 = vld [vmem:[%s3 + $0x68] sm:$0xff]
    %v2073 = vld [vmem:[%s3 + $0x70] sm:$0xff]
    %v2074 = vld [vmem:[%s3 + $0x78] sm:$0xff]
    %v2075 = vld [vmem:[%s3 + $0x80] sm:$0xff]
    %v2076 = vld [vmem:[%s3 + $0x88] sm:$0xff]
    %v2077 = vld [vmem:[%s3 + $0x90] sm:$0xff]
    %v2078 = vld [vmem:[%s3 + $0x98] sm:$0xff]
    %v2079 = vld [vmem:[%s3 + $0xa0] sm:$0xff]
    %v2080 = vld [vmem:[%s3 + $0xa8] sm:$0xff]
    %v2081 = vld [vmem:[%s3 + $0xb0] sm:$0xff]
    %v2082 = vld [vmem:[%s3 + $0xb8] sm:$0xff]
    %v2083 = vld [vmem:[%s3 + $0xc0] sm:$0xff]
    %v2084 = vld [vmem:[%s3 + $0xc8] sm:$0xff]
    %v2085 = vld [vmem:[%s3 + $0xd0] sm:$0xff]
    %v2086 = vld [vmem:[%s3 + $0xd8] sm:$0xff]
    %v2087 = vld [vmem:[%s3 + $0xe0] sm:$0xff]
    %v2088 = vld [vmem:[%s3 + $0xe8] sm:$0xff]
    %v2089 = vld [vmem:[%s3 + $0xf0] sm:$0xff]
    %v2090 = vld [vmem:[%s3 + $0xf8] sm:$0xff]
    %v2091 = vld [vmem:[%s3 + $0x100] sm:$0xff]
    %v2092 = vld [vmem:[%s3 + $0x108] sm:$0xff]
    %v2093 = vld [vmem:[%s3 + $0x110] sm:$0xff]
    %v2094 = vld [vmem:[%s3 + $0x118] sm:$0xff]
    %v2095 = vld [vmem:[%s3 + $0x120] sm:$0xff]
    %v2096 = vld [vmem:[%s3 + $0x128] sm:$0xff]
    %v2097 = vld [vmem:[%s3 + $0x130] sm:$0xff]
    %v2098 = vld [vmem:[%s3 + $0x138] sm:$0xff]
    %v2099 = vld [vmem:[%s3 + $0x140] sm:$0xff]
    %v2100 = vld [vmem:[%s3 + $0x148] sm:$0xff]
    %v2101 = vld [vmem:[%s3 + $0x150] sm:$0xff]
    %v2102 = vld [vmem:[%s3 + $0x158] sm:$0xff]
    %v2103 = vld [vmem:[%s3 + $0x160] sm:$0xff]
    %v2104 = vld [vmem:[%s3 + $0x168] sm:$0xff]
    %v2105 = vld [vmem:[%s3 + $0x170] sm:$0xff]
    %v2106 = vld [vmem:[%s3 + $0x178] sm:$0xff]
    %v2107 = vld [vmem:[%s3 + $0x180] sm:$0xff]
    %v2108 = vld [vmem:[%s3 + $0x188] sm:$0xff]
    %v2109 = vld [vmem:[%s3 + $0x190] sm:$0xff]
    %v2110 = vld [vmem:[%s3 + $0x198] sm:$0xff]
    %v2111 = vld [vmem:[%s3 + $0x1a0] sm:$0xff]
    %v2112 = vld [vmem:[%s3 + $0x1a8] sm:$0xff]
    %v2113 = vld [vmem:[%s3 + $0x1b0] sm:$0xff]
    %v2114 = vld [vmem:[%s3 + $0x1b8] sm:$0xff]
    %v2115 = vld [vmem:[%s3 + $0x1c0] sm:$0xff]
    %v2116 = vld [vmem:[%s3 + $0x1c8] sm:$0xff]
    %v2117 = vld [vmem:[%s3 + $0x1d0] sm:$0xff]
    %v2118 = vld [vmem:[%s3 + $0x1d8] sm:$0xff]
    %v2119 = vld [vmem:[%s3 + $0x1e0] sm:$0xff]
    %v2120 = vld [vmem:[%s3 + $0x1e8] sm:$0xff]
    %v2121 = vld [vmem:[%s3 + $0x1f0] sm:$0xff]
    %v2122 = vld [vmem:[%s3 + $0x1f8] sm:$0xff]
    %v2123 = vld [vmem:[%s4] sm:$0x3]
    %v2125 = vperm.slane %v2123, 0
    %v2126 = vperm.slane %v2123, 1
    %v2193 = vunpack.c.l.b16 %v2059
    %v2194 = vunpack.c.h.b16 %v2059
    %v2195 = vunpack.c.l.b16 %v2060
    %v2196 = vunpack.c.h.b16 %v2060
    %v2197 = vunpack.c.l.b16 %v2061
    %v2198 = vunpack.c.h.b16 %v2061
    %v2199 = vunpack.c.l.b16 %v2062
    %v2200 = vunpack.c.h.b16 %v2062
    %v2201 = vunpack.c.l.b16 %v2063
    %v2202 = vunpack.c.h.b16 %v2063
    %v2203 = vunpack.c.l.b16 %v2064
    %v2204 = vunpack.c.h.b16 %v2064
    %v2205 = vunpack.c.l.b16 %v2065
    %v2206 = vunpack.c.h.b16 %v2065
    %v2207 = vunpack.c.l.b16 %v2066
    %v2208 = vunpack.c.h.b16 %v2066
    %v2209 = vunpack.c.l.b16 %v2067
    %v2210 = vunpack.c.h.b16 %v2067
    %v2211 = vunpack.c.l.b16 %v2068
    %v2212 = vunpack.c.h.b16 %v2068
    %v2213 = vunpack.c.l.b16 %v2069
    %v2214 = vunpack.c.h.b16 %v2069
    %v2215 = vunpack.c.l.b16 %v2070
    %v2216 = vunpack.c.h.b16 %v2070
    %v2217 = vunpack.c.l.b16 %v2071
    %v2218 = vunpack.c.h.b16 %v2071
    %v2219 = vunpack.c.l.b16 %v2072
    %v2220 = vunpack.c.h.b16 %v2072
    %v2221 = vunpack.c.l.b16 %v2073
    %v2222 = vunpack.c.h.b16 %v2073
    %v2223 = vunpack.c.l.b16 %v2074
    %v2224 = vunpack.c.h.b16 %v2074
    %v2225 = vunpack.c.l.b16 %v2075
    %v2226 = vunpack.c.h.b16 %v2075
    %v2227 = vunpack.c.l.b16 %v2076
    %v2228 = vunpack.c.h.b16 %v2076
    %v2229 = vunpack.c.l.b16 %v2077
    %v2230 = vunpack.c.h.b16 %v2077
    %v2231 = vunpack.c.l.b16 %v2078
    %v2232 = vunpack.c.h.b16 %v2078
    %v2233 = vunpack.c.l.b16 %v2079
    %v2234 = vunpack.c.h.b16 %v2079
    %v2235 = vunpack.c.l.b16 %v2080
    %v2236 = vunpack.c.h.b16 %v2080
    %v2237 = vunpack.c.l.b16 %v2081
    %v2238 = vunpack.c.h.b16 %v2081
    %v2239 = vunpack.c.l.b16 %v2082
    %v2240 = vunpack.c.h.b16 %v2082
    %v2241 = vunpack.c.l.b16 %v2083
    %v2242 = vunpack.c.h.b16 %v2083
    %v2243 = vunpack.c.l.b16 %v2084
    %v2244 = vunpack.c.h.b16 %v2084
    %v2245 = vunpack.c.l.b16 %v2085
    %v2246 = vunpack.c.h.b16 %v2085
    %v2247 = vunpack.c.l.b16 %v2086
    %v2248 = vunpack.c.h.b16 %v2086
    %v2249 = vunpack.c.l.b16 %v2087
    %v2250 = vunpack.c.h.b16 %v2087
    %v2251 = vunpack.c.l.b16 %v2088
    %v2252 = vunpack.c.h.b16 %v2088
    %v2253 = vunpack.c.l.b16 %v2089
    %v2254 = vunpack.c.h.b16 %v2089
    %v2255 = vunpack.c.l.b16 %v2090
    %v2256 = vunpack.c.h.b16 %v2090
    %v2257 = vunpack.c.l.b16 %v2091
    %v2258 = vunpack.c.h.b16 %v2091
    %v2259 = vunpack.c.l.b16 %v2092
    %v2260 = vunpack.c.h.b16 %v2092
    %v2261 = vunpack.c.l.b16 %v2093
    %v2262 = vunpack.c.h.b16 %v2093
    %v2263 = vunpack.c.l.b16 %v2094
    %v2264 = vunpack.c.h.b16 %v2094
    %v2265 = vunpack.c.l.b16 %v2095
    %v2266 = vunpack.c.h.b16 %v2095
    %v2267 = vunpack.c.l.b16 %v2096
    %v2268 = vunpack.c.h.b16 %v2096
    %v2269 = vunpack.c.l.b16 %v2097
    %v2270 = vunpack.c.h.b16 %v2097
    %v2271 = vunpack.c.l.b16 %v2098
    %v2272 = vunpack.c.h.b16 %v2098
    %v2273 = vunpack.c.l.b16 %v2099
    %v2274 = vunpack.c.h.b16 %v2099
    %v2275 = vunpack.c.l.b16 %v2100
    %v2276 = vunpack.c.h.b16 %v2100
    %v2277 = vunpack.c.l.b16 %v2101
    %v2278 = vunpack.c.h.b16 %v2101
    %v2279 = vunpack.c.l.b16 %v2102
    %v2280 = vunpack.c.h.b16 %v2102
    %v2281 = vunpack.c.l.b16 %v2103
    %v2282 = vunpack.c.h.b16 %v2103
    %v2283 = vunpack.c.l.b16 %v2104
    %v2284 = vunpack.c.h.b16 %v2104
    %v2285 = vunpack.c.l.b16 %v2105
    %v2286 = vunpack.c.h.b16 %v2105
    %v2287 = vunpack.c.l.b16 %v2106
    %v2288 = vunpack.c.h.b16 %v2106
    %v2289 = vunpack.c.l.b16 %v2107
    %v2290 = vunpack.c.h.b16 %v2107
    %v2291 = vunpack.c.l.b16 %v2108
    %v2292 = vunpack.c.h.b16 %v2108
    %v2293 = vunpack.c.l.b16 %v2109
    %v2294 = vunpack.c.h.b16 %v2109
    %v2295 = vunpack.c.l.b16 %v2110
    %v2296 = vunpack.c.h.b16 %v2110
    %v2297 = vunpack.c.l.b16 %v2111
    %v2298 = vunpack.c.h.b16 %v2111
    %v2299 = vunpack.c.l.b16 %v2112
    %v2300 = vunpack.c.h.b16 %v2112
    %v2301 = vunpack.c.l.b16 %v2113
    %v2302 = vunpack.c.h.b16 %v2113
    %v2303 = vunpack.c.l.b16 %v2114
    %v2304 = vunpack.c.h.b16 %v2114
    %v2305 = vunpack.c.l.b16 %v2115
    %v2306 = vunpack.c.h.b16 %v2115
    %v2307 = vunpack.c.l.b16 %v2116
    %v2308 = vunpack.c.h.b16 %v2116
    %v2309 = vunpack.c.l.b16 %v2117
    %v2310 = vunpack.c.h.b16 %v2117
    %v2311 = vunpack.c.l.b16 %v2118
    %v2312 = vunpack.c.h.b16 %v2118
    %v2313 = vunpack.c.l.b16 %v2119
    %v2314 = vunpack.c.h.b16 %v2119
    %v2315 = vunpack.c.l.b16 %v2120
    %v2316 = vunpack.c.h.b16 %v2120
    %v2317 = vunpack.c.l.b16 %v2121
    %v2318 = vunpack.c.h.b16 %v2121
    %v2319 = vunpack.c.l.b16 %v2122
    %v2320 = vunpack.c.h.b16 %v2122
    %v2321 = vpack.c.b16 %v2195, %v2193
    %v2322 = vpack.c.b16 %v2196, %v2194
    %v2323 = vpack.c.b16 %v2199, %v2197
    %v2324 = vpack.c.b16 %v2200, %v2198
    %v2325 = vpack.c.b16 %v2203, %v2201
    %v2326 = vpack.c.b16 %v2204, %v2202
    %v2327 = vpack.c.b16 %v2207, %v2205
    %v2328 = vpack.c.b16 %v2208, %v2206
    %v2329 = vpack.c.b16 %v2211, %v2209
    %v2330 = vpack.c.b16 %v2212, %v2210
    %v2331 = vpack.c.b16 %v2215, %v2213
    %v2332 = vpack.c.b16 %v2216, %v2214
    %v2333 = vpack.c.b16 %v2219, %v2217
    %v2334 = vpack.c.b16 %v2220, %v2218
    %v2335 = vpack.c.b16 %v2223, %v2221
    %v2336 = vpack.c.b16 %v2224, %v2222
    %v2337 = vpack.c.b16 %v2227, %v2225
    %v2338 = vpack.c.b16 %v2228, %v2226
    %v2339 = vpack.c.b16 %v2231, %v2229
    %v2340 = vpack.c.b16 %v2232, %v2230
    %v2341 = vpack.c.b16 %v2235, %v2233
    %v2342 = vpack.c.b16 %v2236, %v2234
    %v2343 = vpack.c.b16 %v2239, %v2237
    %v2344 = vpack.c.b16 %v2240, %v2238
    %v2345 = vpack.c.b16 %v2243, %v2241
    %v2346 = vpack.c.b16 %v2244, %v2242
    %v2347 = vpack.c.b16 %v2247, %v2245
    %v2348 = vpack.c.b16 %v2248, %v2246
    %v2349 = vpack.c.b16 %v2251, %v2249
    %v2350 = vpack.c.b16 %v2252, %v2250
    %v2351 = vpack.c.b16 %v2255, %v2253
    %v2352 = vpack.c.b16 %v2256, %v2254
    %v2353 = vpack.c.b16 %v2259, %v2257
    %v2354 = vpack.c.b16 %v2260, %v2258
    %v2355 = vpack.c.b16 %v2263, %v2261
    %v2356 = vpack.c.b16 %v2264, %v2262
    %v2357 = vpack.c.b16 %v2267, %v2265
    %v2358 = vpack.c.b16 %v2268, %v2266
    %v2359 = vpack.c.b16 %v2271, %v2269
    %v2360 = vpack.c.b16 %v2272, %v2270
    %v2361 = vpack.c.b16 %v2275, %v2273
    %v2362 = vpack.c.b16 %v2276, %v2274
    %v2363 = vpack.c.b16 %v2279, %v2277
    %v2364 = vpack.c.b16 %v2280, %v2278
    %v2365 = vpack.c.b16 %v2283, %v2281
    %v2366 = vpack.c.b16 %v2284, %v2282
    %v2367 = vpack.c.b16 %v2287, %v2285
    %v2368 = vpack.c.b16 %v2288, %v2286
    %v2369 = vpack.c.b16 %v2291, %v2289
    %v2370 = vpack.c.b16 %v2292, %v2290
    %v2371 = vpack.c.b16 %v2295, %v2293
    %v2372 = vpack.c.b16 %v2296, %v2294
    %v2373 = vpack.c.b16 %v2299, %v2297
    %v2374 = vpack.c.b16 %v2300, %v2298
    %v2375 = vpack.c.b16 %v2303, %v2301
    %v2376 = vpack.c.b16 %v2304, %v2302
    %v2377 = vpack.c.b16 %v2307, %v2305
    %v2378 = vpack.c.b16 %v2308, %v2306
    %v2379 = vpack.c.b16 %v2311, %v2309
    %v2380 = vpack.c.b16 %v2312, %v2310
    %v2381 = vpack.c.b16 %v2315, %v2313
    %v2382 = vpack.c.b16 %v2316, %v2314
    %v2383 = vpack.c.b16 %v2319, %v2317
    %v2384 = vpack.c.b16 %v2320, %v2318
    %2449 = vmatpush.bf16.msra.mxu0 %v2335
    %2450 = vmatpush.bf16.msra.mxu0 %v2333
    %2451 = vmatpush.bf16.msra.mxu0 %v2331
    %2452 = vmatpush.bf16.msra.mxu0 %v2329
    %2453 = vmatpush.bf16.msra.mxu0 %v2327
    %2454 = vmatpush.bf16.msra.mxu0 %v2325
    %2455 = vmatpush.bf16.msra.mxu0 %v2323
    %2456 = vmatpush.bf16.msra.mxu0 %v2321
    %2457 = vmatmul.bf16.gmra.mxu0 %v2055
    %v2458 = vpop.f32.mrf.mxu0
    %v2459 = vadd.f32 %v2125, %v2458
    %v2460 = vpop.f32.mrf.mxu0
    %2461 = vdwg.mxu0
    %2462 = vmatpush.bf16.msra.mxu0 %v2351
    %2463 = vmatpush.bf16.msra.mxu0 %v2349
    %2464 = vmatpush.bf16.msra.mxu0 %v2347
    %2465 = vmatpush.bf16.msra.mxu0 %v2345
    %2466 = vmatpush.bf16.msra.mxu0 %v2343
    %2467 = vmatpush.bf16.msra.mxu0 %v2341
    %2468 = vmatpush.bf16.msra.mxu0 %v2339
    %2469 = vmatpush.bf16.msra.mxu0 %v2337
    %2470 = vmatmul.bf16.gmra.mxu0 %v2056
    %v2471 = vpop.f32.mrf.mxu0
    %v2472 = vadd.f32 %v2459, %v2471
    %v2473 = vpop.f32.mrf.mxu0
    %2474 = vdwg.mxu0
    %2475 = vmatpush.bf16.msra.mxu0 %v2367
    %2476 = vmatpush.bf16.msra.mxu0 %v2365
    %2477 = vmatpush.bf16.msra.mxu0 %v2363
    %2478 = vmatpush.bf16.msra.mxu0 %v2361
    %2479 = vmatpush.bf16.msra.mxu0 %v2359
    %2480 = vmatpush.bf16.msra.mxu0 %v2357
    %2481 = vmatpush.bf16.msra.mxu0 %v2355
    %2482 = vmatpush.bf16.msra.mxu0 %v2353
    %2483 = vmatmul.bf16.gmra.mxu0 %v2057
    %v2484 = vpop.f32.mrf.mxu0
    %v2485 = vadd.f32 %v2472, %v2484
    %v2486 = vpop.f32.mrf.mxu0
    %2487 = vdwg.mxu0
    %2488 = vmatpush.bf16.msra.mxu0 %v2383
    %2489 = vmatpush.bf16.msra.mxu0 %v2381
    %2490 = vmatpush.bf16.msra.mxu0 %v2379
    %2491 = vmatpush.bf16.msra.mxu0 %v2377
    %2492 = vmatpush.bf16.msra.mxu0 %v2375
    %2493 = vmatpush.bf16.msra.mxu0 %v2373
    %2494 = vmatpush.bf16.msra.mxu0 %v2371
    %2495 = vmatpush.bf16.msra.mxu0 %v2369
    %2496 = vmatmul.bf16.gmra.mxu0 %v2058
    %v2497 = vpop.f32.mrf.mxu0
    %v2498 = vadd.f32 %v2485, %v2497
    %v2499 = vpop.f32.mrf.mxu0
    %2500 = vdwg.mxu0
    %2501 = vmatpush.bf16.msra.mxu0 %v2336
    %2502 = vmatpush.bf16.msra.mxu0 %v2334
    %2503 = vmatpush.bf16.msra.mxu0 %v2332
    %2504 = vmatpush.bf16.msra.mxu0 %v2330
    %2505 = vmatpush.bf16.msra.mxu0 %v2328
    %2506 = vmatpush.bf16.msra.mxu0 %v2326
    %2507 = vmatpush.bf16.msra.mxu0 %v2324
    %2508 = vmatpush.bf16.msra.mxu0 %v2322
    %2509 = vmatmul.bf16.gmra.mxu0 %v2055
    %v2510 = vpop.f32.mrf.mxu0
    %v2511 = vadd.f32 %v2126, %v2510
    %v2512 = vpop.f32.mrf.mxu0
    %2513 = vdwg.mxu0
    %2514 = vmatpush.bf16.msra.mxu0 %v2352
    %2515 = vmatpush.bf16.msra.mxu0 %v2350
    %2516 = vmatpush.bf16.msra.mxu0 %v2348
    %2517 = vmatpush.bf16.msra.mxu0 %v2346
    %2518 = vmatpush.bf16.msra.mxu0 %v2344
    %2519 = vmatpush.bf16.msra.mxu0 %v2342
    %2520 = vmatpush.bf16.msra.mxu0 %v2340
    %2521 = vmatpush.bf16.msra.mxu0 %v2338
    %2522 = vmatmul.bf16.gmra.mxu0 %v2056
    %v2523 = vpop.f32.mrf.mxu0
    %v2524 = vadd.f32 %v2511, %v2523
    %v2525 = vpop.f32.mrf.mxu0
    %2526 = vdwg.mxu0
    %2527 = vmatpush.bf16.msra.mxu0 %v2368
    %2528 = vmatpush.bf16.msra.mxu0 %v2366
    %2529 = vmatpush.bf16.msra.mxu0 %v2364
    %2530 = vmatpush.bf16.msra.mxu0 %v2362
    %2531 = vmatpush.bf16.msra.mxu0 %v2360
    %2532 = vmatpush.bf16.msra.mxu0 %v2358
    %2533 = vmatpush.bf16.msra.mxu0 %v2356
    %2534 = vmatpush.bf16.msra.mxu0 %v2354
    %2535 = vmatmul.bf16.gmra.mxu0 %v2057
    %v2536 = vpop.f32.mrf.mxu0
    %v2537 = vadd.f32 %v2524, %v2536
    %v2538 = vpop.f32.mrf.mxu0
    %2539 = vdwg.mxu0
    %2540 = vmatpush.bf16.msra.mxu0 %v2384
    %2541 = vmatpush.bf16.msra.mxu0 %v2382
    %2542 = vmatpush.bf16.msra.mxu0 %v2380
    %2543 = vmatpush.bf16.msra.mxu0 %v2378
    %2544 = vmatpush.bf16.msra.mxu0 %v2376
    %2545 = vmatpush.bf16.msra.mxu0 %v2374
    %2546 = vmatpush.bf16.msra.mxu0 %v2372
    %2547 = vmatpush.bf16.msra.mxu0 %v2370
    %2548 = vmatmul.bf16.gmra.mxu0 %v2058
    %v2549 = vpop.f32.mrf.mxu0
    %v2550 = vadd.f32 %v2537, %v2549
    %v2551 = vpop.f32.mrf.mxu0
    %2552 = vdwg.mxu0
    %v2553 = vmax.f32 %v2498, 0.0
    %v2554 = vmax.f32 %v2550, 0.0
    %v2555 = vpack.c.bf16 %v2553, %v2553
    %v2556 = vpack.c.bf16 %v2554, %v2554
    %v2557 = vld [vmem:[#allocation4] sm:$0xf]
    %v2558 = vld [vmem:[#allocation4 + $0x4] sm:$0xf]
    %v2559 = vld [vmem:[#allocation4 + $0x8] sm:$0xf]
    %v2560 = vld [vmem:[#allocation4 + $0xc] sm:$0xf]
    %v2561 = vld [vmem:[#allocation4 + $0x10] sm:$0xf]
    %v2562 = vld [vmem:[#allocation4 + $0x14] sm:$0xf]
    %v2563 = vld [vmem:[#allocation4 + $0x18] sm:$0xf]
    %v2564 = vld [vmem:[#allocation4 + $0x1c] sm:$0xf]
    %v2565 = vld [vmem:[#allocation4 + $0x20] sm:$0xf]
    %v2566 = vld [vmem:[#allocation4 + $0x24] sm:$0xf]
    %v2567 = vld [vmem:[#allocation4 + $0x28] sm:$0xf]
    %v2568 = vld [vmem:[#allocation4 + $0x2c] sm:$0xf]
    %v2569 = vld [vmem:[#allocation4 + $0x30] sm:$0xf]
    %v2570 = vld [vmem:[#allocation4 + $0x34] sm:$0xf]
    %v2571 = vld [vmem:[#allocation4 + $0x38] sm:$0xf]
    %v2572 = vld [vmem:[#allocation4 + $0x3c] sm:$0xf]
    %v2573 = vld [vmem:[#allocation4 + $0x40] sm:$0xf]
    %v2574 = vld [vmem:[#allocation4 + $0x44] sm:$0xf]
    %v2575 = vld [vmem:[#allocation4 + $0x48] sm:$0xf]
    %v2576 = vld [vmem:[#allocation4 + $0x4c] sm:$0xf]
    %v2577 = vld [vmem:[#allocation4 + $0x50] sm:$0xf]
    %v2578 = vld [vmem:[#allocation4 + $0x54] sm:$0xf]
    %v2579 = vld [vmem:[#allocation4 + $0x58] sm:$0xf]
    %v2580 = vld [vmem:[#allocation4 + $0x5c] sm:$0xf]
    %v2581 = vld [vmem:[#allocation4 + $0x60] sm:$0xf]
    %v2582 = vld [vmem:[#allocation4 + $0x64] sm:$0xf]
    %v2583 = vld [vmem:[#allocation4 + $0x68] sm:$0xf]
    %v2584 = vld [vmem:[#allocation4 + $0x6c] sm:$0xf]
    %v2585 = vld [vmem:[#allocation4 + $0x70] sm:$0xf]
    %v2586 = vld [vmem:[#allocation4 + $0x74] sm:$0xf]
    %v2587 = vld [vmem:[#allocation4 + $0x78] sm:$0xf]
    %v2588 = vld [vmem:[#allocation4 + $0x7c] sm:$0xf]
    %v2589 = vld [vmem:[%s6] sm:$0x1]
    %v2591 = vperm.slane %v2589, 0
    %v2625 = vunpack.c.l.b16 %v2557
    %v2626 = vunpack.c.l.b16 %v2558
    %v2627 = vunpack.c.l.b16 %v2559
    %v2628 = vunpack.c.l.b16 %v2560
    %v2629 = vunpack.c.l.b16 %v2561
    %v2630 = vunpack.c.l.b16 %v2562
    %v2631 = vunpack.c.l.b16 %v2563
    %v2632 = vunpack.c.l.b16 %v2564
    %v2633 = vunpack.c.l.b16 %v2565
    %v2634 = vunpack.c.l.b16 %v2566
    %v2635 = vunpack.c.l.b16 %v2567
    %v2636 = vunpack.c.l.b16 %v2568
    %v2637 = vunpack.c.l.b16 %v2569
    %v2638 = vunpack.c.l.b16 %v2570
    %v2639 = vunpack.c.l.b16 %v2571
    %v2640 = vunpack.c.l.b16 %v2572
    %v2641 = vunpack.c.l.b16 %v2573
    %v2642 = vunpack.c.l.b16 %v2574
    %v2643 = vunpack.c.l.b16 %v2575
    %v2644 = vunpack.c.l.b16 %v2576
    %v2645 = vunpack.c.l.b16 %v2577
    %v2646 = vunpack.c.l.b16 %v2578
    %v2647 = vunpack.c.l.b16 %v2579
    %v2648 = vunpack.c.l.b16 %v2580
    %v2649 = vunpack.c.l.b16 %v2581
    %v2650 = vunpack.c.l.b16 %v2582
    %v2651 = vunpack.c.l.b16 %v2583
    %v2652 = vunpack.c.l.b16 %v2584
    %v2653 = vunpack.c.l.b16 %v2585
    %v2654 = vunpack.c.l.b16 %v2586
    %v2655 = vunpack.c.l.b16 %v2587
    %v2656 = vunpack.c.l.b16 %v2588
    %v2657 = vpack.c.b16 %v2626, %v2625
    %v2658 = vpack.c.b16 %v2628, %v2627
    %v2659 = vpack.c.b16 %v2630, %v2629
    %v2660 = vpack.c.b16 %v2632, %v2631
    %v2661 = vpack.c.b16 %v2634, %v2633
    %v2662 = vpack.c.b16 %v2636, %v2635
    %v2663 = vpack.c.b16 %v2638, %v2637
    %v2664 = vpack.c.b16 %v2640, %v2639
    %v2665 = vpack.c.b16 %v2642, %v2641
    %v2666 = vpack.c.b16 %v2644, %v2643
    %v2667 = vpack.c.b16 %v2646, %v2645
    %v2668 = vpack.c.b16 %v2648, %v2647
    %v2669 = vpack.c.b16 %v2650, %v2649
    %v2670 = vpack.c.b16 %v2652, %v2651
    %v2671 = vpack.c.b16 %v2654, %v2653
    %v2672 = vpack.c.b16 %v2656, %v2655
    %2689 = vmatpush.bf16.msra.mxu0 %v2664
    %2690 = vmatpush.bf16.msra.mxu0 %v2663
    %2691 = vmatpush.bf16.msra.mxu0 %v2662
    %2692 = vmatpush.bf16.msra.mxu0 %v2661
    %2693 = vmatpush.bf16.msra.mxu0 %v2660
    %2694 = vmatpush.bf16.msra.mxu0 %v2659
    %2695 = vmatpush.bf16.msra.mxu0 %v2658
    %2696 = vmatpush.bf16.msra.mxu0 %v2657
    %2697 = vmatmul.bf16.gmra.mxu0 %v2555
    %v2698 = vpop.f32.mrf.mxu0
    %v2699 = vadd.f32 %v2591, %v2698
    %v2700 = vpop.f32.mrf.mxu0
    %2701 = vdwg.mxu0
    %2702 = vmatpush.bf16.msra.mxu0 %v2672
    %2703 = vmatpush.bf16.msra.mxu0 %v2671
    %2704 = vmatpush.bf16.msra.mxu0 %v2670
    %2705 = vmatpush.bf16.msra.mxu0 %v2669
    %2706 = vmatpush.bf16.msra.mxu0 %v2668
    %2707 = vmatpush.bf16.msra.mxu0 %v2667
    %2708 = vmatpush.bf16.msra.mxu0 %v2666
    %2709 = vmatpush.bf16.msra.mxu0 %v2665
    %2710 = vmatmul.bf16.gmra.mxu0 %v2556
    %v2711 = vpop.f32.mrf.mxu0
    %v2712 = vadd.f32 %v2699, %v2711
    %v2713 = vpop.f32.mrf.mxu0
    %2714 = vdwg.mxu0
    %vm2715 = vcmask 66560
    %2716 = vst.msk [vmem:[%s7] sm:$0x3] %vm2715, %v2712
    // Predicated region
    $region38: #{tnet_forward.3} parent=1 // pred_check
      _
    $region39: #{tnet_forward.3} parent=1 // pred_check_branch
      %2718 = sbr.rel (0) target = $region41
    $region40: #{tnet_forward.3} parent=1 // pred_region
      _
    $region41: #{tnet_forward.3} parent=1 // pred_fallthru
      _
    // Predicated region
    $region42: #{tnet_forward.3} parent=1 // pred_check
      _
    $region43: #{tnet_forward.3} parent=1 // pred_check_branch
      %2720 = sbr.rel (0) target = $region45
    $region44: #{tnet_forward.3} parent=1 // pred_region
      _
    $region45: #{tnet_forward.3} parent=1 // pred_fallthru
      _
    %2721 = vsyncpa [#allocation3], 1
    %2722 = vsyncpa [#allocation5], 1

</llo_original>
